<compile_context>
chip_gen: v7x
topology: tpu7x:2x2x1
jax: 0.10.0
libtpu: 0.0.40
codegen_flags: <defaults>
</compile_context>

<pallas_src>
import functools

import jax
import jax.numpy as jnp
from jax import lax
from jax.experimental import pallas as pl
from jax.experimental.pallas import tpu as pltpu


def _srcnn_fused_kernel(x_ref, w1_ref, b1_ref, w2_ref, b2_ref, w3_ref, b3_ref,
                        o_ref, *, H, W, K1, K3, C1, C2):
    """Whole SRCNN forward for one image, entirely in VMEM.

    x_ref : (1, H, W)        single-channel input image
    w1_ref: (K1*K1, C1)      conv1 weights, row index = kh*K1 + kw
    b1_ref: (1, C1)
    w2_ref: (C1, C2)         conv2 (1x1) weights
    b2_ref: (1, C2)
    w3_ref: (1, K3*K3*C2)    conv3 weights, col index = (kh*K3 + kw)*C2 + ci
    b3_ref: (1, 1)
    o_ref : (1, 1, H*W)      lane-dense output row for this image
    """
    f32 = jnp.float32
    HW = H * W
    P1 = (K1 - 1) // 2
    P3 = (K3 - 1) // 2

    # ---------------- conv1: KxK, 1 -> C1 (im2col + one MXU matmul) ---------
    x = x_ref[0].astype(f32)                                    # (H, W)
    zc = jnp.zeros((H, P1), f32)
    xp = jnp.concatenate([zc, x, zc], axis=1)                   # (H, W+2P1)
    zr = jnp.zeros((P1, W + 2 * P1), f32)
    xp = jnp.concatenate([zr, xp, zr], axis=0)                  # (H+2P1, W+2P1)

    # kw shifts become the new minor (tap) axis; kh shifts are cheap slices
    # on the leading (untiled) axis.
    s = jnp.stack([xp[:, kw:kw + W] for kw in range(K1)], axis=-1)  # (H+2P1, W, K1)
    p1_sp = jnp.concatenate([s[kh:kh + H] for kh in range(K1)],
                            axis=-1)                            # (H, W, K1*K1)
    p1 = p1_sp.reshape(HW, K1 * K1)                             # (HW, 81)

    a1 = jnp.dot(p1, w1_ref[...], preferred_element_type=f32)   # (HW, C1)
    a1 = jnp.maximum(a1 + b1_ref[...], 0.0)

    # ---------------- conv2: 1x1, C1 -> C2 (plain matmul) -------------------
    a2 = jnp.dot(a1, w2_ref[...], preferred_element_type=f32)   # (HW, C2)
    a2 = jnp.maximum(a2 + b2_ref[...], 0.0)

    # ---------------- conv3: KxK, C2 -> 1 (im2col + one matmul) -------------
    a2_sp = a2.reshape(H, W, C2)                                # (H, W, C2)
    zr2 = jnp.zeros((P3, W, C2), f32)
    a2p = jnp.concatenate([zr2, a2_sp, zr2], axis=0)            # (H+2P3, W, C2)
    zc2 = jnp.zeros((H + 2 * P3, P3, C2), f32)
    a2p = jnp.concatenate([zc2, a2p, zc2], axis=1)              # (H+2P3, W+2P3, C2)

    taps = [a2p[kh:kh + H, kw:kw + W, :].reshape(HW, C2)
            for kh in range(K3) for kw in range(K3)]
    p3 = jnp.concatenate(taps, axis=-1)                         # (HW, K3*K3*C2)

    # (1, 800) contracted with (HW, 800) on their minor dims -> (1, HW),
    # which is a lane-dense row (flash-attention style transposed-B matmul).
    out = lax.dot_general(w3_ref[...], p3,
                          dimension_numbers=(((1,), (1,)), ((), ())),
                          preferred_element_type=f32)           # (1, HW)
    out = out + b3_ref[...]
    o_ref[0] = out.astype(o_ref.dtype)


def srcnn_forward(x_nchw, params):
    """SRCNN forward.  Accepts/returns PyTorch-style NCHW, Cin must be 1."""
    N, cin, H, W = x_nchw.shape
    assert cin == 1, "SRCNN expects a single input channel"
    HW = H * W

    w1, b1 = params["w1"], params["b1"]     # (K1,K1,1,C1), (C1,)
    w2, b2 = params["w2"], params["b2"]     # (1,1,C1,C2), (C2,)
    w3, b3 = params["w3"], params["b3"]     # (K3,K3,C2,1), (1,)
    K1, C1 = w1.shape[0], w1.shape[-1]
    C2 = w2.shape[-1]
    K3 = w3.shape[0]

    # 2-D weight/bias slabs matching the in-kernel im2col orderings.
    w1_2d = w1.reshape(K1 * K1, C1)          # row = kh*K1 + kw   (Cin == 1)
    w2_2d = w2.reshape(C1, C2)
    w3_2d = w3.reshape(1, K3 * K3 * C2)      # col = (kh*K3 + kw)*C2 + ci
    b1_2d = b1.reshape(1, C1)
    b2_2d = b2.reshape(1, C2)
    b3_2d = b3.reshape(1, 1)

    x_in = x_nchw[:, 0, :, :]                # (N, H, W)

    kernel = functools.partial(_srcnn_fused_kernel, H=H, W=W, K1=K1, K3=K3,
                               C1=C1, C2=C2)
    out_flat = pl.pallas_call(
        kernel,
        out_shape=jax.ShapeDtypeStruct((N, 1, HW), x_nchw.dtype),
        grid=(N,),
        in_specs=[
            pl.BlockSpec((1, H, W), lambda n: (n, 0, 0)),
            pl.BlockSpec((K1 * K1, C1), lambda n: (0, 0)),
            pl.BlockSpec((1, C1), lambda n: (0, 0)),
            pl.BlockSpec((C1, C2), lambda n: (0, 0)),
            pl.BlockSpec((1, C2), lambda n: (0, 0)),
            pl.BlockSpec((1, K3 * K3 * C2), lambda n: (0, 0)),
            pl.BlockSpec((1, 1), lambda n: (0, 0)),
        ],
        out_specs=pl.BlockSpec((1, 1, HW), lambda n: (n, 0, 0)),
        compiler_params=pltpu.CompilerParams(
            dimension_semantics=("parallel",)),
    )(x_in, w1_2d, b1_2d, w2_2d, b2_2d, w3_2d, b3_2d)

    return out_flat.reshape(N, 1, H, W)


def init_srcnn_params(key):
    """Deterministic SRCNN parameters (PyTorch-style uniform fan-in init)."""
    def conv_init(k, K, cin, cout):
        kw_key, kb_key = jax.random.split(k)
        bound = 1.0 / (cin * K * K) ** 0.5
        w = jax.random.uniform(kw_key, (K, K, cin, cout), jnp.float32,
                               -bound, bound)
        b = jax.random.uniform(kb_key, (cout,), jnp.float32, -bound, bound)
        return w, b

    k1, k2, k3 = jax.random.split(key, 3)
    w1, b1 = conv_init(k1, 9, 1, 64)    # conv1: Conv2d(1, 64, k=9, pad=4)
    w2, b2 = conv_init(k2, 1, 64, 32)   # conv2: Conv2d(64, 32, k=1, pad=0)
    w3, b3 = conv_init(k3, 5, 32, 1)    # conv3: Conv2d(32, 1, k=5, pad=2)
    return dict(w1=w1, b1=b1, w2=w2, b2=b2, w3=w3, b3=b3)


def srcnn_reference(x_nchw, params):
    """Pure-JAX reference (lax conv) for numerical verification."""
    def conv(x, w, b, relu):
        y = jax.lax.conv_general_dilated(
            x, w, window_strides=(1, 1), padding="SAME",
            dimension_numbers=("NHWC", "HWIO", "NHWC"),
            precision=jax.lax.Precision.HIGHEST)
        y = y + b[None, None, None, :]
        return jnp.maximum(y, 0.0) if relu else y

    x = jnp.transpose(x_nchw, (0, 2, 3, 1))
    x = conv(x, params["w1"], params["b1"], True)
    x = conv(x, params["w2"], params["b2"], True)
    x = conv(x, params["w3"], params["b3"], False)
    return jnp.transpose(x, (0, 3, 1, 2))


if __name__ == "__main__":
    key = jax.random.PRNGKey(0)
    k_x, k_p = jax.random.split(key)

    # SRCNN takes a single-channel image: NCHW = (2, 1, 16, 16)
    x = jax.random.normal(k_x, (2, 1, 16, 16), jnp.float32)
    params = init_srcnn_params(k_p)

    out = jax.block_until_ready(srcnn_forward(x, params))
    ref = jax.block_until_ready(srcnn_reference(x, params))

    assert out.shape == (2, 1, 16, 16), out.shape
    assert jnp.allclose(out, ref, atol=1e-4, rtol=1e-4), (
        float(jnp.max(jnp.abs(out - ref))))
    print("KERNEL_OK")
</pallas_src>

<mosaic_0001>
module attributes {stable_mosaic.version = 11 : i64} {
  func.func @_srcnn_fused_kernel(%arg0: i32, %arg1: memref<1x16x16xf32, #tpu.memory_space<vmem>>, %arg2: memref<81x64xf32, #tpu.memory_space<vmem>>, %arg3: memref<1x64xf32, #tpu.memory_space<vmem>>, %arg4: memref<64x32xf32, #tpu.memory_space<vmem>>, %arg5: memref<1x32xf32, #tpu.memory_space<vmem>>, %arg6: memref<1x800xf32, #tpu.memory_space<vmem>>, %arg7: memref<1x1xf32, #tpu.memory_space<vmem>>, %arg8: memref<1x1x256xf32, #tpu.memory_space<vmem>>) attributes {dimension_semantics = [#tpu.dimension_semantics<parallel>], iteration_bounds = array<i64: 2>, scalar_prefetch = 0 : i64, scratch_operands = 0 : i64, tpu.core_type = #tpu.core_type<tc>, window_params = [{transform_indices = @transform_0, window_bounds = array<i64: 1, 16, 16>}, {pipeline_mode = #tpu.pipeline_mode<synchronous>, transform_indices = @transform_1, window_bounds = array<i64: 81, 64>}, {pipeline_mode = #tpu.pipeline_mode<synchronous>, transform_indices = @transform_2, window_bounds = array<i64: 1, 64>}, {pipeline_mode = #tpu.pipeline_mode<synchronous>, transform_indices = @transform_3, window_bounds = array<i64: 64, 32>}, {pipeline_mode = #tpu.pipeline_mode<synchronous>, transform_indices = @transform_4, window_bounds = array<i64: 1, 32>}, {pipeline_mode = #tpu.pipeline_mode<synchronous>, transform_indices = @transform_5, window_bounds = array<i64: 1, 800>}, {pipeline_mode = #tpu.pipeline_mode<synchronous>, transform_indices = @transform_6, window_bounds = array<i64: 1, 1>}, {transform_indices = @transform_7, window_bounds = array<i64: 1, 1, 256>}]} {
    %c0 = arith.constant 0 : index
    %c0_0 = arith.constant 0 : index
    %c0_1 = arith.constant 0 : index
    %0 = vector.load %arg1[%c0, %c0_0, %c0_1] : memref<1x16x16xf32, #tpu.memory_space<vmem>>, vector<1x16x16xf32>
    %1 = vector.shape_cast %0 : vector<1x16x16xf32> to vector<16x16xf32>
    %cst = arith.constant 0.000000e+00 : f32
    %2 = vector.broadcast %cst : f32 to vector<16x4xf32>
    %3 = tpu.concatenate %2, %1, %2 in 1 : vector<16x4xf32>, vector<16x16xf32>, vector<16x4xf32> -> vector<16x24xf32>
    %cst_2 = arith.constant 0.000000e+00 : f32
    %4 = vector.broadcast %cst_2 : f32 to vector<4x24xf32>
    %5 = tpu.concatenate %4, %3, %4 in 0 : vector<4x24xf32>, vector<16x24xf32>, vector<4x24xf32> -> vector<24x24xf32>
    %6 = vector.extract_strided_slice %5 {offsets = [0, 0], sizes = [24, 16], strides = [1, 1]} : vector<24x24xf32> to vector<24x16xf32>
    %7 = vector.extract_strided_slice %5 {offsets = [0, 1], sizes = [24, 16], strides = [1, 1]} : vector<24x24xf32> to vector<24x16xf32>
    %8 = vector.extract_strided_slice %5 {offsets = [0, 2], sizes = [24, 16], strides = [1, 1]} : vector<24x24xf32> to vector<24x16xf32>
    %9 = vector.extract_strided_slice %5 {offsets = [0, 3], sizes = [24, 16], strides = [1, 1]} : vector<24x24xf32> to vector<24x16xf32>
    %10 = vector.extract_strided_slice %5 {offsets = [0, 4], sizes = [24, 16], strides = [1, 1]} : vector<24x24xf32> to vector<24x16xf32>
    %11 = vector.extract_strided_slice %5 {offsets = [0, 5], sizes = [24, 16], strides = [1, 1]} : vector<24x24xf32> to vector<24x16xf32>
    %12 = vector.extract_strided_slice %5 {offsets = [0, 6], sizes = [24, 16], strides = [1, 1]} : vector<24x24xf32> to vector<24x16xf32>
    %13 = vector.extract_strided_slice %5 {offsets = [0, 7], sizes = [24, 16], strides = [1, 1]} : vector<24x24xf32> to vector<24x16xf32>
    %14 = vector.extract_strided_slice %5 {offsets = [0, 8], sizes = [24, 16], strides = [1, 1]} : vector<24x24xf32> to vector<24x16xf32>
    %15 = vector.shape_cast %6 : vector<24x16xf32> to vector<24x16x1xf32>
    %16 = vector.shape_cast %7 : vector<24x16xf32> to vector<24x16x1xf32>
    %17 = vector.shape_cast %8 : vector<24x16xf32> to vector<24x16x1xf32>
    %18 = vector.shape_cast %9 : vector<24x16xf32> to vector<24x16x1xf32>
    %19 = vector.shape_cast %10 : vector<24x16xf32> to vector<24x16x1xf32>
    %20 = vector.shape_cast %11 : vector<24x16xf32> to vector<24x16x1xf32>
    %21 = vector.shape_cast %12 : vector<24x16xf32> to vector<24x16x1xf32>
    %22 = vector.shape_cast %13 : vector<24x16xf32> to vector<24x16x1xf32>
    %23 = vector.shape_cast %14 : vector<24x16xf32> to vector<24x16x1xf32>
    %24 = tpu.concatenate %15, %16, %17, %18, %19, %20, %21, %22, %23 in 2 : vector<24x16x1xf32>, vector<24x16x1xf32>, vector<24x16x1xf32>, vector<24x16x1xf32>, vector<24x16x1xf32>, vector<24x16x1xf32>, vector<24x16x1xf32>, vector<24x16x1xf32>, vector<24x16x1xf32> -> vector<24x16x9xf32>
    %25 = vector.extract_strided_slice %24 {offsets = [0, 0, 0], sizes = [16, 16, 9], strides = [1, 1, 1]} : vector<24x16x9xf32> to vector<16x16x9xf32>
    %26 = vector.extract_strided_slice %24 {offsets = [1, 0, 0], sizes = [16, 16, 9], strides = [1, 1, 1]} : vector<24x16x9xf32> to vector<16x16x9xf32>
    %27 = vector.extract_strided_slice %24 {offsets = [2, 0, 0], sizes = [16, 16, 9], strides = [1, 1, 1]} : vector<24x16x9xf32> to vector<16x16x9xf32>
    %28 = vector.extract_strided_slice %24 {offsets = [3, 0, 0], sizes = [16, 16, 9], strides = [1, 1, 1]} : vector<24x16x9xf32> to vector<16x16x9xf32>
    %29 = vector.extract_strided_slice %24 {offsets = [4, 0, 0], sizes = [16, 16, 9], strides = [1, 1, 1]} : vector<24x16x9xf32> to vector<16x16x9xf32>
    %30 = vector.extract_strided_slice %24 {offsets = [5, 0, 0], sizes = [16, 16, 9], strides = [1, 1, 1]} : vector<24x16x9xf32> to vector<16x16x9xf32>
    %31 = vector.extract_strided_slice %24 {offsets = [6, 0, 0], sizes = [16, 16, 9], strides = [1, 1, 1]} : vector<24x16x9xf32> to vector<16x16x9xf32>
    %32 = vector.extract_strided_slice %24 {offsets = [7, 0, 0], sizes = [16, 16, 9], strides = [1, 1, 1]} : vector<24x16x9xf32> to vector<16x16x9xf32>
    %33 = vector.extract_strided_slice %24 {offsets = [8, 0, 0], sizes = [16, 16, 9], strides = [1, 1, 1]} : vector<24x16x9xf32> to vector<16x16x9xf32>
    %34 = tpu.concatenate %25, %26, %27, %28, %29, %30, %31, %32, %33 in 2 : vector<16x16x9xf32>, vector<16x16x9xf32>, vector<16x16x9xf32>, vector<16x16x9xf32>, vector<16x16x9xf32>, vector<16x16x9xf32>, vector<16x16x9xf32>, vector<16x16x9xf32>, vector<16x16x9xf32> -> vector<16x16x81xf32>
    %35 = vector.shape_cast %34 : vector<16x16x81xf32> to vector<256x81xf32>
    %c0_3 = arith.constant 0 : index
    %c0_4 = arith.constant 0 : index
    %36 = vector.load %arg2[%c0_3, %c0_4] : memref<81x64xf32, #tpu.memory_space<vmem>>, vector<81x64xf32>
    %cst_5 = arith.constant dense<0.000000e+00> : vector<256x64xf32>
    %37 = tpu.matmul %35, %36, %cst_5 {dimension_numbers = #tpu.dot_dimension_numbers<[1], [0], [0], [1], [0, 0, 1, 1], [], []>} : vector<256x81xf32>, vector<81x64xf32>, vector<256x64xf32> -> vector<256x64xf32>
    %c0_6 = arith.constant 0 : index
    %c0_7 = arith.constant 0 : index
    %38 = vector.load %arg3[%c0_6, %c0_7] : memref<1x64xf32, #tpu.memory_space<vmem>>, vector<1x64xf32>
    %39 = vector.broadcast %38 : vector<1x64xf32> to vector<256x64xf32>
    %40 = arith.addf %37, %39 : vector<256x64xf32>
    %cst_8 = arith.constant 0.000000e+00 : f32
    %41 = vector.broadcast %cst_8 : f32 to vector<256x64xf32>
    %42 = arith.maximumf %40, %41 : vector<256x64xf32>
    %c0_9 = arith.constant 0 : index
    %c0_10 = arith.constant 0 : index
    %43 = vector.load %arg4[%c0_9, %c0_10] : memref<64x32xf32, #tpu.memory_space<vmem>>, vector<64x32xf32>
    %cst_11 = arith.constant dense<0.000000e+00> : vector<256x32xf32>
    %44 = tpu.matmul %42, %43, %cst_11 {dimension_numbers = #tpu.dot_dimension_numbers<[1], [0], [0], [1], [0, 0, 1, 1], [], []>} : vector<256x64xf32>, vector<64x32xf32>, vector<256x32xf32> -> vector<256x32xf32>
    %c0_12 = arith.constant 0 : index
    %c0_13 = arith.constant 0 : index
    %45 = vector.load %arg5[%c0_12, %c0_13] : memref<1x32xf32, #tpu.memory_space<vmem>>, vector<1x32xf32>
    %46 = vector.broadcast %45 : vector<1x32xf32> to vector<256x32xf32>
    %47 = arith.addf %44, %46 : vector<256x32xf32>
    %cst_14 = arith.constant 0.000000e+00 : f32
    %48 = vector.broadcast %cst_14 : f32 to vector<256x32xf32>
    %49 = arith.maximumf %47, %48 : vector<256x32xf32>
    %50 = vector.shape_cast %49 : vector<256x32xf32> to vector<16x16x32xf32>
    %cst_15 = arith.constant 0.000000e+00 : f32
    %51 = vector.broadcast %cst_15 : f32 to vector<2x16x32xf32>
    %52 = tpu.concatenate %51, %50, %51 in 0 : vector<2x16x32xf32>, vector<16x16x32xf32>, vector<2x16x32xf32> -> vector<20x16x32xf32>
    %cst_16 = arith.constant 0.000000e+00 : f32
    %53 = vector.broadcast %cst_16 : f32 to vector<20x2x32xf32>
    %54 = tpu.concatenate %53, %52, %53 in 1 : vector<20x2x32xf32>, vector<20x16x32xf32>, vector<20x2x32xf32> -> vector<20x20x32xf32>
    %55 = vector.extract_strided_slice %54 {offsets = [0, 0, 0], sizes = [16, 16, 32], strides = [1, 1, 1]} : vector<20x20x32xf32> to vector<16x16x32xf32>
    %56 = vector.shape_cast %55 : vector<16x16x32xf32> to vector<256x32xf32>
    %57 = vector.extract_strided_slice %54 {offsets = [0, 1, 0], sizes = [16, 16, 32], strides = [1, 1, 1]} : vector<20x20x32xf32> to vector<16x16x32xf32>
    %58 = vector.shape_cast %57 : vector<16x16x32xf32> to vector<256x32xf32>
    %59 = vector.extract_strided_slice %54 {offsets = [0, 2, 0], sizes = [16, 16, 32], strides = [1, 1, 1]} : vector<20x20x32xf32> to vector<16x16x32xf32>
    %60 = vector.shape_cast %59 : vector<16x16x32xf32> to vector<256x32xf32>
    %61 = vector.extract_strided_slice %54 {offsets = [0, 3, 0], sizes = [16, 16, 32], strides = [1, 1, 1]} : vector<20x20x32xf32> to vector<16x16x32xf32>
    %62 = vector.shape_cast %61 : vector<16x16x32xf32> to vector<256x32xf32>
    %63 = vector.extract_strided_slice %54 {offsets = [0, 4, 0], sizes = [16, 16, 32], strides = [1, 1, 1]} : vector<20x20x32xf32> to vector<16x16x32xf32>
    %64 = vector.shape_cast %63 : vector<16x16x32xf32> to vector<256x32xf32>
    %65 = vector.extract_strided_slice %54 {offsets = [1, 0, 0], sizes = [16, 16, 32], strides = [1, 1, 1]} : vector<20x20x32xf32> to vector<16x16x32xf32>
    %66 = vector.shape_cast %65 : vector<16x16x32xf32> to vector<256x32xf32>
    %67 = vector.extract_strided_slice %54 {offsets = [1, 1, 0], sizes = [16, 16, 32], strides = [1, 1, 1]} : vector<20x20x32xf32> to vector<16x16x32xf32>
    %68 = vector.shape_cast %67 : vector<16x16x32xf32> to vector<256x32xf32>
    %69 = vector.extract_strided_slice %54 {offsets = [1, 2, 0], sizes = [16, 16, 32], strides = [1, 1, 1]} : vector<20x20x32xf32> to vector<16x16x32xf32>
    %70 = vector.shape_cast %69 : vector<16x16x32xf32> to vector<256x32xf32>
    %71 = vector.extract_strided_slice %54 {offsets = [1, 3, 0], sizes = [16, 16, 32], strides = [1, 1, 1]} : vector<20x20x32xf32> to vector<16x16x32xf32>
    %72 = vector.shape_cast %71 : vector<16x16x32xf32> to vector<256x32xf32>
    %73 = vector.extract_strided_slice %54 {offsets = [1, 4, 0], sizes = [16, 16, 32], strides = [1, 1, 1]} : vector<20x20x32xf32> to vector<16x16x32xf32>
    %74 = vector.shape_cast %73 : vector<16x16x32xf32> to vector<256x32xf32>
    %75 = vector.extract_strided_slice %54 {offsets = [2, 0, 0], sizes = [16, 16, 32], strides = [1, 1, 1]} : vector<20x20x32xf32> to vector<16x16x32xf32>
    %76 = vector.shape_cast %75 : vector<16x16x32xf32> to vector<256x32xf32>
    %77 = vector.extract_strided_slice %54 {offsets = [2, 1, 0], sizes = [16, 16, 32], strides = [1, 1, 1]} : vector<20x20x32xf32> to vector<16x16x32xf32>
    %78 = vector.shape_cast %77 : vector<16x16x32xf32> to vector<256x32xf32>
    %79 = vector.extract_strided_slice %54 {offsets = [2, 2, 0], sizes = [16, 16, 32], strides = [1, 1, 1]} : vector<20x20x32xf32> to vector<16x16x32xf32>
    %80 = vector.shape_cast %79 : vector<16x16x32xf32> to vector<256x32xf32>
    %81 = vector.extract_strided_slice %54 {offsets = [2, 3, 0], sizes = [16, 16, 32], strides = [1, 1, 1]} : vector<20x20x32xf32> to vector<16x16x32xf32>
    %82 = vector.shape_cast %81 : vector<16x16x32xf32> to vector<256x32xf32>
    %83 = vector.extract_strided_slice %54 {offsets = [2, 4, 0], sizes = [16, 16, 32], strides = [1, 1, 1]} : vector<20x20x32xf32> to vector<16x16x32xf32>
    %84 = vector.shape_cast %83 : vector<16x16x32xf32> to vector<256x32xf32>
    %85 = vector.extract_strided_slice %54 {offsets = [3, 0, 0], sizes = [16, 16, 32], strides = [1, 1, 1]} : vector<20x20x32xf32> to vector<16x16x32xf32>
    %86 = vector.shape_cast %85 : vector<16x16x32xf32> to vector<256x32xf32>
    %87 = vector.extract_strided_slice %54 {offsets = [3, 1, 0], sizes = [16, 16, 32], strides = [1, 1, 1]} : vector<20x20x32xf32> to vector<16x16x32xf32>
    %88 = vector.shape_cast %87 : vector<16x16x32xf32> to vector<256x32xf32>
    %89 = vector.extract_strided_slice %54 {offsets = [3, 2, 0], sizes = [16, 16, 32], strides = [1, 1, 1]} : vector<20x20x32xf32> to vector<16x16x32xf32>
    %90 = vector.shape_cast %89 : vector<16x16x32xf32> to vector<256x32xf32>
    %91 = vector.extract_strided_slice %54 {offsets = [3, 3, 0], sizes = [16, 16, 32], strides = [1, 1, 1]} : vector<20x20x32xf32> to vector<16x16x32xf32>
    %92 = vector.shape_cast %91 : vector<16x16x32xf32> to vector<256x32xf32>
    %93 = vector.extract_strided_slice %54 {offsets = [3, 4, 0], sizes = [16, 16, 32], strides = [1, 1, 1]} : vector<20x20x32xf32> to vector<16x16x32xf32>
    %94 = vector.shape_cast %93 : vector<16x16x32xf32> to vector<256x32xf32>
    %95 = vector.extract_strided_slice %54 {offsets = [4, 0, 0], sizes = [16, 16, 32], strides = [1, 1, 1]} : vector<20x20x32xf32> to vector<16x16x32xf32>
    %96 = vector.shape_cast %95 : vector<16x16x32xf32> to vector<256x32xf32>
    %97 = vector.extract_strided_slice %54 {offsets = [4, 1, 0], sizes = [16, 16, 32], strides = [1, 1, 1]} : vector<20x20x32xf32> to vector<16x16x32xf32>
    %98 = vector.shape_cast %97 : vector<16x16x32xf32> to vector<256x32xf32>
    %99 = vector.extract_strided_slice %54 {offsets = [4, 2, 0], sizes = [16, 16, 32], strides = [1, 1, 1]} : vector<20x20x32xf32> to vector<16x16x32xf32>
    %100 = vector.shape_cast %99 : vector<16x16x32xf32> to vector<256x32xf32>
    %101 = vector.extract_strided_slice %54 {offsets = [4, 3, 0], sizes = [16, 16, 32], strides = [1, 1, 1]} : vector<20x20x32xf32> to vector<16x16x32xf32>
    %102 = vector.shape_cast %101 : vector<16x16x32xf32> to vector<256x32xf32>
    %103 = vector.extract_strided_slice %54 {offsets = [4, 4, 0], sizes = [16, 16, 32], strides = [1, 1, 1]} : vector<20x20x32xf32> to vector<16x16x32xf32>
    %104 = vector.shape_cast %103 : vector<16x16x32xf32> to vector<256x32xf32>
    %105 = tpu.concatenate %56, %58, %60, %62, %64, %66, %68, %70, %72, %74, %76, %78, %80, %82, %84, %86 in 1 : vector<256x32xf32>, vector<256x32xf32>, vector<256x32xf32>, vector<256x32xf32>, vector<256x32xf32>, vector<256x32xf32>, vector<256x32xf32>, vector<256x32xf32>, vector<256x32xf32>, vector<256x32xf32>, vector<256x32xf32>, vector<256x32xf32>, vector<256x32xf32>, vector<256x32xf32>, vector<256x32xf32>, vector<256x32xf32> -> vector<256x512xf32>
    %106 = tpu.concatenate %88, %90, %92, %94, %96, %98, %100, %102, %104 in 1 : vector<256x32xf32>, vector<256x32xf32>, vector<256x32xf32>, vector<256x32xf32>, vector<256x32xf32>, vector<256x32xf32>, vector<256x32xf32>, vector<256x32xf32>, vector<256x32xf32> -> vector<256x288xf32>
    %107 = tpu.concatenate %105, %106 in 1 : vector<256x512xf32>, vector<256x288xf32> -> vector<256x800xf32>
    %c0_17 = arith.constant 0 : index
    %c0_18 = arith.constant 0 : index
    %108 = vector.load %arg6[%c0_17, %c0_18] : memref<1x800xf32, #tpu.memory_space<vmem>>, vector<1x800xf32>
    %cst_19 = arith.constant dense<0.000000e+00> : vector<1x256xf32>
    %109 = tpu.matmul %108, %107, %cst_19 {dimension_numbers = #tpu.dot_dimension_numbers<[1], [1], [0], [0], [0, 0, 1, 0], [], []>} : vector<1x800xf32>, vector<256x800xf32>, vector<1x256xf32> -> vector<1x256xf32>
    %c0_20 = arith.constant 0 : index
    %c0_21 = arith.constant 0 : index
    %110 = vector.load %arg7[%c0_20, %c0_21] : memref<1x1xf32, #tpu.memory_space<vmem>>, vector<1x1xf32>
    %111 = vector.broadcast %110 : vector<1x1xf32> to vector<1x256xf32>
    %112 = arith.addf %109, %111 : vector<1x256xf32>
    %c0_22 = arith.constant 0 : index
    %c0_23 = arith.constant 0 : index
    %c0_24 = arith.constant 0 : index
    %113 = vector.load %arg8[%c0_22, %c0_23, %c0_24] : memref<1x1x256xf32, #tpu.memory_space<vmem>>, vector<1x1x256xf32>
    %114 = vector.shape_cast %113 : vector<1x1x256xf32> to vector<1x256xf32>
    %115 = vector.shape_cast %112 : vector<1x256xf32> to vector<1x1x256xf32>
    tpu.vector_store %arg8[%c0_22, %c0_23, %c0_24], %115 {strides = array<i32>} : memref<1x1x256xf32, #tpu.memory_space<vmem>>, vector<1x1x256xf32>,
    return
  }
  func.func @transform_0(%arg0: i32) -> (i32, i32, i32) {
    %c0_i32 = arith.constant 0 : i32
    %c0_i32_0 = arith.constant 0 : i32
    %c0_i32_1 = arith.constant 0 : i32
    return %arg0, %c0_i32, %c0_i32_0 : i32, i32, i32
  }
  func.func @transform_1(%arg0: i32) -> (i32, i32) {
    %c0_i32 = arith.constant 0 : i32
    %c0_i32_0 = arith.constant 0 : i32
    %c0_i32_1 = arith.constant 0 : i32
    return %c0_i32, %c0_i32_0 : i32, i32
  }
  func.func @transform_2(%arg0: i32) -> (i32, i32) {
    %c0_i32 = arith.constant 0 : i32
    %c0_i32_0 = arith.constant 0 : i32
    %c0_i32_1 = arith.constant 0 : i32
    return %c0_i32, %c0_i32_0 : i32, i32
  }
  func.func @transform_3(%arg0: i32) -> (i32, i32) {
    %c0_i32 = arith.constant 0 : i32
    %c0_i32_0 = arith.constant 0 : i32
    %c0_i32_1 = arith.constant 0 : i32
    return %c0_i32, %c0_i32_0 : i32, i32
  }
  func.func @transform_4(%arg0: i32) -> (i32, i32) {
    %c0_i32 = arith.constant 0 : i32
    %c0_i32_0 = arith.constant 0 : i32
    %c0_i32_1 = arith.constant 0 : i32
    return %c0_i32, %c0_i32_0 : i32, i32
  }
  func.func @transform_5(%arg0: i32) -> (i32, i32) {
    %c0_i32 = arith.constant 0 : i32
    %c0_i32_0 = arith.constant 0 : i32
    %c0_i32_1 = arith.constant 0 : i32
    return %c0_i32, %c0_i32_0 : i32, i32
  }
  func.func @transform_6(%arg0: i32) -> (i32, i32) {
    %c0_i32 = arith.constant 0 : i32
    %c0_i32_0 = arith.constant 0 : i32
    %c0_i32_1 = arith.constant 0 : i32
    return %c0_i32, %c0_i32_0 : i32, i32
  }
  func.func @transform_7(%arg0: i32) -> (i32, i32, i32) {
    %c0_i32 = arith.constant 0 : i32
    %c0_i32_0 = arith.constant 0 : i32
    %c0_i32_1 = arith.constant 0 : i32
    return %arg0, %c0_i32, %c0_i32_0 : i32, i32, i32
  }
}

</mosaic_0001>

<llo_original>
// kernel: tpu_custom_call.1
$region0: #{tpu_custom_call.1}
  #allocation0 [shape = 'u32[]', space=smem, size = 0x4, offset = 0x4, fixed_abs, tag = 'smem constant byte address 0x4 - core index']
  #allocation1 [shape = 'u32[144,128]{1,0:T(1,128)}', space=vmem, size = 0x12000, scoped, tag = 'internal scratch']
  #allocation2 [shape = 'f32[1,1]{1,0:T(1,128)S(1)}', space=vmem, size = 0x200, scoped, tag = 'scoped memory for tpu_custom_call.1']
  %s0 = inlined_call_operand.vmem [shape: f32[2,16,16], index: 0, kind: input, shape index: {}]
  %s1 = inlined_call_operand.vmem [shape: f32[81,64], index: 1, kind: input, shape index: {}]
  %s2 = inlined_call_operand.vmem [shape: f32[1,64], index: 2, kind: input, shape index: {}]
  %s3 = inlined_call_operand.vmem [shape: f32[64,32], index: 3, kind: input, shape index: {}]
  %s4 = inlined_call_operand.vmem [shape: f32[1,32], index: 4, kind: input, shape index: {}]
  %s5 = inlined_call_operand.vmem [shape: f32[1,800], index: 5, kind: input, shape index: {}]
  %s6 = inlined_call_operand.<no memory space> [shape: f32[1,1], index: 6, kind: input, shape index: {}]
  %s7 = inlined_call_operand.hbm [shape: f32[2,1,256], index: 7, kind: output, shape index: {}]
  %s8 = sld [smem:[#allocation0]]
  $region61: #{tpu_custom_call.1} parent=0
    _
  %s10 = ssub.s32 1, %s8
  %s11 = scalar_select 0, %s10, %s8
  %v12 = vstv %s6
  %13 = vst [vmem:[#allocation2] sm:$0x1] %v12
  $region1: #{tpu_custom_call.1} parent=0
    #allocation3 [shape = 'u8[2048]{0}', space=vmem, size = 0x800, scoped, tag = 'output window, operand 0']
    #allocation4 [shape = 's32[2]{0}', space=sflag, size = 0x8, scoped, tag = 'scoped memory for tpu_custom_call.1']
    %14 = vsyncpa [#allocation4], 0
    %s15 = scalar_lea.sflag [#allocation4], 1
    %16 = vsyncpa %s15, 0
    loop: start=0, step=1, limit=4
    $region2: #{tpu_custom_call.1} parent=1 // loop_pre_header
      _
    $region3: #{tpu_custom_call.1} parent=1 // loop_header
      %s18 = sphi 0, %s22
      %p19 = scmp.ge.s32.totalorder %s18, 4
      %s28 = sphi 0, %s30
      %s31 = sphi 0, %s28
      %s32 = sphi 0, %s31
      %s48 = sphi 0, %s32
      %s52 = sphi 0, %s52
      %s54 = sphi 0, %s52
      %s55 = sphi 0, %s54
      %s69 = sphi 0, %s55
      %s73 = sphi 0, %s73
      %s75 = sphi 0, %s73
      %s76 = sphi 0, %s75
      %s90 = sphi 0, %s76
      %s94 = sphi 0, %s94
      %s96 = sphi 0, %s94
      %s97 = sphi 0, %s96
      %s111 = sphi 0, %s97
      %s115 = sphi 0, %s115
      %s117 = sphi 0, %s115
      %s118 = sphi 0, %s117
      %s132 = sphi 0, %s118
      %s136 = sphi 0, %s136
      %s138 = sphi 0, %s136
      %s139 = sphi 0, %s138
      %s153 = sphi 0, %s139
      %s157 = sphi 0, %s157
      %s159 = sphi 0, %s157
      %s160 = sphi 0, %s159
      %s174 = sphi 0, %s160
      %s180 = sphi 0, %s182
      %s183 = sphi 0, %s180
      %s184 = sphi 0, %s183
      %s200 = sphi 0, %s184
    $region4: #{tpu_custom_call.1} parent=1 // loop_header_branch
      %21 = sbr.rel (%p19) target = $region8
    $region5: #{tpu_custom_call.1} parent=1 // loop_body
      %s23 = ssub.s32 %s18, 1
      %s24 = ssub.s32 %s18, 2
      %s25 = sadd.s32 %s18, 1
      %s26 = ssub.s32 %s18, %s25
      %p27 = scmp.eq.s32.totalorder %s26, 0
      %s29 = sadd.s32 %s28, 1
      %s30 = scalar_select %p27, %s28, %s29
      %p33 = pneg %p27
      %p34 = scmp.eq.s32.totalorder %s18, 1
      %p35 = por %p33, %p34
      %p36 = scmp.ne.s32.totalorder %s28, %s31
      %p37 = scmp.eq.s32.totalorder %s18, 0
      %p38 = por %p36, %p37
      %p39 = scmp.ne.s32.totalorder %s28, %s31
      %p40 = scmp.eq.s32.totalorder %s23, 1
      %p41 = por %p39, %p40
      %p42 = scmp.ne.s32.totalorder %s31, %s32
      %p43 = scmp.eq.s32.totalorder %s23, 0
      %p44 = por %p42, %p43
      %p45 = scmp.ne.s32.totalorder %s31, %s32
      %p46 = scmp.eq.s32.totalorder %s24, 1
      %p47 = por %p45, %p46
      %p49 = scmp.ne.s32.totalorder %s32, %s48
      %p50 = scmp.eq.s32.totalorder %s24, 0
      %p51 = por %p49, %p50
      %s53 = sadd.s32 %s52, 1
      %p56 = scmp.eq.s32.totalorder %s18, 1
      %p57 = scmp.ne.s32.totalorder %s52, %s54
      %p58 = scmp.eq.s32.totalorder %s18, 0
      %p59 = por %p57, %p58
      %p60 = scmp.ne.s32.totalorder %s52, %s54
      %p61 = scmp.eq.s32.totalorder %s23, 1
      %p62 = por %p60, %p61
      %p63 = scmp.ne.s32.totalorder %s54, %s55
      %p64 = scmp.eq.s32.totalorder %s23, 0
      %p65 = por %p63, %p64
      %p66 = scmp.ne.s32.totalorder %s54, %s55
      %p67 = scmp.eq.s32.totalorder %s24, 1
      %p68 = por %p66, %p67
      %p70 = scmp.ne.s32.totalorder %s55, %s69
      %p71 = scmp.eq.s32.totalorder %s24, 0
      %p72 = por %p70, %p71
      %s74 = sadd.s32 %s73, 1
      %p77 = scmp.eq.s32.totalorder %s18, 1
      %p78 = scmp.ne.s32.totalorder %s73, %s75
      %p79 = scmp.eq.s32.totalorder %s18, 0
      %p80 = por %p78, %p79
      %p81 = scmp.ne.s32.totalorder %s73, %s75
      %p82 = scmp.eq.s32.totalorder %s23, 1
      %p83 = por %p81, %p82
      %p84 = scmp.ne.s32.totalorder %s75, %s76
      %p85 = scmp.eq.s32.totalorder %s23, 0
      %p86 = por %p84, %p85
      %p87 = scmp.ne.s32.totalorder %s75, %s76
      %p88 = scmp.eq.s32.totalorder %s24, 1
      %p89 = por %p87, %p88
      %p91 = scmp.ne.s32.totalorder %s76, %s90
      %p92 = scmp.eq.s32.totalorder %s24, 0
      %p93 = por %p91, %p92
      %s95 = sadd.s32 %s94, 1
      %p98 = scmp.eq.s32.totalorder %s18, 1
      %p99 = scmp.ne.s32.totalorder %s94, %s96
      %p100 = scmp.eq.s32.totalorder %s18, 0
      %p101 = por %p99, %p100
      %p102 = scmp.ne.s32.totalorder %s94, %s96
      %p103 = scmp.eq.s32.totalorder %s23, 1
      %p104 = por %p102, %p103
      %p105 = scmp.ne.s32.totalorder %s96, %s97
      %p106 = scmp.eq.s32.totalorder %s23, 0
      %p107 = por %p105, %p106
      %p108 = scmp.ne.s32.totalorder %s96, %s97
      %p109 = scmp.eq.s32.totalorder %s24, 1
      %p110 = por %p108, %p109
      %p112 = scmp.ne.s32.totalorder %s97, %s111
      %p113 = scmp.eq.s32.totalorder %s24, 0
      %p114 = por %p112, %p113
      %s116 = sadd.s32 %s115, 1
      %p119 = scmp.eq.s32.totalorder %s18, 1
      %p120 = scmp.ne.s32.totalorder %s115, %s117
      %p121 = scmp.eq.s32.totalorder %s18, 0
      %p122 = por %p120, %p121
      %p123 = scmp.ne.s32.totalorder %s115, %s117
      %p124 = scmp.eq.s32.totalorder %s23, 1
      %p125 = por %p123, %p124
      %p126 = scmp.ne.s32.totalorder %s117, %s118
      %p127 = scmp.eq.s32.totalorder %s23, 0
      %p128 = por %p126, %p127
      %p129 = scmp.ne.s32.totalorder %s117, %s118
      %p130 = scmp.eq.s32.totalorder %s24, 1
      %p131 = por %p129, %p130
      %p133 = scmp.ne.s32.totalorder %s118, %s132
      %p134 = scmp.eq.s32.totalorder %s24, 0
      %p135 = por %p133, %p134
      %s137 = sadd.s32 %s136, 1
      %p140 = scmp.eq.s32.totalorder %s18, 1
      %p141 = scmp.ne.s32.totalorder %s136, %s138
      %p142 = scmp.eq.s32.totalorder %s18, 0
      %p143 = por %p141, %p142
      %p144 = scmp.ne.s32.totalorder %s136, %s138
      %p145 = scmp.eq.s32.totalorder %s23, 1
      %p146 = por %p144, %p145
      %p147 = scmp.ne.s32.totalorder %s138, %s139
      %p148 = scmp.eq.s32.totalorder %s23, 0
      %p149 = por %p147, %p148
      %p150 = scmp.ne.s32.totalorder %s138, %s139
      %p151 = scmp.eq.s32.totalorder %s24, 1
      %p152 = por %p150, %p151
      %p154 = scmp.ne.s32.totalorder %s139, %s153
      %p155 = scmp.eq.s32.totalorder %s24, 0
      %p156 = por %p154, %p155
      %s158 = sadd.s32 %s157, 1
      %p161 = scmp.eq.s32.totalorder %s18, 1
      %p162 = scmp.ne.s32.totalorder %s157, %s159
      %p163 = scmp.eq.s32.totalorder %s18, 0
      %p164 = por %p162, %p163
      %p165 = scmp.ne.s32.totalorder %s157, %s159
      %p166 = scmp.eq.s32.totalorder %s23, 1
      %p167 = por %p165, %p166
      %p168 = scmp.ne.s32.totalorder %s159, %s160
      %p169 = scmp.eq.s32.totalorder %s23, 0
      %p170 = por %p168, %p169
      %p171 = scmp.ne.s32.totalorder %s159, %s160
      %p172 = scmp.eq.s32.totalorder %s24, 1
      %p173 = por %p171, %p172
      %p175 = scmp.ne.s32.totalorder %s160, %s174
      %p176 = scmp.eq.s32.totalorder %s24, 0
      %p177 = por %p175, %p176
      %s178 = ssub.s32 %s18, %s25
      %p179 = scmp.eq.s32.totalorder %s178, 0
      %s181 = sadd.s32 %s180, 1
      %s182 = scalar_select %p179, %s180, %s181
      %p185 = pneg %p179
      %p186 = scmp.eq.s32.totalorder %s18, 1
      %p187 = por %p185, %p186
      %p188 = scmp.ne.s32.totalorder %s180, %s183
      %p189 = scmp.eq.s32.totalorder %s18, 0
      %p190 = por %p188, %p189
      %p191 = scmp.ne.s32.totalorder %s180, %s183
      %p192 = scmp.eq.s32.totalorder %s23, 1
      %p193 = por %p191, %p192
      %p194 = scmp.ne.s32.totalorder %s183, %s184
      %p195 = scmp.eq.s32.totalorder %s23, 0
      %p196 = por %p194, %p195
      %p197 = scmp.ne.s32.totalorder %s183, %s184
      %p198 = scmp.eq.s32.totalorder %s24, 1
      %p199 = por %p197, %p198
      %p201 = scmp.ne.s32.totalorder %s184, %s200
      %p202 = scmp.eq.s32.totalorder %s24, 0
      %p203 = por %p201, %p202
      %p204 = scmp.le.s32.totalorder 1, %s18
      %p205 = scmp.lt.s32.totalorder %s18, 3
      %p206 = pnand %p204, %p205
      %p207 = pneg %p206
      // Predicated region
      $region9: #{tpu_custom_call.1} parent=5 // pred_check
        _
      $region10: #{tpu_custom_call.1} parent=5 // pred_check_branch
        %209 = sbr.rel (%p206) target = $region12
      $region11: #{tpu_custom_call.1} parent=5 // pred_region
        %s210 = ssub.s32 %s18, 1
        // Predicated region
        $region13: #{tpu_custom_call.1} parent=11 // pred_check
          %p211 = pneg %p65
        $region14: #{tpu_custom_call.1} parent=11 // pred_check_branch
          %213 = sbr.rel (%p211) target = $region16
        $region15: #{tpu_custom_call.1} parent=11 // pred_region
          _
        $region16: #{tpu_custom_call.1} parent=11 // pred_fallthru
          _
        // Predicated region
        $region17: #{tpu_custom_call.1} parent=11 // pred_check
          %p214 = pneg %p86
        $region18: #{tpu_custom_call.1} parent=11 // pred_check_branch
          %216 = sbr.rel (%p214) target = $region20
        $region19: #{tpu_custom_call.1} parent=11 // pred_region
          _
        $region20: #{tpu_custom_call.1} parent=11 // pred_fallthru
          _
        // Predicated region
        $region21: #{tpu_custom_call.1} parent=11 // pred_check
          %p217 = pneg %p107
        $region22: #{tpu_custom_call.1} parent=11 // pred_check_branch
          %219 = sbr.rel (%p217) target = $region24
        $region23: #{tpu_custom_call.1} parent=11 // pred_region
          _
        $region24: #{tpu_custom_call.1} parent=11 // pred_fallthru
          _
        // Predicated region
        $region25: #{tpu_custom_call.1} parent=11 // pred_check
          %p220 = pneg %p128
        $region26: #{tpu_custom_call.1} parent=11 // pred_check_branch
          %222 = sbr.rel (%p220) target = $region28
        $region27: #{tpu_custom_call.1} parent=11 // pred_region
          _
        $region28: #{tpu_custom_call.1} parent=11 // pred_fallthru
          _
        // Predicated region
        $region29: #{tpu_custom_call.1} parent=11 // pred_check
          %p223 = pneg %p149
        $region30: #{tpu_custom_call.1} parent=11 // pred_check_branch
          %225 = sbr.rel (%p223) target = $region32
        $region31: #{tpu_custom_call.1} parent=11 // pred_region
          _
        $region32: #{tpu_custom_call.1} parent=11 // pred_fallthru
          _
        // Predicated region
        $region33: #{tpu_custom_call.1} parent=11 // pred_check
          %p226 = pneg %p170
        $region34: #{tpu_custom_call.1} parent=11 // pred_check_branch
          %228 = sbr.rel (%p226) target = $region36
        $region35: #{tpu_custom_call.1} parent=11 // pred_region
          _
        $region36: #{tpu_custom_call.1} parent=11 // pred_fallthru
          _
      $region12: #{tpu_custom_call.1} parent=5 // pred_fallthru
        _
      %p229 = scmp.lt.s32.totalorder %s18, 2
      // Predicated region
      $region37: #{tpu_custom_call.1} parent=5 // pred_check
        %p230 = pneg %p229
      $region38: #{tpu_custom_call.1} parent=5 // pred_check_branch
        %232 = sbr.rel (%p230) target = $region40
      $region39: #{tpu_custom_call.1} parent=5 // pred_region
        // Predicated region
        $region41: #{tpu_custom_call.1} parent=39 // pred_check
          %p233 = pneg %p38
        $region42: #{tpu_custom_call.1} parent=39 // pred_check_branch
          %235 = sbr.rel (%p233) target = $region44
        $region43: #{tpu_custom_call.1} parent=39 // pred_region
          %p236 = scmp.lt.s32.totalorder %s18, 1
          %s237 = scalar_select %p236, %s18, 1
          %s238 = smul.addr %s237, 2
          %s239 = smul.addr %s238, 8
          %s240 = scalar_lea.vmem %s0, %s239
        $region44: #{tpu_custom_call.1} parent=39 // pred_fallthru
          _
      $region40: #{tpu_custom_call.1} parent=5 // pred_fallthru
        _
      %p241 = scmp.le.s32.totalorder 1, %s18
      %p242 = scmp.lt.s32.totalorder %s18, 3
      %p243 = pnand %p241, %p242
      %p244 = pneg %p243
      // Predicated region
      $region45: #{tpu_custom_call.1} parent=5 // pred_check
        _
      $region46: #{tpu_custom_call.1} parent=5 // pred_check_branch
        %246 = sbr.rel (%p243) target = $region48
      $region47: #{tpu_custom_call.1} parent=5 // pred_region
        %s247 = ssub.s32 %s18, 1
        %p248 = scmp.lt.s32.totalorder %s23, 1
        %s249 = scalar_select %p248, %s23, 1
        %s250 = smul.addr %s249, 2
        %s251 = smul.addr %s250, 8
        %s252 = scalar_lea.vmem %s0, %s251
        %p253 = pneg %p44
        %p254 = pneg %p41
        %p255 = pneg %p65
        %p256 = pneg %p62
        %p257 = pneg %p86
        %p258 = pneg %p83
        %p259 = pneg %p107
        %p260 = pneg %p104
        %p261 = pneg %p128
        %p262 = pneg %p125
        %p263 = pneg %p149
        %p264 = pneg %p146
        %p265 = pneg %p170
        %p266 = pneg %p167
        %p267 = pneg %p196
        %p268 = pneg %p193
        %s269 = sand.u32 %s183, 1
        %s270 = scalar_lea.sflag [#allocation4], %s269
        %s271 = sand.u32 %s183, 1
        %s272 = smul.addr %s271, 2
        %s273 = scalar_lea.vmem [#allocation3], %s272
        %p274 = scmp.lt.s32.totalorder %s23, 1
        %s275 = scalar_select %p274, %s23, 1
        %s276 = smul.addr %s275, 2
        %s277 = smul.addr %s276, 8
        %s278 = scalar_lea.vmem %s0, %s277
        %v279 = vld [vmem:[%s278] sm:$0xff]
        %v280 = vld [vmem:[%s278 + $0x8] sm:$0xff]
        %283 = vrot.lane.b32.xlu0 %v279, 4
        %v284 = vpop.permute.xlu0 %283
        %285 = vrot.lane.b32.xlu0 %v280, 4
        %v286 = vpop.permute.xlu0 %285
        %vm289 = vcmask 31744
        %v290 = vsel %vm289, 0.0, %v284
        %v291 = vsel %vm289, 0.0, %v286
        %vm292 = vcmask 162816
        %v293 = vsel %vm292, %v290, 0.0
        %v294 = vsel %vm292, %v291, 0.0
        %vm297 = vcmask 1043456
        %v298 = vrot.slane %v293, 4
        %v299 = vrot.slane %v294, 4
        %v300 = vsel %vm297, %v298, %v299
        %v304 = vsel %vm297, 0.0, %v298
        %v305 = vsel %vm297, %v299, 0.0
        %v306 = vlaneseq
        %v307 = vshrl.u32 %v306, 7
        %v308 = vsub.s32 0, %v307
        %v309 = vrot.slane %v304, %v308
        %311 = vbcast.lane.b32.xlu0 %v309, 256
        %v312 = vpop.permute.xlu0 %311
        %s314 = sor.u32 256, 8
        %315 = vbcast.lane.b32.xlu0 %v309, %s314
        %v316 = vpop.permute.xlu0 %315
        %v317 = vlaneseq
        %v318 = vshrl.u32 %v317, 7
        %v319 = vsub.s32 1, %v318
        %v320 = vrot.slane %v304, %v319
        %322 = vbcast.lane.b32.xlu0 %v320, 256
        %v323 = vpop.permute.xlu0 %322
        %s325 = sor.u32 256, 8
        %326 = vbcast.lane.b32.xlu0 %v320, %s325
        %v327 = vpop.permute.xlu0 %326
        %v328 = vlaneseq
        %v329 = vshrl.u32 %v328, 7
        %v330 = vsub.s32 2, %v329
        %v331 = vrot.slane %v304, %v330
        %333 = vbcast.lane.b32.xlu0 %v331, 256
        %v334 = vpop.permute.xlu0 %333
        %s336 = sor.u32 256, 8
        %337 = vbcast.lane.b32.xlu0 %v331, %s336
        %v338 = vpop.permute.xlu0 %337
        %v339 = vlaneseq
        %v340 = vshrl.u32 %v339, 7
        %v341 = vsub.s32 3, %v340
        %v342 = vrot.slane %v304, %v341
        %344 = vbcast.lane.b32.xlu0 %v342, 256
        %v345 = vpop.permute.xlu0 %344
        %s347 = sor.u32 256, 8
        %348 = vbcast.lane.b32.xlu0 %v342, %s347
        %v349 = vpop.permute.xlu0 %348
        %v350 = vlaneseq
        %v351 = vshrl.u32 %v350, 7
        %v352 = vsub.s32 4, %v351
        %v353 = vrot.slane %v304, %v352
        %355 = vbcast.lane.b32.xlu0 %v353, 256
        %v356 = vpop.permute.xlu0 %355
        %s358 = sor.u32 256, 8
        %359 = vbcast.lane.b32.xlu0 %v353, %s358
        %v360 = vpop.permute.xlu0 %359
        %v361 = vlaneseq
        %v362 = vshrl.u32 %v361, 7
        %v363 = vsub.s32 5, %v362
        %v364 = vrot.slane %v304, %v363
        %366 = vbcast.lane.b32.xlu0 %v364, 256
        %v367 = vpop.permute.xlu0 %366
        %s369 = sor.u32 256, 8
        %370 = vbcast.lane.b32.xlu0 %v364, %s369
        %v371 = vpop.permute.xlu0 %370
        %v372 = vlaneseq
        %v373 = vshrl.u32 %v372, 7
        %v374 = vsub.s32 6, %v373
        %v375 = vrot.slane %v304, %v374
        %377 = vbcast.lane.b32.xlu0 %v375, 256
        %v378 = vpop.permute.xlu0 %377
        %s380 = sor.u32 256, 8
        %381 = vbcast.lane.b32.xlu0 %v375, %s380
        %v382 = vpop.permute.xlu0 %381
        %v383 = vlaneseq
        %v384 = vshrl.u32 %v383, 7
        %v385 = vsub.s32 7, %v384
        %v386 = vrot.slane %v304, %v385
        %388 = vbcast.lane.b32.xlu0 %v386, 256
        %v389 = vpop.permute.xlu0 %388
        %s391 = sor.u32 256, 8
        %392 = vbcast.lane.b32.xlu0 %v386, %s391
        %v393 = vpop.permute.xlu0 %392
        %v394 = vlaneseq
        %v395 = vshrl.u32 %v394, 7
        %v396 = vsub.s32 0, %v395
        %v397 = vrot.slane %v300, %v396
        %399 = vbcast.lane.b32.xlu0 %v397, 256
        %v400 = vpop.permute.xlu0 %399
        %s402 = sor.u32 256, 8
        %403 = vbcast.lane.b32.xlu0 %v397, %s402
        %v404 = vpop.permute.xlu0 %403
        %v405 = vlaneseq
        %v406 = vshrl.u32 %v405, 7
        %v407 = vsub.s32 1, %v406
        %v408 = vrot.slane %v300, %v407
        %410 = vbcast.lane.b32.xlu0 %v408, 256
        %v411 = vpop.permute.xlu0 %410
        %s413 = sor.u32 256, 8
        %414 = vbcast.lane.b32.xlu0 %v408, %s413
        %v415 = vpop.permute.xlu0 %414
        %v416 = vlaneseq
        %v417 = vshrl.u32 %v416, 7
        %v418 = vsub.s32 2, %v417
        %v419 = vrot.slane %v300, %v418
        %421 = vbcast.lane.b32.xlu0 %v419, 256
        %v422 = vpop.permute.xlu0 %421
        %s424 = sor.u32 256, 8
        %425 = vbcast.lane.b32.xlu0 %v419, %s424
        %v426 = vpop.permute.xlu0 %425
        %v427 = vlaneseq
        %v428 = vshrl.u32 %v427, 7
        %v429 = vsub.s32 3, %v428
        %v430 = vrot.slane %v300, %v429
        %432 = vbcast.lane.b32.xlu0 %v430, 256
        %v433 = vpop.permute.xlu0 %432
        %s435 = sor.u32 256, 8
        %436 = vbcast.lane.b32.xlu0 %v430, %s435
        %v437 = vpop.permute.xlu0 %436
        %v438 = vlaneseq
        %v439 = vshrl.u32 %v438, 7
        %v440 = vsub.s32 4, %v439
        %v441 = vrot.slane %v300, %v440
        %443 = vbcast.lane.b32.xlu0 %v441, 256
        %v444 = vpop.permute.xlu0 %443
        %s446 = sor.u32 256, 8
        %447 = vbcast.lane.b32.xlu0 %v441, %s446
        %v448 = vpop.permute.xlu0 %447
        %v449 = vlaneseq
        %v450 = vshrl.u32 %v449, 7
        %v451 = vsub.s32 5, %v450
        %v452 = vrot.slane %v300, %v451
        %454 = vbcast.lane.b32.xlu0 %v452, 256
        %v455 = vpop.permute.xlu0 %454
        %s457 = sor.u32 256, 8
        %458 = vbcast.lane.b32.xlu0 %v452, %s457
        %v459 = vpop.permute.xlu0 %458
        %v460 = vlaneseq
        %v461 = vshrl.u32 %v460, 7
        %v462 = vsub.s32 6, %v461
        %v463 = vrot.slane %v300, %v462
        %465 = vbcast.lane.b32.xlu0 %v463, 256
        %v466 = vpop.permute.xlu0 %465
        %s468 = sor.u32 256, 8
        %469 = vbcast.lane.b32.xlu0 %v463, %s468
        %v470 = vpop.permute.xlu0 %469
        %v471 = vlaneseq
        %v472 = vshrl.u32 %v471, 7
        %v473 = vsub.s32 7, %v472
        %v474 = vrot.slane %v300, %v473
        %476 = vbcast.lane.b32.xlu0 %v474, 256
        %v477 = vpop.permute.xlu0 %476
        %s479 = sor.u32 256, 8
        %480 = vbcast.lane.b32.xlu0 %v474, %s479
        %v481 = vpop.permute.xlu0 %480
        %v482 = vlaneseq
        %v483 = vshrl.u32 %v482, 7
        %v484 = vsub.s32 0, %v483
        %v485 = vrot.slane %v305, %v484
        %487 = vbcast.lane.b32.xlu0 %v485, 256
        %v488 = vpop.permute.xlu0 %487
        %s490 = sor.u32 256, 8
        %491 = vbcast.lane.b32.xlu0 %v485, %s490
        %v492 = vpop.permute.xlu0 %491
        %v493 = vlaneseq
        %v494 = vshrl.u32 %v493, 7
        %v495 = vsub.s32 1, %v494
        %v496 = vrot.slane %v305, %v495
        %498 = vbcast.lane.b32.xlu0 %v496, 256
        %v499 = vpop.permute.xlu0 %498
        %s501 = sor.u32 256, 8
        %502 = vbcast.lane.b32.xlu0 %v496, %s501
        %v503 = vpop.permute.xlu0 %502
        %v504 = vlaneseq
        %v505 = vshrl.u32 %v504, 7
        %v506 = vsub.s32 2, %v505
        %v507 = vrot.slane %v305, %v506
        %509 = vbcast.lane.b32.xlu0 %v507, 256
        %v510 = vpop.permute.xlu0 %509
        %s512 = sor.u32 256, 8
        %513 = vbcast.lane.b32.xlu0 %v507, %s512
        %v514 = vpop.permute.xlu0 %513
        %v515 = vlaneseq
        %v516 = vshrl.u32 %v515, 7
        %v517 = vsub.s32 3, %v516
        %v518 = vrot.slane %v305, %v517
        %520 = vbcast.lane.b32.xlu0 %v518, 256
        %v521 = vpop.permute.xlu0 %520
        %s523 = sor.u32 256, 8
        %524 = vbcast.lane.b32.xlu0 %v518, %s523
        %v525 = vpop.permute.xlu0 %524
        %v526 = vlaneseq
        %v527 = vshrl.u32 %v526, 7
        %v528 = vsub.s32 4, %v527
        %v529 = vrot.slane %v305, %v528
        %531 = vbcast.lane.b32.xlu0 %v529, 256
        %v532 = vpop.permute.xlu0 %531
        %s534 = sor.u32 256, 8
        %535 = vbcast.lane.b32.xlu0 %v529, %s534
        %v536 = vpop.permute.xlu0 %535
        %v537 = vlaneseq
        %v538 = vshrl.u32 %v537, 7
        %v539 = vsub.s32 5, %v538
        %v540 = vrot.slane %v305, %v539
        %542 = vbcast.lane.b32.xlu0 %v540, 256
        %v543 = vpop.permute.xlu0 %542
        %s545 = sor.u32 256, 8
        %546 = vbcast.lane.b32.xlu0 %v540, %s545
        %v547 = vpop.permute.xlu0 %546
        %v548 = vlaneseq
        %v549 = vshrl.u32 %v548, 7
        %v550 = vsub.s32 6, %v549
        %v551 = vrot.slane %v305, %v550
        %553 = vbcast.lane.b32.xlu0 %v551, 256
        %v554 = vpop.permute.xlu0 %553
        %s556 = sor.u32 256, 8
        %557 = vbcast.lane.b32.xlu0 %v551, %s556
        %v558 = vpop.permute.xlu0 %557
        %v559 = vlaneseq
        %v560 = vshrl.u32 %v559, 7
        %v561 = vsub.s32 7, %v560
        %v562 = vrot.slane %v305, %v561
        %564 = vbcast.lane.b32.xlu0 %v562, 256
        %v565 = vpop.permute.xlu0 %564
        %s567 = sor.u32 256, 8
        %568 = vbcast.lane.b32.xlu0 %v562, %s567
        %v569 = vpop.permute.xlu0 %568
        %s571 = sor.u32 256, 1
        %572 = vbcast.lane.b32.xlu0 %v309, %s571
        %v573 = vpop.permute.xlu0 %572
        %s575 = sor.u32 256, 9
        %576 = vbcast.lane.b32.xlu0 %v309, %s575
        %v577 = vpop.permute.xlu0 %576
        %s579 = sor.u32 256, 1
        %580 = vbcast.lane.b32.xlu0 %v320, %s579
        %v581 = vpop.permute.xlu0 %580
        %s583 = sor.u32 256, 9
        %584 = vbcast.lane.b32.xlu0 %v320, %s583
        %v585 = vpop.permute.xlu0 %584
        %s587 = sor.u32 256, 1
        %588 = vbcast.lane.b32.xlu0 %v331, %s587
        %v589 = vpop.permute.xlu0 %588
        %s591 = sor.u32 256, 9
        %592 = vbcast.lane.b32.xlu0 %v331, %s591
        %v593 = vpop.permute.xlu0 %592
        %s595 = sor.u32 256, 1
        %596 = vbcast.lane.b32.xlu0 %v342, %s595
        %v597 = vpop.permute.xlu0 %596
        %s599 = sor.u32 256, 9
        %600 = vbcast.lane.b32.xlu0 %v342, %s599
        %v601 = vpop.permute.xlu0 %600
        %s603 = sor.u32 256, 1
        %604 = vbcast.lane.b32.xlu0 %v353, %s603
        %v605 = vpop.permute.xlu0 %604
        %s607 = sor.u32 256, 9
        %608 = vbcast.lane.b32.xlu0 %v353, %s607
        %v609 = vpop.permute.xlu0 %608
        %s611 = sor.u32 256, 1
        %612 = vbcast.lane.b32.xlu0 %v364, %s611
        %v613 = vpop.permute.xlu0 %612
        %s615 = sor.u32 256, 9
        %616 = vbcast.lane.b32.xlu0 %v364, %s615
        %v617 = vpop.permute.xlu0 %616
        %s619 = sor.u32 256, 1
        %620 = vbcast.lane.b32.xlu0 %v375, %s619
        %v621 = vpop.permute.xlu0 %620
        %s623 = sor.u32 256, 9
        %624 = vbcast.lane.b32.xlu0 %v375, %s623
        %v625 = vpop.permute.xlu0 %624
        %s627 = sor.u32 256, 1
        %628 = vbcast.lane.b32.xlu0 %v386, %s627
        %v629 = vpop.permute.xlu0 %628
        %s631 = sor.u32 256, 9
        %632 = vbcast.lane.b32.xlu0 %v386, %s631
        %v633 = vpop.permute.xlu0 %632
        %s635 = sor.u32 256, 1
        %636 = vbcast.lane.b32.xlu0 %v397, %s635
        %v637 = vpop.permute.xlu0 %636
        %s639 = sor.u32 256, 9
        %640 = vbcast.lane.b32.xlu0 %v397, %s639
        %v641 = vpop.permute.xlu0 %640
        %s643 = sor.u32 256, 1
        %644 = vbcast.lane.b32.xlu0 %v408, %s643
        %v645 = vpop.permute.xlu0 %644
        %s647 = sor.u32 256, 9
        %648 = vbcast.lane.b32.xlu0 %v408, %s647
        %v649 = vpop.permute.xlu0 %648
        %s651 = sor.u32 256, 1
        %652 = vbcast.lane.b32.xlu0 %v419, %s651
        %v653 = vpop.permute.xlu0 %652
        %s655 = sor.u32 256, 9
        %656 = vbcast.lane.b32.xlu0 %v419, %s655
        %v657 = vpop.permute.xlu0 %656
        %s659 = sor.u32 256, 1
        %660 = vbcast.lane.b32.xlu0 %v430, %s659
        %v661 = vpop.permute.xlu0 %660
        %s663 = sor.u32 256, 9
        %664 = vbcast.lane.b32.xlu0 %v430, %s663
        %v665 = vpop.permute.xlu0 %664
        %s667 = sor.u32 256, 1
        %668 = vbcast.lane.b32.xlu0 %v441, %s667
        %v669 = vpop.permute.xlu0 %668
        %s671 = sor.u32 256, 9
        %672 = vbcast.lane.b32.xlu0 %v441, %s671
        %v673 = vpop.permute.xlu0 %672
        %s675 = sor.u32 256, 1
        %676 = vbcast.lane.b32.xlu0 %v452, %s675
        %v677 = vpop.permute.xlu0 %676
        %s679 = sor.u32 256, 9
        %680 = vbcast.lane.b32.xlu0 %v452, %s679
        %v681 = vpop.permute.xlu0 %680
        %s683 = sor.u32 256, 1
        %684 = vbcast.lane.b32.xlu0 %v463, %s683
        %v685 = vpop.permute.xlu0 %684
        %s687 = sor.u32 256, 9
        %688 = vbcast.lane.b32.xlu0 %v463, %s687
        %v689 = vpop.permute.xlu0 %688
        %s691 = sor.u32 256, 1
        %692 = vbcast.lane.b32.xlu0 %v474, %s691
        %v693 = vpop.permute.xlu0 %692
        %s695 = sor.u32 256, 9
        %696 = vbcast.lane.b32.xlu0 %v474, %s695
        %v697 = vpop.permute.xlu0 %696
        %s699 = sor.u32 256, 1
        %700 = vbcast.lane.b32.xlu0 %v485, %s699
        %v701 = vpop.permute.xlu0 %700
        %s703 = sor.u32 256, 9
        %704 = vbcast.lane.b32.xlu0 %v485, %s703
        %v705 = vpop.permute.xlu0 %704
        %s707 = sor.u32 256, 1
        %708 = vbcast.lane.b32.xlu0 %v496, %s707
        %v709 = vpop.permute.xlu0 %708
        %s711 = sor.u32 256, 9
        %712 = vbcast.lane.b32.xlu0 %v496, %s711
        %v713 = vpop.permute.xlu0 %712
        %s715 = sor.u32 256, 1
        %716 = vbcast.lane.b32.xlu0 %v507, %s715
        %v717 = vpop.permute.xlu0 %716
        %s719 = sor.u32 256, 9
        %720 = vbcast.lane.b32.xlu0 %v507, %s719
        %v721 = vpop.permute.xlu0 %720
        %s723 = sor.u32 256, 1
        %724 = vbcast.lane.b32.xlu0 %v518, %s723
        %v725 = vpop.permute.xlu0 %724
        %s727 = sor.u32 256, 9
        %728 = vbcast.lane.b32.xlu0 %v518, %s727
        %v729 = vpop.permute.xlu0 %728
        %s731 = sor.u32 256, 1
        %732 = vbcast.lane.b32.xlu0 %v529, %s731
        %v733 = vpop.permute.xlu0 %732
        %s735 = sor.u32 256, 9
        %736 = vbcast.lane.b32.xlu0 %v529, %s735
        %v737 = vpop.permute.xlu0 %736
        %s739 = sor.u32 256, 1
        %740 = vbcast.lane.b32.xlu0 %v540, %s739
        %v741 = vpop.permute.xlu0 %740
        %s743 = sor.u32 256, 9
        %744 = vbcast.lane.b32.xlu0 %v540, %s743
        %v745 = vpop.permute.xlu0 %744
        %s747 = sor.u32 256, 1
        %748 = vbcast.lane.b32.xlu0 %v551, %s747
        %v749 = vpop.permute.xlu0 %748
        %s751 = sor.u32 256, 9
        %752 = vbcast.lane.b32.xlu0 %v551, %s751
        %v753 = vpop.permute.xlu0 %752
        %s755 = sor.u32 256, 1
        %756 = vbcast.lane.b32.xlu0 %v562, %s755
        %v757 = vpop.permute.xlu0 %756
        %s759 = sor.u32 256, 9
        %760 = vbcast.lane.b32.xlu0 %v562, %s759
        %v761 = vpop.permute.xlu0 %760
        %s763 = sor.u32 256, 2
        %764 = vbcast.lane.b32.xlu0 %v309, %s763
        %v765 = vpop.permute.xlu0 %764
        %s767 = sor.u32 256, 10
        %768 = vbcast.lane.b32.xlu0 %v309, %s767
        %v769 = vpop.permute.xlu0 %768
        %s771 = sor.u32 256, 2
        %772 = vbcast.lane.b32.xlu0 %v320, %s771
        %v773 = vpop.permute.xlu0 %772
        %s775 = sor.u32 256, 10
        %776 = vbcast.lane.b32.xlu0 %v320, %s775
        %v777 = vpop.permute.xlu0 %776
        %s779 = sor.u32 256, 2
        %780 = vbcast.lane.b32.xlu0 %v331, %s779
        %v781 = vpop.permute.xlu0 %780
        %s783 = sor.u32 256, 10
        %784 = vbcast.lane.b32.xlu0 %v331, %s783
        %v785 = vpop.permute.xlu0 %784
        %s787 = sor.u32 256, 2
        %788 = vbcast.lane.b32.xlu0 %v342, %s787
        %v789 = vpop.permute.xlu0 %788
        %s791 = sor.u32 256, 10
        %792 = vbcast.lane.b32.xlu0 %v342, %s791
        %v793 = vpop.permute.xlu0 %792
        %s795 = sor.u32 256, 2
        %796 = vbcast.lane.b32.xlu0 %v353, %s795
        %v797 = vpop.permute.xlu0 %796
        %s799 = sor.u32 256, 10
        %800 = vbcast.lane.b32.xlu0 %v353, %s799
        %v801 = vpop.permute.xlu0 %800
        %s803 = sor.u32 256, 2
        %804 = vbcast.lane.b32.xlu0 %v364, %s803
        %v805 = vpop.permute.xlu0 %804
        %s807 = sor.u32 256, 10
        %808 = vbcast.lane.b32.xlu0 %v364, %s807
        %v809 = vpop.permute.xlu0 %808
        %s811 = sor.u32 256, 2
        %812 = vbcast.lane.b32.xlu0 %v375, %s811
        %v813 = vpop.permute.xlu0 %812
        %s815 = sor.u32 256, 10
        %816 = vbcast.lane.b32.xlu0 %v375, %s815
        %v817 = vpop.permute.xlu0 %816
        %s819 = sor.u32 256, 2
        %820 = vbcast.lane.b32.xlu0 %v386, %s819
        %v821 = vpop.permute.xlu0 %820
        %s823 = sor.u32 256, 10
        %824 = vbcast.lane.b32.xlu0 %v386, %s823
        %v825 = vpop.permute.xlu0 %824
        %s827 = sor.u32 256, 2
        %828 = vbcast.lane.b32.xlu0 %v397, %s827
        %v829 = vpop.permute.xlu0 %828
        %s831 = sor.u32 256, 10
        %832 = vbcast.lane.b32.xlu0 %v397, %s831
        %v833 = vpop.permute.xlu0 %832
        %s835 = sor.u32 256, 2
        %836 = vbcast.lane.b32.xlu0 %v408, %s835
        %v837 = vpop.permute.xlu0 %836
        %s839 = sor.u32 256, 10
        %840 = vbcast.lane.b32.xlu0 %v408, %s839
        %v841 = vpop.permute.xlu0 %840
        %s843 = sor.u32 256, 2
        %844 = vbcast.lane.b32.xlu0 %v419, %s843
        %v845 = vpop.permute.xlu0 %844
        %s847 = sor.u32 256, 10
        %848 = vbcast.lane.b32.xlu0 %v419, %s847
        %v849 = vpop.permute.xlu0 %848
        %s851 = sor.u32 256, 2
        %852 = vbcast.lane.b32.xlu0 %v430, %s851
        %v853 = vpop.permute.xlu0 %852
        %s855 = sor.u32 256, 10
        %856 = vbcast.lane.b32.xlu0 %v430, %s855
        %v857 = vpop.permute.xlu0 %856
        %s859 = sor.u32 256, 2
        %860 = vbcast.lane.b32.xlu0 %v441, %s859
        %v861 = vpop.permute.xlu0 %860
        %s863 = sor.u32 256, 10
        %864 = vbcast.lane.b32.xlu0 %v441, %s863
        %v865 = vpop.permute.xlu0 %864
        %s867 = sor.u32 256, 2
        %868 = vbcast.lane.b32.xlu0 %v452, %s867
        %v869 = vpop.permute.xlu0 %868
        %s871 = sor.u32 256, 10
        %872 = vbcast.lane.b32.xlu0 %v452, %s871
        %v873 = vpop.permute.xlu0 %872
        %s875 = sor.u32 256, 2
        %876 = vbcast.lane.b32.xlu0 %v463, %s875
        %v877 = vpop.permute.xlu0 %876
        %s879 = sor.u32 256, 10
        %880 = vbcast.lane.b32.xlu0 %v463, %s879
        %v881 = vpop.permute.xlu0 %880
        %s883 = sor.u32 256, 2
        %884 = vbcast.lane.b32.xlu0 %v474, %s883
        %v885 = vpop.permute.xlu0 %884
        %s887 = sor.u32 256, 10
        %888 = vbcast.lane.b32.xlu0 %v474, %s887
        %v889 = vpop.permute.xlu0 %888
        %s891 = sor.u32 256, 2
        %892 = vbcast.lane.b32.xlu0 %v485, %s891
        %v893 = vpop.permute.xlu0 %892
        %s895 = sor.u32 256, 10
        %896 = vbcast.lane.b32.xlu0 %v485, %s895
        %v897 = vpop.permute.xlu0 %896
        %s899 = sor.u32 256, 2
        %900 = vbcast.lane.b32.xlu0 %v496, %s899
        %v901 = vpop.permute.xlu0 %900
        %s903 = sor.u32 256, 10
        %904 = vbcast.lane.b32.xlu0 %v496, %s903
        %v905 = vpop.permute.xlu0 %904
        %s907 = sor.u32 256, 2
        %908 = vbcast.lane.b32.xlu0 %v507, %s907
        %v909 = vpop.permute.xlu0 %908
        %s911 = sor.u32 256, 10
        %912 = vbcast.lane.b32.xlu0 %v507, %s911
        %v913 = vpop.permute.xlu0 %912
        %s915 = sor.u32 256, 2
        %916 = vbcast.lane.b32.xlu0 %v518, %s915
        %v917 = vpop.permute.xlu0 %916
        %s919 = sor.u32 256, 10
        %920 = vbcast.lane.b32.xlu0 %v518, %s919
        %v921 = vpop.permute.xlu0 %920
        %s923 = sor.u32 256, 2
        %924 = vbcast.lane.b32.xlu0 %v529, %s923
        %v925 = vpop.permute.xlu0 %924
        %s927 = sor.u32 256, 10
        %928 = vbcast.lane.b32.xlu0 %v529, %s927
        %v929 = vpop.permute.xlu0 %928
        %s931 = sor.u32 256, 2
        %932 = vbcast.lane.b32.xlu0 %v540, %s931
        %v933 = vpop.permute.xlu0 %932
        %s935 = sor.u32 256, 10
        %936 = vbcast.lane.b32.xlu0 %v540, %s935
        %v937 = vpop.permute.xlu0 %936
        %s939 = sor.u32 256, 2
        %940 = vbcast.lane.b32.xlu0 %v551, %s939
        %v941 = vpop.permute.xlu0 %940
        %s943 = sor.u32 256, 10
        %944 = vbcast.lane.b32.xlu0 %v551, %s943
        %v945 = vpop.permute.xlu0 %944
        %s947 = sor.u32 256, 2
        %948 = vbcast.lane.b32.xlu0 %v562, %s947
        %v949 = vpop.permute.xlu0 %948
        %s951 = sor.u32 256, 10
        %952 = vbcast.lane.b32.xlu0 %v562, %s951
        %v953 = vpop.permute.xlu0 %952
        %s955 = sor.u32 256, 3
        %956 = vbcast.lane.b32.xlu0 %v309, %s955
        %v957 = vpop.permute.xlu0 %956
        %s959 = sor.u32 256, 11
        %960 = vbcast.lane.b32.xlu0 %v309, %s959
        %v961 = vpop.permute.xlu0 %960
        %s963 = sor.u32 256, 3
        %964 = vbcast.lane.b32.xlu0 %v320, %s963
        %v965 = vpop.permute.xlu0 %964
        %s967 = sor.u32 256, 11
        %968 = vbcast.lane.b32.xlu0 %v320, %s967
        %v969 = vpop.permute.xlu0 %968
        %s971 = sor.u32 256, 3
        %972 = vbcast.lane.b32.xlu0 %v331, %s971
        %v973 = vpop.permute.xlu0 %972
        %s975 = sor.u32 256, 11
        %976 = vbcast.lane.b32.xlu0 %v331, %s975
        %v977 = vpop.permute.xlu0 %976
        %s979 = sor.u32 256, 3
        %980 = vbcast.lane.b32.xlu0 %v342, %s979
        %v981 = vpop.permute.xlu0 %980
        %s983 = sor.u32 256, 11
        %984 = vbcast.lane.b32.xlu0 %v342, %s983
        %v985 = vpop.permute.xlu0 %984
        %s987 = sor.u32 256, 3
        %988 = vbcast.lane.b32.xlu0 %v353, %s987
        %v989 = vpop.permute.xlu0 %988
        %s991 = sor.u32 256, 11
        %992 = vbcast.lane.b32.xlu0 %v353, %s991
        %v993 = vpop.permute.xlu0 %992
        %s995 = sor.u32 256, 3
        %996 = vbcast.lane.b32.xlu0 %v364, %s995
        %v997 = vpop.permute.xlu0 %996
        %s999 = sor.u32 256, 11
        %1000 = vbcast.lane.b32.xlu0 %v364, %s999
        %v1001 = vpop.permute.xlu0 %1000
        %s1003 = sor.u32 256, 3
        %1004 = vbcast.lane.b32.xlu0 %v375, %s1003
        %v1005 = vpop.permute.xlu0 %1004
        %s1007 = sor.u32 256, 11
        %1008 = vbcast.lane.b32.xlu0 %v375, %s1007
        %v1009 = vpop.permute.xlu0 %1008
        %s1011 = sor.u32 256, 3
        %1012 = vbcast.lane.b32.xlu0 %v386, %s1011
        %v1013 = vpop.permute.xlu0 %1012
        %s1015 = sor.u32 256, 11
        %1016 = vbcast.lane.b32.xlu0 %v386, %s1015
        %v1017 = vpop.permute.xlu0 %1016
        %s1019 = sor.u32 256, 3
        %1020 = vbcast.lane.b32.xlu0 %v397, %s1019
        %v1021 = vpop.permute.xlu0 %1020
        %s1023 = sor.u32 256, 11
        %1024 = vbcast.lane.b32.xlu0 %v397, %s1023
        %v1025 = vpop.permute.xlu0 %1024
        %s1027 = sor.u32 256, 3
        %1028 = vbcast.lane.b32.xlu0 %v408, %s1027
        %v1029 = vpop.permute.xlu0 %1028
        %s1031 = sor.u32 256, 11
        %1032 = vbcast.lane.b32.xlu0 %v408, %s1031
        %v1033 = vpop.permute.xlu0 %1032
        %s1035 = sor.u32 256, 3
        %1036 = vbcast.lane.b32.xlu0 %v419, %s1035
        %v1037 = vpop.permute.xlu0 %1036
        %s1039 = sor.u32 256, 11
        %1040 = vbcast.lane.b32.xlu0 %v419, %s1039
        %v1041 = vpop.permute.xlu0 %1040
        %s1043 = sor.u32 256, 3
        %1044 = vbcast.lane.b32.xlu0 %v430, %s1043
        %v1045 = vpop.permute.xlu0 %1044
        %s1047 = sor.u32 256, 11
        %1048 = vbcast.lane.b32.xlu0 %v430, %s1047
        %v1049 = vpop.permute.xlu0 %1048
        %s1051 = sor.u32 256, 3
        %1052 = vbcast.lane.b32.xlu0 %v441, %s1051
        %v1053 = vpop.permute.xlu0 %1052
        %s1055 = sor.u32 256, 11
        %1056 = vbcast.lane.b32.xlu0 %v441, %s1055
        %v1057 = vpop.permute.xlu0 %1056
        %s1059 = sor.u32 256, 3
        %1060 = vbcast.lane.b32.xlu0 %v452, %s1059
        %v1061 = vpop.permute.xlu0 %1060
        %s1063 = sor.u32 256, 11
        %1064 = vbcast.lane.b32.xlu0 %v452, %s1063
        %v1065 = vpop.permute.xlu0 %1064
        %s1067 = sor.u32 256, 3
        %1068 = vbcast.lane.b32.xlu0 %v463, %s1067
        %v1069 = vpop.permute.xlu0 %1068
        %s1071 = sor.u32 256, 11
        %1072 = vbcast.lane.b32.xlu0 %v463, %s1071
        %v1073 = vpop.permute.xlu0 %1072
        %s1075 = sor.u32 256, 3
        %1076 = vbcast.lane.b32.xlu0 %v474, %s1075
        %v1077 = vpop.permute.xlu0 %1076
        %s1079 = sor.u32 256, 11
        %1080 = vbcast.lane.b32.xlu0 %v474, %s1079
        %v1081 = vpop.permute.xlu0 %1080
        %s1083 = sor.u32 256, 3
        %1084 = vbcast.lane.b32.xlu0 %v485, %s1083
        %v1085 = vpop.permute.xlu0 %1084
        %s1087 = sor.u32 256, 11
        %1088 = vbcast.lane.b32.xlu0 %v485, %s1087
        %v1089 = vpop.permute.xlu0 %1088
        %s1091 = sor.u32 256, 3
        %1092 = vbcast.lane.b32.xlu0 %v496, %s1091
        %v1093 = vpop.permute.xlu0 %1092
        %s1095 = sor.u32 256, 11
        %1096 = vbcast.lane.b32.xlu0 %v496, %s1095
        %v1097 = vpop.permute.xlu0 %1096
        %s1099 = sor.u32 256, 3
        %1100 = vbcast.lane.b32.xlu0 %v507, %s1099
        %v1101 = vpop.permute.xlu0 %1100
        %s1103 = sor.u32 256, 11
        %1104 = vbcast.lane.b32.xlu0 %v507, %s1103
        %v1105 = vpop.permute.xlu0 %1104
        %s1107 = sor.u32 256, 3
        %1108 = vbcast.lane.b32.xlu0 %v518, %s1107
        %v1109 = vpop.permute.xlu0 %1108
        %s1111 = sor.u32 256, 11
        %1112 = vbcast.lane.b32.xlu0 %v518, %s1111
        %v1113 = vpop.permute.xlu0 %1112
        %s1115 = sor.u32 256, 3
        %1116 = vbcast.lane.b32.xlu0 %v529, %s1115
        %v1117 = vpop.permute.xlu0 %1116
        %s1119 = sor.u32 256, 11
        %1120 = vbcast.lane.b32.xlu0 %v529, %s1119
        %v1121 = vpop.permute.xlu0 %1120
        %s1123 = sor.u32 256, 3
        %1124 = vbcast.lane.b32.xlu0 %v540, %s1123
        %v1125 = vpop.permute.xlu0 %1124
        %s1127 = sor.u32 256, 11
        %1128 = vbcast.lane.b32.xlu0 %v540, %s1127
        %v1129 = vpop.permute.xlu0 %1128
        %s1131 = sor.u32 256, 3
        %1132 = vbcast.lane.b32.xlu0 %v551, %s1131
        %v1133 = vpop.permute.xlu0 %1132
        %s1135 = sor.u32 256, 11
        %1136 = vbcast.lane.b32.xlu0 %v551, %s1135
        %v1137 = vpop.permute.xlu0 %1136
        %s1139 = sor.u32 256, 3
        %1140 = vbcast.lane.b32.xlu0 %v562, %s1139
        %v1141 = vpop.permute.xlu0 %1140
        %s1143 = sor.u32 256, 11
        %1144 = vbcast.lane.b32.xlu0 %v562, %s1143
        %v1145 = vpop.permute.xlu0 %1144
        %s1147 = sor.u32 256, 4
        %1148 = vbcast.lane.b32.xlu0 %v309, %s1147
        %v1149 = vpop.permute.xlu0 %1148
        %s1151 = sor.u32 256, 12
        %1152 = vbcast.lane.b32.xlu0 %v309, %s1151
        %v1153 = vpop.permute.xlu0 %1152
        %s1155 = sor.u32 256, 4
        %1156 = vbcast.lane.b32.xlu0 %v320, %s1155
        %v1157 = vpop.permute.xlu0 %1156
        %s1159 = sor.u32 256, 12
        %1160 = vbcast.lane.b32.xlu0 %v320, %s1159
        %v1161 = vpop.permute.xlu0 %1160
        %s1163 = sor.u32 256, 4
        %1164 = vbcast.lane.b32.xlu0 %v331, %s1163
        %v1165 = vpop.permute.xlu0 %1164
        %s1167 = sor.u32 256, 12
        %1168 = vbcast.lane.b32.xlu0 %v331, %s1167
        %v1169 = vpop.permute.xlu0 %1168
        %s1171 = sor.u32 256, 4
        %1172 = vbcast.lane.b32.xlu0 %v342, %s1171
        %v1173 = vpop.permute.xlu0 %1172
        %s1175 = sor.u32 256, 12
        %1176 = vbcast.lane.b32.xlu0 %v342, %s1175
        %v1177 = vpop.permute.xlu0 %1176
        %s1179 = sor.u32 256, 4
        %1180 = vbcast.lane.b32.xlu0 %v353, %s1179
        %v1181 = vpop.permute.xlu0 %1180
        %s1183 = sor.u32 256, 12
        %1184 = vbcast.lane.b32.xlu0 %v353, %s1183
        %v1185 = vpop.permute.xlu0 %1184
        %s1187 = sor.u32 256, 4
        %1188 = vbcast.lane.b32.xlu0 %v364, %s1187
        %v1189 = vpop.permute.xlu0 %1188
        %s1191 = sor.u32 256, 12
        %1192 = vbcast.lane.b32.xlu0 %v364, %s1191
        %v1193 = vpop.permute.xlu0 %1192
        %s1195 = sor.u32 256, 4
        %1196 = vbcast.lane.b32.xlu0 %v375, %s1195
        %v1197 = vpop.permute.xlu0 %1196
        %s1199 = sor.u32 256, 12
        %1200 = vbcast.lane.b32.xlu0 %v375, %s1199
        %v1201 = vpop.permute.xlu0 %1200
        %s1203 = sor.u32 256, 4
        %1204 = vbcast.lane.b32.xlu0 %v386, %s1203
        %v1205 = vpop.permute.xlu0 %1204
        %s1207 = sor.u32 256, 12
        %1208 = vbcast.lane.b32.xlu0 %v386, %s1207
        %v1209 = vpop.permute.xlu0 %1208
        %s1211 = sor.u32 256, 4
        %1212 = vbcast.lane.b32.xlu0 %v397, %s1211
        %v1213 = vpop.permute.xlu0 %1212
        %s1215 = sor.u32 256, 12
        %1216 = vbcast.lane.b32.xlu0 %v397, %s1215
        %v1217 = vpop.permute.xlu0 %1216
        %s1219 = sor.u32 256, 4
        %1220 = vbcast.lane.b32.xlu0 %v408, %s1219
        %v1221 = vpop.permute.xlu0 %1220
        %s1223 = sor.u32 256, 12
        %1224 = vbcast.lane.b32.xlu0 %v408, %s1223
        %v1225 = vpop.permute.xlu0 %1224
        %s1227 = sor.u32 256, 4
        %1228 = vbcast.lane.b32.xlu0 %v419, %s1227
        %v1229 = vpop.permute.xlu0 %1228
        %s1231 = sor.u32 256, 12
        %1232 = vbcast.lane.b32.xlu0 %v419, %s1231
        %v1233 = vpop.permute.xlu0 %1232
        %s1235 = sor.u32 256, 4
        %1236 = vbcast.lane.b32.xlu0 %v430, %s1235
        %v1237 = vpop.permute.xlu0 %1236
        %s1239 = sor.u32 256, 12
        %1240 = vbcast.lane.b32.xlu0 %v430, %s1239
        %v1241 = vpop.permute.xlu0 %1240
        %s1243 = sor.u32 256, 4
        %1244 = vbcast.lane.b32.xlu0 %v441, %s1243
        %v1245 = vpop.permute.xlu0 %1244
        %s1247 = sor.u32 256, 12
        %1248 = vbcast.lane.b32.xlu0 %v441, %s1247
        %v1249 = vpop.permute.xlu0 %1248
        %s1251 = sor.u32 256, 4
        %1252 = vbcast.lane.b32.xlu0 %v452, %s1251
        %v1253 = vpop.permute.xlu0 %1252
        %s1255 = sor.u32 256, 12
        %1256 = vbcast.lane.b32.xlu0 %v452, %s1255
        %v1257 = vpop.permute.xlu0 %1256
        %s1259 = sor.u32 256, 4
        %1260 = vbcast.lane.b32.xlu0 %v463, %s1259
        %v1261 = vpop.permute.xlu0 %1260
        %s1263 = sor.u32 256, 12
        %1264 = vbcast.lane.b32.xlu0 %v463, %s1263
        %v1265 = vpop.permute.xlu0 %1264
        %s1267 = sor.u32 256, 4
        %1268 = vbcast.lane.b32.xlu0 %v474, %s1267
        %v1269 = vpop.permute.xlu0 %1268
        %s1271 = sor.u32 256, 12
        %1272 = vbcast.lane.b32.xlu0 %v474, %s1271
        %v1273 = vpop.permute.xlu0 %1272
        %s1275 = sor.u32 256, 4
        %1276 = vbcast.lane.b32.xlu0 %v485, %s1275
        %v1277 = vpop.permute.xlu0 %1276
        %s1279 = sor.u32 256, 12
        %1280 = vbcast.lane.b32.xlu0 %v485, %s1279
        %v1281 = vpop.permute.xlu0 %1280
        %s1283 = sor.u32 256, 4
        %1284 = vbcast.lane.b32.xlu0 %v496, %s1283
        %v1285 = vpop.permute.xlu0 %1284
        %s1287 = sor.u32 256, 12
        %1288 = vbcast.lane.b32.xlu0 %v496, %s1287
        %v1289 = vpop.permute.xlu0 %1288
        %s1291 = sor.u32 256, 4
        %1292 = vbcast.lane.b32.xlu0 %v507, %s1291
        %v1293 = vpop.permute.xlu0 %1292
        %s1295 = sor.u32 256, 12
        %1296 = vbcast.lane.b32.xlu0 %v507, %s1295
        %v1297 = vpop.permute.xlu0 %1296
        %s1299 = sor.u32 256, 4
        %1300 = vbcast.lane.b32.xlu0 %v518, %s1299
        %v1301 = vpop.permute.xlu0 %1300
        %s1303 = sor.u32 256, 12
        %1304 = vbcast.lane.b32.xlu0 %v518, %s1303
        %v1305 = vpop.permute.xlu0 %1304
        %s1307 = sor.u32 256, 4
        %1308 = vbcast.lane.b32.xlu0 %v529, %s1307
        %v1309 = vpop.permute.xlu0 %1308
        %s1311 = sor.u32 256, 12
        %1312 = vbcast.lane.b32.xlu0 %v529, %s1311
        %v1313 = vpop.permute.xlu0 %1312
        %s1315 = sor.u32 256, 4
        %1316 = vbcast.lane.b32.xlu0 %v540, %s1315
        %v1317 = vpop.permute.xlu0 %1316
        %s1319 = sor.u32 256, 12
        %1320 = vbcast.lane.b32.xlu0 %v540, %s1319
        %v1321 = vpop.permute.xlu0 %1320
        %s1323 = sor.u32 256, 4
        %1324 = vbcast.lane.b32.xlu0 %v551, %s1323
        %v1325 = vpop.permute.xlu0 %1324
        %s1327 = sor.u32 256, 12
        %1328 = vbcast.lane.b32.xlu0 %v551, %s1327
        %v1329 = vpop.permute.xlu0 %1328
        %s1331 = sor.u32 256, 4
        %1332 = vbcast.lane.b32.xlu0 %v562, %s1331
        %v1333 = vpop.permute.xlu0 %1332
        %s1335 = sor.u32 256, 12
        %1336 = vbcast.lane.b32.xlu0 %v562, %s1335
        %v1337 = vpop.permute.xlu0 %1336
        %s1339 = sor.u32 256, 5
        %1340 = vbcast.lane.b32.xlu0 %v309, %s1339
        %v1341 = vpop.permute.xlu0 %1340
        %s1343 = sor.u32 256, 13
        %1344 = vbcast.lane.b32.xlu0 %v309, %s1343
        %v1345 = vpop.permute.xlu0 %1344
        %s1347 = sor.u32 256, 5
        %1348 = vbcast.lane.b32.xlu0 %v320, %s1347
        %v1349 = vpop.permute.xlu0 %1348
        %s1351 = sor.u32 256, 13
        %1352 = vbcast.lane.b32.xlu0 %v320, %s1351
        %v1353 = vpop.permute.xlu0 %1352
        %s1355 = sor.u32 256, 5
        %1356 = vbcast.lane.b32.xlu0 %v331, %s1355
        %v1357 = vpop.permute.xlu0 %1356
        %s1359 = sor.u32 256, 13
        %1360 = vbcast.lane.b32.xlu0 %v331, %s1359
        %v1361 = vpop.permute.xlu0 %1360
        %s1363 = sor.u32 256, 5
        %1364 = vbcast.lane.b32.xlu0 %v342, %s1363
        %v1365 = vpop.permute.xlu0 %1364
        %s1367 = sor.u32 256, 13
        %1368 = vbcast.lane.b32.xlu0 %v342, %s1367
        %v1369 = vpop.permute.xlu0 %1368
        %s1371 = sor.u32 256, 5
        %1372 = vbcast.lane.b32.xlu0 %v353, %s1371
        %v1373 = vpop.permute.xlu0 %1372
        %s1375 = sor.u32 256, 13
        %1376 = vbcast.lane.b32.xlu0 %v353, %s1375
        %v1377 = vpop.permute.xlu0 %1376
        %s1379 = sor.u32 256, 5
        %1380 = vbcast.lane.b32.xlu0 %v364, %s1379
        %v1381 = vpop.permute.xlu0 %1380
        %s1383 = sor.u32 256, 13
        %1384 = vbcast.lane.b32.xlu0 %v364, %s1383
        %v1385 = vpop.permute.xlu0 %1384
        %s1387 = sor.u32 256, 5
        %1388 = vbcast.lane.b32.xlu0 %v375, %s1387
        %v1389 = vpop.permute.xlu0 %1388
        %s1391 = sor.u32 256, 13
        %1392 = vbcast.lane.b32.xlu0 %v375, %s1391
        %v1393 = vpop.permute.xlu0 %1392
        %s1395 = sor.u32 256, 5
        %1396 = vbcast.lane.b32.xlu0 %v386, %s1395
        %v1397 = vpop.permute.xlu0 %1396
        %s1399 = sor.u32 256, 13
        %1400 = vbcast.lane.b32.xlu0 %v386, %s1399
        %v1401 = vpop.permute.xlu0 %1400
        %s1403 = sor.u32 256, 5
        %1404 = vbcast.lane.b32.xlu0 %v397, %s1403
        %v1405 = vpop.permute.xlu0 %1404
        %s1407 = sor.u32 256, 13
        %1408 = vbcast.lane.b32.xlu0 %v397, %s1407
        %v1409 = vpop.permute.xlu0 %1408
        %s1411 = sor.u32 256, 5
        %1412 = vbcast.lane.b32.xlu0 %v408, %s1411
        %v1413 = vpop.permute.xlu0 %1412
        %s1415 = sor.u32 256, 13
        %1416 = vbcast.lane.b32.xlu0 %v408, %s1415
        %v1417 = vpop.permute.xlu0 %1416
        %s1419 = sor.u32 256, 5
        %1420 = vbcast.lane.b32.xlu0 %v419, %s1419
        %v1421 = vpop.permute.xlu0 %1420
        %s1423 = sor.u32 256, 13
        %1424 = vbcast.lane.b32.xlu0 %v419, %s1423
        %v1425 = vpop.permute.xlu0 %1424
        %s1427 = sor.u32 256, 5
        %1428 = vbcast.lane.b32.xlu0 %v430, %s1427
        %v1429 = vpop.permute.xlu0 %1428
        %s1431 = sor.u32 256, 13
        %1432 = vbcast.lane.b32.xlu0 %v430, %s1431
        %v1433 = vpop.permute.xlu0 %1432
        %s1435 = sor.u32 256, 5
        %1436 = vbcast.lane.b32.xlu0 %v441, %s1435
        %v1437 = vpop.permute.xlu0 %1436
        %s1439 = sor.u32 256, 13
        %1440 = vbcast.lane.b32.xlu0 %v441, %s1439
        %v1441 = vpop.permute.xlu0 %1440
        %s1443 = sor.u32 256, 5
        %1444 = vbcast.lane.b32.xlu0 %v452, %s1443
        %v1445 = vpop.permute.xlu0 %1444
        %s1447 = sor.u32 256, 13
        %1448 = vbcast.lane.b32.xlu0 %v452, %s1447
        %v1449 = vpop.permute.xlu0 %1448
        %s1451 = sor.u32 256, 5
        %1452 = vbcast.lane.b32.xlu0 %v463, %s1451
        %v1453 = vpop.permute.xlu0 %1452
        %s1455 = sor.u32 256, 13
        %1456 = vbcast.lane.b32.xlu0 %v463, %s1455
        %v1457 = vpop.permute.xlu0 %1456
        %s1459 = sor.u32 256, 5
        %1460 = vbcast.lane.b32.xlu0 %v474, %s1459
        %v1461 = vpop.permute.xlu0 %1460
        %s1463 = sor.u32 256, 13
        %1464 = vbcast.lane.b32.xlu0 %v474, %s1463
        %v1465 = vpop.permute.xlu0 %1464
        %s1467 = sor.u32 256, 5
        %1468 = vbcast.lane.b32.xlu0 %v485, %s1467
        %v1469 = vpop.permute.xlu0 %1468
        %s1471 = sor.u32 256, 13
        %1472 = vbcast.lane.b32.xlu0 %v485, %s1471
        %v1473 = vpop.permute.xlu0 %1472
        %s1475 = sor.u32 256, 5
        %1476 = vbcast.lane.b32.xlu0 %v496, %s1475
        %v1477 = vpop.permute.xlu0 %1476
        %s1479 = sor.u32 256, 13
        %1480 = vbcast.lane.b32.xlu0 %v496, %s1479
        %v1481 = vpop.permute.xlu0 %1480
        %s1483 = sor.u32 256, 5
        %1484 = vbcast.lane.b32.xlu0 %v507, %s1483
        %v1485 = vpop.permute.xlu0 %1484
        %s1487 = sor.u32 256, 13
        %1488 = vbcast.lane.b32.xlu0 %v507, %s1487
        %v1489 = vpop.permute.xlu0 %1488
        %s1491 = sor.u32 256, 5
        %1492 = vbcast.lane.b32.xlu0 %v518, %s1491
        %v1493 = vpop.permute.xlu0 %1492
        %s1495 = sor.u32 256, 13
        %1496 = vbcast.lane.b32.xlu0 %v518, %s1495
        %v1497 = vpop.permute.xlu0 %1496
        %s1499 = sor.u32 256, 5
        %1500 = vbcast.lane.b32.xlu0 %v529, %s1499
        %v1501 = vpop.permute.xlu0 %1500
        %s1503 = sor.u32 256, 13
        %1504 = vbcast.lane.b32.xlu0 %v529, %s1503
        %v1505 = vpop.permute.xlu0 %1504
        %s1507 = sor.u32 256, 5
        %1508 = vbcast.lane.b32.xlu0 %v540, %s1507
        %v1509 = vpop.permute.xlu0 %1508
        %s1511 = sor.u32 256, 13
        %1512 = vbcast.lane.b32.xlu0 %v540, %s1511
        %v1513 = vpop.permute.xlu0 %1512
        %s1515 = sor.u32 256, 5
        %1516 = vbcast.lane.b32.xlu0 %v551, %s1515
        %v1517 = vpop.permute.xlu0 %1516
        %s1519 = sor.u32 256, 13
        %1520 = vbcast.lane.b32.xlu0 %v551, %s1519
        %v1521 = vpop.permute.xlu0 %1520
        %s1523 = sor.u32 256, 5
        %1524 = vbcast.lane.b32.xlu0 %v562, %s1523
        %v1525 = vpop.permute.xlu0 %1524
        %s1527 = sor.u32 256, 13
        %1528 = vbcast.lane.b32.xlu0 %v562, %s1527
        %v1529 = vpop.permute.xlu0 %1528
        %s1531 = sor.u32 256, 6
        %1532 = vbcast.lane.b32.xlu0 %v309, %s1531
        %v1533 = vpop.permute.xlu0 %1532
        %s1535 = sor.u32 256, 14
        %1536 = vbcast.lane.b32.xlu0 %v309, %s1535
        %v1537 = vpop.permute.xlu0 %1536
        %s1539 = sor.u32 256, 6
        %1540 = vbcast.lane.b32.xlu0 %v320, %s1539
        %v1541 = vpop.permute.xlu0 %1540
        %s1543 = sor.u32 256, 14
        %1544 = vbcast.lane.b32.xlu0 %v320, %s1543
        %v1545 = vpop.permute.xlu0 %1544
        %s1547 = sor.u32 256, 6
        %1548 = vbcast.lane.b32.xlu0 %v331, %s1547
        %v1549 = vpop.permute.xlu0 %1548
        %s1551 = sor.u32 256, 14
        %1552 = vbcast.lane.b32.xlu0 %v331, %s1551
        %v1553 = vpop.permute.xlu0 %1552
        %s1555 = sor.u32 256, 6
        %1556 = vbcast.lane.b32.xlu0 %v342, %s1555
        %v1557 = vpop.permute.xlu0 %1556
        %s1559 = sor.u32 256, 14
        %1560 = vbcast.lane.b32.xlu0 %v342, %s1559
        %v1561 = vpop.permute.xlu0 %1560
        %s1563 = sor.u32 256, 6
        %1564 = vbcast.lane.b32.xlu0 %v353, %s1563
        %v1565 = vpop.permute.xlu0 %1564
        %s1567 = sor.u32 256, 14
        %1568 = vbcast.lane.b32.xlu0 %v353, %s1567
        %v1569 = vpop.permute.xlu0 %1568
        %s1571 = sor.u32 256, 6
        %1572 = vbcast.lane.b32.xlu0 %v364, %s1571
        %v1573 = vpop.permute.xlu0 %1572
        %s1575 = sor.u32 256, 14
        %1576 = vbcast.lane.b32.xlu0 %v364, %s1575
        %v1577 = vpop.permute.xlu0 %1576
        %s1579 = sor.u32 256, 6
        %1580 = vbcast.lane.b32.xlu0 %v375, %s1579
        %v1581 = vpop.permute.xlu0 %1580
        %s1583 = sor.u32 256, 14
        %1584 = vbcast.lane.b32.xlu0 %v375, %s1583
        %v1585 = vpop.permute.xlu0 %1584
        %s1587 = sor.u32 256, 6
        %1588 = vbcast.lane.b32.xlu0 %v386, %s1587
        %v1589 = vpop.permute.xlu0 %1588
        %s1591 = sor.u32 256, 14
        %1592 = vbcast.lane.b32.xlu0 %v386, %s1591
        %v1593 = vpop.permute.xlu0 %1592
        %s1595 = sor.u32 256, 6
        %1596 = vbcast.lane.b32.xlu0 %v397, %s1595
        %v1597 = vpop.permute.xlu0 %1596
        %s1599 = sor.u32 256, 14
        %1600 = vbcast.lane.b32.xlu0 %v397, %s1599
        %v1601 = vpop.permute.xlu0 %1600
        %s1603 = sor.u32 256, 6
        %1604 = vbcast.lane.b32.xlu0 %v408, %s1603
        %v1605 = vpop.permute.xlu0 %1604
        %s1607 = sor.u32 256, 14
        %1608 = vbcast.lane.b32.xlu0 %v408, %s1607
        %v1609 = vpop.permute.xlu0 %1608
        %s1611 = sor.u32 256, 6
        %1612 = vbcast.lane.b32.xlu0 %v419, %s1611
        %v1613 = vpop.permute.xlu0 %1612
        %s1615 = sor.u32 256, 14
        %1616 = vbcast.lane.b32.xlu0 %v419, %s1615
        %v1617 = vpop.permute.xlu0 %1616
        %s1619 = sor.u32 256, 6
        %1620 = vbcast.lane.b32.xlu0 %v430, %s1619
        %v1621 = vpop.permute.xlu0 %1620
        %s1623 = sor.u32 256, 14
        %1624 = vbcast.lane.b32.xlu0 %v430, %s1623
        %v1625 = vpop.permute.xlu0 %1624
        %s1627 = sor.u32 256, 6
        %1628 = vbcast.lane.b32.xlu0 %v441, %s1627
        %v1629 = vpop.permute.xlu0 %1628
        %s1631 = sor.u32 256, 14
        %1632 = vbcast.lane.b32.xlu0 %v441, %s1631
        %v1633 = vpop.permute.xlu0 %1632
        %s1635 = sor.u32 256, 6
        %1636 = vbcast.lane.b32.xlu0 %v452, %s1635
        %v1637 = vpop.permute.xlu0 %1636
        %s1639 = sor.u32 256, 14
        %1640 = vbcast.lane.b32.xlu0 %v452, %s1639
        %v1641 = vpop.permute.xlu0 %1640
        %s1643 = sor.u32 256, 6
        %1644 = vbcast.lane.b32.xlu0 %v463, %s1643
        %v1645 = vpop.permute.xlu0 %1644
        %s1647 = sor.u32 256, 14
        %1648 = vbcast.lane.b32.xlu0 %v463, %s1647
        %v1649 = vpop.permute.xlu0 %1648
        %s1651 = sor.u32 256, 6
        %1652 = vbcast.lane.b32.xlu0 %v474, %s1651
        %v1653 = vpop.permute.xlu0 %1652
        %s1655 = sor.u32 256, 14
        %1656 = vbcast.lane.b32.xlu0 %v474, %s1655
        %v1657 = vpop.permute.xlu0 %1656
        %s1659 = sor.u32 256, 6
        %1660 = vbcast.lane.b32.xlu0 %v485, %s1659
        %v1661 = vpop.permute.xlu0 %1660
        %s1663 = sor.u32 256, 14
        %1664 = vbcast.lane.b32.xlu0 %v485, %s1663
        %v1665 = vpop.permute.xlu0 %1664
        %s1667 = sor.u32 256, 6
        %1668 = vbcast.lane.b32.xlu0 %v496, %s1667
        %v1669 = vpop.permute.xlu0 %1668
        %s1671 = sor.u32 256, 14
        %1672 = vbcast.lane.b32.xlu0 %v496, %s1671
        %v1673 = vpop.permute.xlu0 %1672
        %s1675 = sor.u32 256, 6
        %1676 = vbcast.lane.b32.xlu0 %v507, %s1675
        %v1677 = vpop.permute.xlu0 %1676
        %s1679 = sor.u32 256, 14
        %1680 = vbcast.lane.b32.xlu0 %v507, %s1679
        %v1681 = vpop.permute.xlu0 %1680
        %s1683 = sor.u32 256, 6
        %1684 = vbcast.lane.b32.xlu0 %v518, %s1683
        %v1685 = vpop.permute.xlu0 %1684
        %s1687 = sor.u32 256, 14
        %1688 = vbcast.lane.b32.xlu0 %v518, %s1687
        %v1689 = vpop.permute.xlu0 %1688
        %s1691 = sor.u32 256, 6
        %1692 = vbcast.lane.b32.xlu0 %v529, %s1691
        %v1693 = vpop.permute.xlu0 %1692
        %s1695 = sor.u32 256, 14
        %1696 = vbcast.lane.b32.xlu0 %v529, %s1695
        %v1697 = vpop.permute.xlu0 %1696
        %s1699 = sor.u32 256, 6
        %1700 = vbcast.lane.b32.xlu0 %v540, %s1699
        %v1701 = vpop.permute.xlu0 %1700
        %s1703 = sor.u32 256, 14
        %1704 = vbcast.lane.b32.xlu0 %v540, %s1703
        %v1705 = vpop.permute.xlu0 %1704
        %s1707 = sor.u32 256, 6
        %1708 = vbcast.lane.b32.xlu0 %v551, %s1707
        %v1709 = vpop.permute.xlu0 %1708
        %s1711 = sor.u32 256, 14
        %1712 = vbcast.lane.b32.xlu0 %v551, %s1711
        %v1713 = vpop.permute.xlu0 %1712
        %s1715 = sor.u32 256, 6
        %1716 = vbcast.lane.b32.xlu0 %v562, %s1715
        %v1717 = vpop.permute.xlu0 %1716
        %s1719 = sor.u32 256, 14
        %1720 = vbcast.lane.b32.xlu0 %v562, %s1719
        %v1721 = vpop.permute.xlu0 %1720
        %s1723 = sor.u32 256, 7
        %1724 = vbcast.lane.b32.xlu0 %v309, %s1723
        %v1725 = vpop.permute.xlu0 %1724
        %s1727 = sor.u32 256, 15
        %1728 = vbcast.lane.b32.xlu0 %v309, %s1727
        %v1729 = vpop.permute.xlu0 %1728
        %s1731 = sor.u32 256, 7
        %1732 = vbcast.lane.b32.xlu0 %v320, %s1731
        %v1733 = vpop.permute.xlu0 %1732
        %s1735 = sor.u32 256, 15
        %1736 = vbcast.lane.b32.xlu0 %v320, %s1735
        %v1737 = vpop.permute.xlu0 %1736
        %s1739 = sor.u32 256, 7
        %1740 = vbcast.lane.b32.xlu0 %v331, %s1739
        %v1741 = vpop.permute.xlu0 %1740
        %s1743 = sor.u32 256, 15
        %1744 = vbcast.lane.b32.xlu0 %v331, %s1743
        %v1745 = vpop.permute.xlu0 %1744
        %s1747 = sor.u32 256, 7
        %1748 = vbcast.lane.b32.xlu0 %v342, %s1747
        %v1749 = vpop.permute.xlu0 %1748
        %s1751 = sor.u32 256, 15
        %1752 = vbcast.lane.b32.xlu0 %v342, %s1751
        %v1753 = vpop.permute.xlu0 %1752
        %s1755 = sor.u32 256, 7
        %1756 = vbcast.lane.b32.xlu0 %v353, %s1755
        %v1757 = vpop.permute.xlu0 %1756
        %s1759 = sor.u32 256, 15
        %1760 = vbcast.lane.b32.xlu0 %v353, %s1759
        %v1761 = vpop.permute.xlu0 %1760
        %s1763 = sor.u32 256, 7
        %1764 = vbcast.lane.b32.xlu0 %v364, %s1763
        %v1765 = vpop.permute.xlu0 %1764
        %s1767 = sor.u32 256, 15
        %1768 = vbcast.lane.b32.xlu0 %v364, %s1767
        %v1769 = vpop.permute.xlu0 %1768
        %s1771 = sor.u32 256, 7
        %1772 = vbcast.lane.b32.xlu0 %v375, %s1771
        %v1773 = vpop.permute.xlu0 %1772
        %s1775 = sor.u32 256, 15
        %1776 = vbcast.lane.b32.xlu0 %v375, %s1775
        %v1777 = vpop.permute.xlu0 %1776
        %s1779 = sor.u32 256, 7
        %1780 = vbcast.lane.b32.xlu0 %v386, %s1779
        %v1781 = vpop.permute.xlu0 %1780
        %s1783 = sor.u32 256, 15
        %1784 = vbcast.lane.b32.xlu0 %v386, %s1783
        %v1785 = vpop.permute.xlu0 %1784
        %s1787 = sor.u32 256, 7
        %1788 = vbcast.lane.b32.xlu0 %v397, %s1787
        %v1789 = vpop.permute.xlu0 %1788
        %s1791 = sor.u32 256, 15
        %1792 = vbcast.lane.b32.xlu0 %v397, %s1791
        %v1793 = vpop.permute.xlu0 %1792
        %s1795 = sor.u32 256, 7
        %1796 = vbcast.lane.b32.xlu0 %v408, %s1795
        %v1797 = vpop.permute.xlu0 %1796
        %s1799 = sor.u32 256, 15
        %1800 = vbcast.lane.b32.xlu0 %v408, %s1799
        %v1801 = vpop.permute.xlu0 %1800
        %s1803 = sor.u32 256, 7
        %1804 = vbcast.lane.b32.xlu0 %v419, %s1803
        %v1805 = vpop.permute.xlu0 %1804
        %s1807 = sor.u32 256, 15
        %1808 = vbcast.lane.b32.xlu0 %v419, %s1807
        %v1809 = vpop.permute.xlu0 %1808
        %s1811 = sor.u32 256, 7
        %1812 = vbcast.lane.b32.xlu0 %v430, %s1811
        %v1813 = vpop.permute.xlu0 %1812
        %s1815 = sor.u32 256, 15
        %1816 = vbcast.lane.b32.xlu0 %v430, %s1815
        %v1817 = vpop.permute.xlu0 %1816
        %s1819 = sor.u32 256, 7
        %1820 = vbcast.lane.b32.xlu0 %v441, %s1819
        %v1821 = vpop.permute.xlu0 %1820
        %s1823 = sor.u32 256, 15
        %1824 = vbcast.lane.b32.xlu0 %v441, %s1823
        %v1825 = vpop.permute.xlu0 %1824
        %s1827 = sor.u32 256, 7
        %1828 = vbcast.lane.b32.xlu0 %v452, %s1827
        %v1829 = vpop.permute.xlu0 %1828
        %s1831 = sor.u32 256, 15
        %1832 = vbcast.lane.b32.xlu0 %v452, %s1831
        %v1833 = vpop.permute.xlu0 %1832
        %s1835 = sor.u32 256, 7
        %1836 = vbcast.lane.b32.xlu0 %v463, %s1835
        %v1837 = vpop.permute.xlu0 %1836
        %s1839 = sor.u32 256, 15
        %1840 = vbcast.lane.b32.xlu0 %v463, %s1839
        %v1841 = vpop.permute.xlu0 %1840
        %s1843 = sor.u32 256, 7
        %1844 = vbcast.lane.b32.xlu0 %v474, %s1843
        %v1845 = vpop.permute.xlu0 %1844
        %s1847 = sor.u32 256, 15
        %1848 = vbcast.lane.b32.xlu0 %v474, %s1847
        %v1849 = vpop.permute.xlu0 %1848
        %s1851 = sor.u32 256, 7
        %1852 = vbcast.lane.b32.xlu0 %v485, %s1851
        %v1853 = vpop.permute.xlu0 %1852
        %s1855 = sor.u32 256, 15
        %1856 = vbcast.lane.b32.xlu0 %v485, %s1855
        %v1857 = vpop.permute.xlu0 %1856
        %s1859 = sor.u32 256, 7
        %1860 = vbcast.lane.b32.xlu0 %v496, %s1859
        %v1861 = vpop.permute.xlu0 %1860
        %s1863 = sor.u32 256, 15
        %1864 = vbcast.lane.b32.xlu0 %v496, %s1863
        %v1865 = vpop.permute.xlu0 %1864
        %s1867 = sor.u32 256, 7
        %1868 = vbcast.lane.b32.xlu0 %v507, %s1867
        %v1869 = vpop.permute.xlu0 %1868
        %s1871 = sor.u32 256, 15
        %1872 = vbcast.lane.b32.xlu0 %v507, %s1871
        %v1873 = vpop.permute.xlu0 %1872
        %s1875 = sor.u32 256, 7
        %1876 = vbcast.lane.b32.xlu0 %v518, %s1875
        %v1877 = vpop.permute.xlu0 %1876
        %s1879 = sor.u32 256, 15
        %1880 = vbcast.lane.b32.xlu0 %v518, %s1879
        %v1881 = vpop.permute.xlu0 %1880
        %s1883 = sor.u32 256, 7
        %1884 = vbcast.lane.b32.xlu0 %v529, %s1883
        %v1885 = vpop.permute.xlu0 %1884
        %s1887 = sor.u32 256, 15
        %1888 = vbcast.lane.b32.xlu0 %v529, %s1887
        %v1889 = vpop.permute.xlu0 %1888
        %s1891 = sor.u32 256, 7
        %1892 = vbcast.lane.b32.xlu0 %v540, %s1891
        %v1893 = vpop.permute.xlu0 %1892
        %s1895 = sor.u32 256, 15
        %1896 = vbcast.lane.b32.xlu0 %v540, %s1895
        %v1897 = vpop.permute.xlu0 %1896
        %s1899 = sor.u32 256, 7
        %1900 = vbcast.lane.b32.xlu0 %v551, %s1899
        %v1901 = vpop.permute.xlu0 %1900
        %s1903 = sor.u32 256, 15
        %1904 = vbcast.lane.b32.xlu0 %v551, %s1903
        %v1905 = vpop.permute.xlu0 %1904
        %s1907 = sor.u32 256, 7
        %1908 = vbcast.lane.b32.xlu0 %v562, %s1907
        %v1909 = vpop.permute.xlu0 %1908
        %s1911 = sor.u32 256, 15
        %1912 = vbcast.lane.b32.xlu0 %v562, %s1911
        %v1913 = vpop.permute.xlu0 %1912
        %s1915 = sor.u32 256, 16
        %1916 = vbcast.lane.b32.xlu0 %v309, %s1915
        %v1917 = vpop.permute.xlu0 %1916
        %s1919 = sor.u32 256, 16
        %1920 = vbcast.lane.b32.xlu0 %v320, %s1919
        %v1921 = vpop.permute.xlu0 %1920
        %s1923 = sor.u32 256, 16
        %1924 = vbcast.lane.b32.xlu0 %v331, %s1923
        %v1925 = vpop.permute.xlu0 %1924
        %s1927 = sor.u32 256, 16
        %1928 = vbcast.lane.b32.xlu0 %v342, %s1927
        %v1929 = vpop.permute.xlu0 %1928
        %s1931 = sor.u32 256, 16
        %1932 = vbcast.lane.b32.xlu0 %v353, %s1931
        %v1933 = vpop.permute.xlu0 %1932
        %s1935 = sor.u32 256, 16
        %1936 = vbcast.lane.b32.xlu0 %v364, %s1935
        %v1937 = vpop.permute.xlu0 %1936
        %s1939 = sor.u32 256, 16
        %1940 = vbcast.lane.b32.xlu0 %v375, %s1939
        %v1941 = vpop.permute.xlu0 %1940
        %s1943 = sor.u32 256, 16
        %1944 = vbcast.lane.b32.xlu0 %v386, %s1943
        %v1945 = vpop.permute.xlu0 %1944
        %s1947 = sor.u32 256, 16
        %1948 = vbcast.lane.b32.xlu0 %v397, %s1947
        %v1949 = vpop.permute.xlu0 %1948
        %s1951 = sor.u32 256, 16
        %1952 = vbcast.lane.b32.xlu0 %v408, %s1951
        %v1953 = vpop.permute.xlu0 %1952
        %s1955 = sor.u32 256, 16
        %1956 = vbcast.lane.b32.xlu0 %v419, %s1955
        %v1957 = vpop.permute.xlu0 %1956
        %s1959 = sor.u32 256, 16
        %1960 = vbcast.lane.b32.xlu0 %v430, %s1959
        %v1961 = vpop.permute.xlu0 %1960
        %s1963 = sor.u32 256, 16
        %1964 = vbcast.lane.b32.xlu0 %v441, %s1963
        %v1965 = vpop.permute.xlu0 %1964
        %s1967 = sor.u32 256, 16
        %1968 = vbcast.lane.b32.xlu0 %v452, %s1967
        %v1969 = vpop.permute.xlu0 %1968
        %s1971 = sor.u32 256, 16
        %1972 = vbcast.lane.b32.xlu0 %v463, %s1971
        %v1973 = vpop.permute.xlu0 %1972
        %s1975 = sor.u32 256, 16
        %1976 = vbcast.lane.b32.xlu0 %v474, %s1975
        %v1977 = vpop.permute.xlu0 %1976
        %s1979 = sor.u32 256, 16
        %1980 = vbcast.lane.b32.xlu0 %v485, %s1979
        %v1981 = vpop.permute.xlu0 %1980
        %s1983 = sor.u32 256, 16
        %1984 = vbcast.lane.b32.xlu0 %v496, %s1983
        %v1985 = vpop.permute.xlu0 %1984
        %s1987 = sor.u32 256, 16
        %1988 = vbcast.lane.b32.xlu0 %v507, %s1987
        %v1989 = vpop.permute.xlu0 %1988
        %s1991 = sor.u32 256, 16
        %1992 = vbcast.lane.b32.xlu0 %v518, %s1991
        %v1993 = vpop.permute.xlu0 %1992
        %s1995 = sor.u32 256, 16
        %1996 = vbcast.lane.b32.xlu0 %v529, %s1995
        %v1997 = vpop.permute.xlu0 %1996
        %s1999 = sor.u32 256, 16
        %2000 = vbcast.lane.b32.xlu0 %v540, %s1999
        %v2001 = vpop.permute.xlu0 %2000
        %s2003 = sor.u32 256, 16
        %2004 = vbcast.lane.b32.xlu0 %v551, %s2003
        %v2005 = vpop.permute.xlu0 %2004
        %s2007 = sor.u32 256, 16
        %2008 = vbcast.lane.b32.xlu0 %v562, %s2007
        %v2009 = vpop.permute.xlu0 %2008
        %vm2010 = vcmask 7168
        %v2011 = vsel %vm2010, %v312, %v573
        %v2012 = vsel %vm2010, %v316, %v577
        %v2013 = vsel %vm2010, %v323, %v581
        %v2014 = vsel %vm2010, %v327, %v585
        %v2015 = vsel %vm2010, %v334, %v589
        %v2016 = vsel %vm2010, %v338, %v593
        %v2017 = vsel %vm2010, %v345, %v597
        %v2018 = vsel %vm2010, %v349, %v601
        %v2019 = vsel %vm2010, %v356, %v605
        %v2020 = vsel %vm2010, %v360, %v609
        %v2021 = vsel %vm2010, %v367, %v613
        %v2022 = vsel %vm2010, %v371, %v617
        %v2023 = vsel %vm2010, %v378, %v621
        %v2024 = vsel %vm2010, %v382, %v625
        %v2025 = vsel %vm2010, %v389, %v629
        %v2026 = vsel %vm2010, %v393, %v633
        %v2027 = vsel %vm2010, %v400, %v637
        %v2028 = vsel %vm2010, %v404, %v641
        %v2029 = vsel %vm2010, %v411, %v645
        %v2030 = vsel %vm2010, %v415, %v649
        %v2031 = vsel %vm2010, %v422, %v653
        %v2032 = vsel %vm2010, %v426, %v657
        %v2033 = vsel %vm2010, %v433, %v661
        %v2034 = vsel %vm2010, %v437, %v665
        %v2035 = vsel %vm2010, %v444, %v669
        %v2036 = vsel %vm2010, %v448, %v673
        %v2037 = vsel %vm2010, %v455, %v677
        %v2038 = vsel %vm2010, %v459, %v681
        %v2039 = vsel %vm2010, %v466, %v685
        %v2040 = vsel %vm2010, %v470, %v689
        %v2041 = vsel %vm2010, %v477, %v693
        %v2042 = vsel %vm2010, %v481, %v697
        %v2043 = vsel %vm2010, %v488, %v701
        %v2044 = vsel %vm2010, %v492, %v705
        %v2045 = vsel %vm2010, %v499, %v709
        %v2046 = vsel %vm2010, %v503, %v713
        %v2047 = vsel %vm2010, %v510, %v717
        %v2048 = vsel %vm2010, %v514, %v721
        %v2049 = vsel %vm2010, %v521, %v725
        %v2050 = vsel %vm2010, %v525, %v729
        %v2051 = vsel %vm2010, %v532, %v733
        %v2052 = vsel %vm2010, %v536, %v737
        %v2053 = vsel %vm2010, %v543, %v741
        %v2054 = vsel %vm2010, %v547, %v745
        %v2055 = vsel %vm2010, %v554, %v749
        %v2056 = vsel %vm2010, %v558, %v753
        %v2057 = vsel %vm2010, %v565, %v757
        %v2058 = vsel %vm2010, %v569, %v761
        %vm2059 = vcmask 15360
        %v2060 = vsel %vm2059, %v2011, %v765
        %v2061 = vsel %vm2059, %v2012, %v769
        %v2062 = vsel %vm2059, %v2013, %v773
        %v2063 = vsel %vm2059, %v2014, %v777
        %v2064 = vsel %vm2059, %v2015, %v781
        %v2065 = vsel %vm2059, %v2016, %v785
        %v2066 = vsel %vm2059, %v2017, %v789
        %v2067 = vsel %vm2059, %v2018, %v793
        %v2068 = vsel %vm2059, %v2019, %v797
        %v2069 = vsel %vm2059, %v2020, %v801
        %v2070 = vsel %vm2059, %v2021, %v805
        %v2071 = vsel %vm2059, %v2022, %v809
        %v2072 = vsel %vm2059, %v2023, %v813
        %v2073 = vsel %vm2059, %v2024, %v817
        %v2074 = vsel %vm2059, %v2025, %v821
        %v2075 = vsel %vm2059, %v2026, %v825
        %v2076 = vsel %vm2059, %v2027, %v829
        %v2077 = vsel %vm2059, %v2028, %v833
        %v2078 = vsel %vm2059, %v2029, %v837
        %v2079 = vsel %vm2059, %v2030, %v841
        %v2080 = vsel %vm2059, %v2031, %v845
        %v2081 = vsel %vm2059, %v2032, %v849
        %v2082 = vsel %vm2059, %v2033, %v853
        %v2083 = vsel %vm2059, %v2034, %v857
        %v2084 = vsel %vm2059, %v2035, %v861
        %v2085 = vsel %vm2059, %v2036, %v865
        %v2086 = vsel %vm2059, %v2037, %v869
        %v2087 = vsel %vm2059, %v2038, %v873
        %v2088 = vsel %vm2059, %v2039, %v877
        %v2089 = vsel %vm2059, %v2040, %v881
        %v2090 = vsel %vm2059, %v2041, %v885
        %v2091 = vsel %vm2059, %v2042, %v889
        %v2092 = vsel %vm2059, %v2043, %v893
        %v2093 = vsel %vm2059, %v2044, %v897
        %v2094 = vsel %vm2059, %v2045, %v901
        %v2095 = vsel %vm2059, %v2046, %v905
        %v2096 = vsel %vm2059, %v2047, %v909
        %v2097 = vsel %vm2059, %v2048, %v913
        %v2098 = vsel %vm2059, %v2049, %v917
        %v2099 = vsel %vm2059, %v2050, %v921
        %v2100 = vsel %vm2059, %v2051, %v925
        %v2101 = vsel %vm2059, %v2052, %v929
        %v2102 = vsel %vm2059, %v2053, %v933
        %v2103 = vsel %vm2059, %v2054, %v937
        %v2104 = vsel %vm2059, %v2055, %v941
        %v2105 = vsel %vm2059, %v2056, %v945
        %v2106 = vsel %vm2059, %v2057, %v949
        %v2107 = vsel %vm2059, %v2058, %v953
        %vm2108 = vcmask 23552
        %v2109 = vsel %vm2108, %v2060, %v957
        %v2110 = vsel %vm2108, %v2061, %v961
        %v2111 = vsel %vm2108, %v2062, %v965
        %v2112 = vsel %vm2108, %v2063, %v969
        %v2113 = vsel %vm2108, %v2064, %v973
        %v2114 = vsel %vm2108, %v2065, %v977
        %v2115 = vsel %vm2108, %v2066, %v981
        %v2116 = vsel %vm2108, %v2067, %v985
        %v2117 = vsel %vm2108, %v2068, %v989
        %v2118 = vsel %vm2108, %v2069, %v993
        %v2119 = vsel %vm2108, %v2070, %v997
        %v2120 = vsel %vm2108, %v2071, %v1001
        %v2121 = vsel %vm2108, %v2072, %v1005
        %v2122 = vsel %vm2108, %v2073, %v1009
        %v2123 = vsel %vm2108, %v2074, %v1013
        %v2124 = vsel %vm2108, %v2075, %v1017
        %v2125 = vsel %vm2108, %v2076, %v1021
        %v2126 = vsel %vm2108, %v2077, %v1025
        %v2127 = vsel %vm2108, %v2078, %v1029
        %v2128 = vsel %vm2108, %v2079, %v1033
        %v2129 = vsel %vm2108, %v2080, %v1037
        %v2130 = vsel %vm2108, %v2081, %v1041
        %v2131 = vsel %vm2108, %v2082, %v1045
        %v2132 = vsel %vm2108, %v2083, %v1049
        %v2133 = vsel %vm2108, %v2084, %v1053
        %v2134 = vsel %vm2108, %v2085, %v1057
        %v2135 = vsel %vm2108, %v2086, %v1061
        %v2136 = vsel %vm2108, %v2087, %v1065
        %v2137 = vsel %vm2108, %v2088, %v1069
        %v2138 = vsel %vm2108, %v2089, %v1073
        %v2139 = vsel %vm2108, %v2090, %v1077
        %v2140 = vsel %vm2108, %v2091, %v1081
        %v2141 = vsel %vm2108, %v2092, %v1085
        %v2142 = vsel %vm2108, %v2093, %v1089
        %v2143 = vsel %vm2108, %v2094, %v1093
        %v2144 = vsel %vm2108, %v2095, %v1097
        %v2145 = vsel %vm2108, %v2096, %v1101
        %v2146 = vsel %vm2108, %v2097, %v1105
        %v2147 = vsel %vm2108, %v2098, %v1109
        %v2148 = vsel %vm2108, %v2099, %v1113
        %v2149 = vsel %vm2108, %v2100, %v1117
        %v2150 = vsel %vm2108, %v2101, %v1121
        %v2151 = vsel %vm2108, %v2102, %v1125
        %v2152 = vsel %vm2108, %v2103, %v1129
        %v2153 = vsel %vm2108, %v2104, %v1133
        %v2154 = vsel %vm2108, %v2105, %v1137
        %v2155 = vsel %vm2108, %v2106, %v1141
        %v2156 = vsel %vm2108, %v2107, %v1145
        %v2157 = vsel %vm289, %v2109, %v1149
        %v2158 = vsel %vm289, %v2110, %v1153
        %v2159 = vsel %vm289, %v2111, %v1157
        %v2160 = vsel %vm289, %v2112, %v1161
        %v2161 = vsel %vm289, %v2113, %v1165
        %v2162 = vsel %vm289, %v2114, %v1169
        %v2163 = vsel %vm289, %v2115, %v1173
        %v2164 = vsel %vm289, %v2116, %v1177
        %v2165 = vsel %vm289, %v2117, %v1181
        %v2166 = vsel %vm289, %v2118, %v1185
        %v2167 = vsel %vm289, %v2119, %v1189
        %v2168 = vsel %vm289, %v2120, %v1193
        %v2169 = vsel %vm289, %v2121, %v1197
        %v2170 = vsel %vm289, %v2122, %v1201
        %v2171 = vsel %vm289, %v2123, %v1205
        %v2172 = vsel %vm289, %v2124, %v1209
        %v2173 = vsel %vm289, %v2125, %v1213
        %v2174 = vsel %vm289, %v2126, %v1217
        %v2175 = vsel %vm289, %v2127, %v1221
        %v2176 = vsel %vm289, %v2128, %v1225
        %v2177 = vsel %vm289, %v2129, %v1229
        %v2178 = vsel %vm289, %v2130, %v1233
        %v2179 = vsel %vm289, %v2131, %v1237
        %v2180 = vsel %vm289, %v2132, %v1241
        %v2181 = vsel %vm289, %v2133, %v1245
        %v2182 = vsel %vm289, %v2134, %v1249
        %v2183 = vsel %vm289, %v2135, %v1253
        %v2184 = vsel %vm289, %v2136, %v1257
        %v2185 = vsel %vm289, %v2137, %v1261
        %v2186 = vsel %vm289, %v2138, %v1265
        %v2187 = vsel %vm289, %v2139, %v1269
        %v2188 = vsel %vm289, %v2140, %v1273
        %v2189 = vsel %vm289, %v2141, %v1277
        %v2190 = vsel %vm289, %v2142, %v1281
        %v2191 = vsel %vm289, %v2143, %v1285
        %v2192 = vsel %vm289, %v2144, %v1289
        %v2193 = vsel %vm289, %v2145, %v1293
        %v2194 = vsel %vm289, %v2146, %v1297
        %v2195 = vsel %vm289, %v2147, %v1301
        %v2196 = vsel %vm289, %v2148, %v1305
        %v2197 = vsel %vm289, %v2149, %v1309
        %v2198 = vsel %vm289, %v2150, %v1313
        %v2199 = vsel %vm289, %v2151, %v1317
        %v2200 = vsel %vm289, %v2152, %v1321
        %v2201 = vsel %vm289, %v2153, %v1325
        %v2202 = vsel %vm289, %v2154, %v1329
        %v2203 = vsel %vm289, %v2155, %v1333
        %v2204 = vsel %vm289, %v2156, %v1337
        %vm2205 = vcmask 39936
        %v2206 = vsel %vm2205, %v2157, %v1341
        %v2207 = vsel %vm2205, %v2158, %v1345
        %v2208 = vsel %vm2205, %v2159, %v1349
        %v2209 = vsel %vm2205, %v2160, %v1353
        %v2210 = vsel %vm2205, %v2161, %v1357
        %v2211 = vsel %vm2205, %v2162, %v1361
        %v2212 = vsel %vm2205, %v2163, %v1365
        %v2213 = vsel %vm2205, %v2164, %v1369
        %v2214 = vsel %vm2205, %v2165, %v1373
        %v2215 = vsel %vm2205, %v2166, %v1377
        %v2216 = vsel %vm2205, %v2167, %v1381
        %v2217 = vsel %vm2205, %v2168, %v1385
        %v2218 = vsel %vm2205, %v2169, %v1389
        %v2219 = vsel %vm2205, %v2170, %v1393
        %v2220 = vsel %vm2205, %v2171, %v1397
        %v2221 = vsel %vm2205, %v2172, %v1401
        %v2222 = vsel %vm2205, %v2173, %v1405
        %v2223 = vsel %vm2205, %v2174, %v1409
        %v2224 = vsel %vm2205, %v2175, %v1413
        %v2225 = vsel %vm2205, %v2176, %v1417
        %v2226 = vsel %vm2205, %v2177, %v1421
        %v2227 = vsel %vm2205, %v2178, %v1425
        %v2228 = vsel %vm2205, %v2179, %v1429
        %v2229 = vsel %vm2205, %v2180, %v1433
        %v2230 = vsel %vm2205, %v2181, %v1437
        %v2231 = vsel %vm2205, %v2182, %v1441
        %v2232 = vsel %vm2205, %v2183, %v1445
        %v2233 = vsel %vm2205, %v2184, %v1449
        %v2234 = vsel %vm2205, %v2185, %v1453
        %v2235 = vsel %vm2205, %v2186, %v1457
        %v2236 = vsel %vm2205, %v2187, %v1461
        %v2237 = vsel %vm2205, %v2188, %v1465
        %v2238 = vsel %vm2205, %v2189, %v1469
        %v2239 = vsel %vm2205, %v2190, %v1473
        %v2240 = vsel %vm2205, %v2191, %v1477
        %v2241 = vsel %vm2205, %v2192, %v1481
        %v2242 = vsel %vm2205, %v2193, %v1485
        %v2243 = vsel %vm2205, %v2194, %v1489
        %v2244 = vsel %vm2205, %v2195, %v1493
        %v2245 = vsel %vm2205, %v2196, %v1497
        %v2246 = vsel %vm2205, %v2197, %v1501
        %v2247 = vsel %vm2205, %v2198, %v1505
        %v2248 = vsel %vm2205, %v2199, %v1509
        %v2249 = vsel %vm2205, %v2200, %v1513
        %v2250 = vsel %vm2205, %v2201, %v1517
        %v2251 = vsel %vm2205, %v2202, %v1521
        %v2252 = vsel %vm2205, %v2203, %v1525
        %v2253 = vsel %vm2205, %v2204, %v1529
        %vm2254 = vcmask 48128
        %v2255 = vsel %vm2254, %v2206, %v1533
        %v2256 = vsel %vm2254, %v2207, %v1537
        %v2257 = vsel %vm2254, %v2208, %v1541
        %v2258 = vsel %vm2254, %v2209, %v1545
        %v2259 = vsel %vm2254, %v2210, %v1549
        %v2260 = vsel %vm2254, %v2211, %v1553
        %v2261 = vsel %vm2254, %v2212, %v1557
        %v2262 = vsel %vm2254, %v2213, %v1561
        %v2263 = vsel %vm2254, %v2214, %v1565
        %v2264 = vsel %vm2254, %v2215, %v1569
        %v2265 = vsel %vm2254, %v2216, %v1573
        %v2266 = vsel %vm2254, %v2217, %v1577
        %v2267 = vsel %vm2254, %v2218, %v1581
        %v2268 = vsel %vm2254, %v2219, %v1585
        %v2269 = vsel %vm2254, %v2220, %v1589
        %v2270 = vsel %vm2254, %v2221, %v1593
        %v2271 = vsel %vm2254, %v2222, %v1597
        %v2272 = vsel %vm2254, %v2223, %v1601
        %v2273 = vsel %vm2254, %v2224, %v1605
        %v2274 = vsel %vm2254, %v2225, %v1609
        %v2275 = vsel %vm2254, %v2226, %v1613
        %v2276 = vsel %vm2254, %v2227, %v1617
        %v2277 = vsel %vm2254, %v2228, %v1621
        %v2278 = vsel %vm2254, %v2229, %v1625
        %v2279 = vsel %vm2254, %v2230, %v1629
        %v2280 = vsel %vm2254, %v2231, %v1633
        %v2281 = vsel %vm2254, %v2232, %v1637
        %v2282 = vsel %vm2254, %v2233, %v1641
        %v2283 = vsel %vm2254, %v2234, %v1645
        %v2284 = vsel %vm2254, %v2235, %v1649
        %v2285 = vsel %vm2254, %v2236, %v1653
        %v2286 = vsel %vm2254, %v2237, %v1657
        %v2287 = vsel %vm2254, %v2238, %v1661
        %v2288 = vsel %vm2254, %v2239, %v1665
        %v2289 = vsel %vm2254, %v2240, %v1669
        %v2290 = vsel %vm2254, %v2241, %v1673
        %v2291 = vsel %vm2254, %v2242, %v1677
        %v2292 = vsel %vm2254, %v2243, %v1681
        %v2293 = vsel %vm2254, %v2244, %v1685
        %v2294 = vsel %vm2254, %v2245, %v1689
        %v2295 = vsel %vm2254, %v2246, %v1693
        %v2296 = vsel %vm2254, %v2247, %v1697
        %v2297 = vsel %vm2254, %v2248, %v1701
        %v2298 = vsel %vm2254, %v2249, %v1705
        %v2299 = vsel %vm2254, %v2250, %v1709
        %v2300 = vsel %vm2254, %v2251, %v1713
        %v2301 = vsel %vm2254, %v2252, %v1717
        %v2302 = vsel %vm2254, %v2253, %v1721
        %vm2303 = vcmask 56320
        %v2304 = vsel %vm2303, %v2255, %v1725
        %v2305 = vsel %vm2303, %v2256, %v1729
        %v2306 = vsel %vm2303, %v2257, %v1733
        %v2307 = vsel %vm2303, %v2258, %v1737
        %v2308 = vsel %vm2303, %v2259, %v1741
        %v2309 = vsel %vm2303, %v2260, %v1745
        %v2310 = vsel %vm2303, %v2261, %v1749
        %v2311 = vsel %vm2303, %v2262, %v1753
        %v2312 = vsel %vm2303, %v2263, %v1757
        %v2313 = vsel %vm2303, %v2264, %v1761
        %v2314 = vsel %vm2303, %v2265, %v1765
        %v2315 = vsel %vm2303, %v2266, %v1769
        %v2316 = vsel %vm2303, %v2267, %v1773
        %v2317 = vsel %vm2303, %v2268, %v1777
        %v2318 = vsel %vm2303, %v2269, %v1781
        %v2319 = vsel %vm2303, %v2270, %v1785
        %v2320 = vsel %vm2303, %v2271, %v1789
        %v2321 = vsel %vm2303, %v2272, %v1793
        %v2322 = vsel %vm2303, %v2273, %v1797
        %v2323 = vsel %vm2303, %v2274, %v1801
        %v2324 = vsel %vm2303, %v2275, %v1805
        %v2325 = vsel %vm2303, %v2276, %v1809
        %v2326 = vsel %vm2303, %v2277, %v1813
        %v2327 = vsel %vm2303, %v2278, %v1817
        %v2328 = vsel %vm2303, %v2279, %v1821
        %v2329 = vsel %vm2303, %v2280, %v1825
        %v2330 = vsel %vm2303, %v2281, %v1829
        %v2331 = vsel %vm2303, %v2282, %v1833
        %v2332 = vsel %vm2303, %v2283, %v1837
        %v2333 = vsel %vm2303, %v2284, %v1841
        %v2334 = vsel %vm2303, %v2285, %v1845
        %v2335 = vsel %vm2303, %v2286, %v1849
        %v2336 = vsel %vm2303, %v2287, %v1853
        %v2337 = vsel %vm2303, %v2288, %v1857
        %v2338 = vsel %vm2303, %v2289, %v1861
        %v2339 = vsel %vm2303, %v2290, %v1865
        %v2340 = vsel %vm2303, %v2291, %v1869
        %v2341 = vsel %vm2303, %v2292, %v1873
        %v2342 = vsel %vm2303, %v2293, %v1877
        %v2343 = vsel %vm2303, %v2294, %v1881
        %v2344 = vsel %vm2303, %v2295, %v1885
        %v2345 = vsel %vm2303, %v2296, %v1889
        %v2346 = vsel %vm2303, %v2297, %v1893
        %v2347 = vsel %vm2303, %v2298, %v1897
        %v2348 = vsel %vm2303, %v2299, %v1901
        %v2349 = vsel %vm2303, %v2300, %v1905
        %v2350 = vsel %vm2303, %v2301, %v1909
        %v2351 = vsel %vm2303, %v2302, %v1913
        %vm2352 = vcmask 64512
        %v2353 = vsel %vm2352, %v2304, %v316
        %v2354 = vsel %vm2352, %v2305, %v1917
        %v2355 = vsel %vm2352, %v2306, %v327
        %v2356 = vsel %vm2352, %v2307, %v1921
        %v2357 = vsel %vm2352, %v2308, %v338
        %v2358 = vsel %vm2352, %v2309, %v1925
        %v2359 = vsel %vm2352, %v2310, %v349
        %v2360 = vsel %vm2352, %v2311, %v1929
        %v2361 = vsel %vm2352, %v2312, %v360
        %v2362 = vsel %vm2352, %v2313, %v1933
        %v2363 = vsel %vm2352, %v2314, %v371
        %v2364 = vsel %vm2352, %v2315, %v1937
        %v2365 = vsel %vm2352, %v2316, %v382
        %v2366 = vsel %vm2352, %v2317, %v1941
        %v2367 = vsel %vm2352, %v2318, %v393
        %v2368 = vsel %vm2352, %v2319, %v1945
        %v2369 = vsel %vm2352, %v2320, %v404
        %v2370 = vsel %vm2352, %v2321, %v1949
        %v2371 = vsel %vm2352, %v2322, %v415
        %v2372 = vsel %vm2352, %v2323, %v1953
        %v2373 = vsel %vm2352, %v2324, %v426
        %v2374 = vsel %vm2352, %v2325, %v1957
        %v2375 = vsel %vm2352, %v2326, %v437
        %v2376 = vsel %vm2352, %v2327, %v1961
        %v2377 = vsel %vm2352, %v2328, %v448
        %v2378 = vsel %vm2352, %v2329, %v1965
        %v2379 = vsel %vm2352, %v2330, %v459
        %v2380 = vsel %vm2352, %v2331, %v1969
        %v2381 = vsel %vm2352, %v2332, %v470
        %v2382 = vsel %vm2352, %v2333, %v1973
        %v2383 = vsel %vm2352, %v2334, %v481
        %v2384 = vsel %vm2352, %v2335, %v1977
        %v2385 = vsel %vm2352, %v2336, %v492
        %v2386 = vsel %vm2352, %v2337, %v1981
        %v2387 = vsel %vm2352, %v2338, %v503
        %v2388 = vsel %vm2352, %v2339, %v1985
        %v2389 = vsel %vm2352, %v2340, %v514
        %v2390 = vsel %vm2352, %v2341, %v1989
        %v2391 = vsel %vm2352, %v2342, %v525
        %v2392 = vsel %vm2352, %v2343, %v1993
        %v2393 = vsel %vm2352, %v2344, %v536
        %v2394 = vsel %vm2352, %v2345, %v1997
        %v2395 = vsel %vm2352, %v2346, %v547
        %v2396 = vsel %vm2352, %v2347, %v2001
        %v2397 = vsel %vm2352, %v2348, %v558
        %v2398 = vsel %vm2352, %v2349, %v2005
        %v2399 = vsel %vm2352, %v2350, %v569
        %v2400 = vsel %vm2352, %v2351, %v2009
        %2433 = vrot.lane.b32.xlu0 %v2355, 9
        %v2434 = vpop.permute.xlu0 %2433
        %2435 = vrot.lane.b32.xlu0 %v2356, 9
        %v2436 = vpop.permute.xlu0 %2435
        %2437 = vrot.lane.b32.xlu0 %v2357, 9
        %v2438 = vpop.permute.xlu0 %2437
        %2439 = vrot.lane.b32.xlu0 %v2358, 9
        %v2440 = vpop.permute.xlu0 %2439
        %2441 = vrot.lane.b32.xlu0 %v2359, 9
        %v2442 = vpop.permute.xlu0 %2441
        %2443 = vrot.lane.b32.xlu0 %v2360, 9
        %v2444 = vpop.permute.xlu0 %2443
        %2445 = vrot.lane.b32.xlu0 %v2361, 9
        %v2446 = vpop.permute.xlu0 %2445
        %2447 = vrot.lane.b32.xlu0 %v2362, 9
        %v2448 = vpop.permute.xlu0 %2447
        %2449 = vrot.lane.b32.xlu0 %v2363, 9
        %v2450 = vpop.permute.xlu0 %2449
        %2451 = vrot.lane.b32.xlu0 %v2364, 9
        %v2452 = vpop.permute.xlu0 %2451
        %2453 = vrot.lane.b32.xlu0 %v2365, 9
        %v2454 = vpop.permute.xlu0 %2453
        %2455 = vrot.lane.b32.xlu0 %v2366, 9
        %v2456 = vpop.permute.xlu0 %2455
        %2457 = vrot.lane.b32.xlu0 %v2367, 9
        %v2458 = vpop.permute.xlu0 %2457
        %2459 = vrot.lane.b32.xlu0 %v2368, 9
        %v2460 = vpop.permute.xlu0 %2459
        %2461 = vrot.lane.b32.xlu0 %v2369, 9
        %v2462 = vpop.permute.xlu0 %2461
        %2463 = vrot.lane.b32.xlu0 %v2370, 9
        %v2464 = vpop.permute.xlu0 %2463
        %2465 = vrot.lane.b32.xlu0 %v2371, 9
        %v2466 = vpop.permute.xlu0 %2465
        %2467 = vrot.lane.b32.xlu0 %v2372, 9
        %v2468 = vpop.permute.xlu0 %2467
        %2469 = vrot.lane.b32.xlu0 %v2373, 9
        %v2470 = vpop.permute.xlu0 %2469
        %2471 = vrot.lane.b32.xlu0 %v2374, 9
        %v2472 = vpop.permute.xlu0 %2471
        %2473 = vrot.lane.b32.xlu0 %v2375, 9
        %v2474 = vpop.permute.xlu0 %2473
        %2475 = vrot.lane.b32.xlu0 %v2376, 9
        %v2476 = vpop.permute.xlu0 %2475
        %2477 = vrot.lane.b32.xlu0 %v2377, 9
        %v2478 = vpop.permute.xlu0 %2477
        %2479 = vrot.lane.b32.xlu0 %v2378, 9
        %v2480 = vpop.permute.xlu0 %2479
        %2481 = vrot.lane.b32.xlu0 %v2379, 9
        %v2482 = vpop.permute.xlu0 %2481
        %2483 = vrot.lane.b32.xlu0 %v2380, 9
        %v2484 = vpop.permute.xlu0 %2483
        %2485 = vrot.lane.b32.xlu0 %v2381, 9
        %v2486 = vpop.permute.xlu0 %2485
        %2487 = vrot.lane.b32.xlu0 %v2382, 9
        %v2488 = vpop.permute.xlu0 %2487
        %2489 = vrot.lane.b32.xlu0 %v2383, 9
        %v2490 = vpop.permute.xlu0 %2489
        %2491 = vrot.lane.b32.xlu0 %v2384, 9
        %v2492 = vpop.permute.xlu0 %2491
        %2493 = vrot.lane.b32.xlu0 %v2385, 9
        %v2494 = vpop.permute.xlu0 %2493
        %2495 = vrot.lane.b32.xlu0 %v2386, 9
        %v2496 = vpop.permute.xlu0 %2495
        %2531 = vrot.lane.b32.xlu0 %v2357, 18
        %v2532 = vpop.permute.xlu0 %2531
        %2533 = vrot.lane.b32.xlu0 %v2358, 18
        %v2534 = vpop.permute.xlu0 %2533
        %2535 = vrot.lane.b32.xlu0 %v2359, 18
        %v2536 = vpop.permute.xlu0 %2535
        %2537 = vrot.lane.b32.xlu0 %v2360, 18
        %v2538 = vpop.permute.xlu0 %2537
        %2539 = vrot.lane.b32.xlu0 %v2361, 18
        %v2540 = vpop.permute.xlu0 %2539
        %2541 = vrot.lane.b32.xlu0 %v2362, 18
        %v2542 = vpop.permute.xlu0 %2541
        %2543 = vrot.lane.b32.xlu0 %v2363, 18
        %v2544 = vpop.permute.xlu0 %2543
        %2545 = vrot.lane.b32.xlu0 %v2364, 18
        %v2546 = vpop.permute.xlu0 %2545
        %2547 = vrot.lane.b32.xlu0 %v2365, 18
        %v2548 = vpop.permute.xlu0 %2547
        %2549 = vrot.lane.b32.xlu0 %v2366, 18
        %v2550 = vpop.permute.xlu0 %2549
        %2551 = vrot.lane.b32.xlu0 %v2367, 18
        %v2552 = vpop.permute.xlu0 %2551
        %2553 = vrot.lane.b32.xlu0 %v2368, 18
        %v2554 = vpop.permute.xlu0 %2553
        %2555 = vrot.lane.b32.xlu0 %v2369, 18
        %v2556 = vpop.permute.xlu0 %2555
        %2557 = vrot.lane.b32.xlu0 %v2370, 18
        %v2558 = vpop.permute.xlu0 %2557
        %2559 = vrot.lane.b32.xlu0 %v2371, 18
        %v2560 = vpop.permute.xlu0 %2559
        %2561 = vrot.lane.b32.xlu0 %v2372, 18
        %v2562 = vpop.permute.xlu0 %2561
        %2563 = vrot.lane.b32.xlu0 %v2373, 18
        %v2564 = vpop.permute.xlu0 %2563
        %2565 = vrot.lane.b32.xlu0 %v2374, 18
        %v2566 = vpop.permute.xlu0 %2565
        %2567 = vrot.lane.b32.xlu0 %v2375, 18
        %v2568 = vpop.permute.xlu0 %2567
        %2569 = vrot.lane.b32.xlu0 %v2376, 18
        %v2570 = vpop.permute.xlu0 %2569
        %2571 = vrot.lane.b32.xlu0 %v2377, 18
        %v2572 = vpop.permute.xlu0 %2571
        %2573 = vrot.lane.b32.xlu0 %v2378, 18
        %v2574 = vpop.permute.xlu0 %2573
        %2575 = vrot.lane.b32.xlu0 %v2379, 18
        %v2576 = vpop.permute.xlu0 %2575
        %2577 = vrot.lane.b32.xlu0 %v2380, 18
        %v2578 = vpop.permute.xlu0 %2577
        %2579 = vrot.lane.b32.xlu0 %v2381, 18
        %v2580 = vpop.permute.xlu0 %2579
        %2581 = vrot.lane.b32.xlu0 %v2382, 18
        %v2582 = vpop.permute.xlu0 %2581
        %2583 = vrot.lane.b32.xlu0 %v2383, 18
        %v2584 = vpop.permute.xlu0 %2583
        %2585 = vrot.lane.b32.xlu0 %v2384, 18
        %v2586 = vpop.permute.xlu0 %2585
        %2587 = vrot.lane.b32.xlu0 %v2385, 18
        %v2588 = vpop.permute.xlu0 %2587
        %2589 = vrot.lane.b32.xlu0 %v2386, 18
        %v2590 = vpop.permute.xlu0 %2589
        %2591 = vrot.lane.b32.xlu0 %v2387, 18
        %v2592 = vpop.permute.xlu0 %2591
        %2593 = vrot.lane.b32.xlu0 %v2388, 18
        %v2594 = vpop.permute.xlu0 %2593
        %2629 = vrot.lane.b32.xlu0 %v2359, 27
        %v2630 = vpop.permute.xlu0 %2629
        %2631 = vrot.lane.b32.xlu0 %v2360, 27
        %v2632 = vpop.permute.xlu0 %2631
        %2633 = vrot.lane.b32.xlu0 %v2361, 27
        %v2634 = vpop.permute.xlu0 %2633
        %2635 = vrot.lane.b32.xlu0 %v2362, 27
        %v2636 = vpop.permute.xlu0 %2635
        %2637 = vrot.lane.b32.xlu0 %v2363, 27
        %v2638 = vpop.permute.xlu0 %2637
        %2639 = vrot.lane.b32.xlu0 %v2364, 27
        %v2640 = vpop.permute.xlu0 %2639
        %2641 = vrot.lane.b32.xlu0 %v2365, 27
        %v2642 = vpop.permute.xlu0 %2641
        %2643 = vrot.lane.b32.xlu0 %v2366, 27
        %v2644 = vpop.permute.xlu0 %2643
        %2645 = vrot.lane.b32.xlu0 %v2367, 27
        %v2646 = vpop.permute.xlu0 %2645
        %2647 = vrot.lane.b32.xlu0 %v2368, 27
        %v2648 = vpop.permute.xlu0 %2647
        %2649 = vrot.lane.b32.xlu0 %v2369, 27
        %v2650 = vpop.permute.xlu0 %2649
        %2651 = vrot.lane.b32.xlu0 %v2370, 27
        %v2652 = vpop.permute.xlu0 %2651
        %2653 = vrot.lane.b32.xlu0 %v2371, 27
        %v2654 = vpop.permute.xlu0 %2653
        %2655 = vrot.lane.b32.xlu0 %v2372, 27
        %v2656 = vpop.permute.xlu0 %2655
        %2657 = vrot.lane.b32.xlu0 %v2373, 27
        %v2658 = vpop.permute.xlu0 %2657
        %2659 = vrot.lane.b32.xlu0 %v2374, 27
        %v2660 = vpop.permute.xlu0 %2659
        %2661 = vrot.lane.b32.xlu0 %v2375, 27
        %v2662 = vpop.permute.xlu0 %2661
        %2663 = vrot.lane.b32.xlu0 %v2376, 27
        %v2664 = vpop.permute.xlu0 %2663
        %2665 = vrot.lane.b32.xlu0 %v2377, 27
        %v2666 = vpop.permute.xlu0 %2665
        %2667 = vrot.lane.b32.xlu0 %v2378, 27
        %v2668 = vpop.permute.xlu0 %2667
        %2669 = vrot.lane.b32.xlu0 %v2379, 27
        %v2670 = vpop.permute.xlu0 %2669
        %2671 = vrot.lane.b32.xlu0 %v2380, 27
        %v2672 = vpop.permute.xlu0 %2671
        %2673 = vrot.lane.b32.xlu0 %v2381, 27
        %v2674 = vpop.permute.xlu0 %2673
        %2675 = vrot.lane.b32.xlu0 %v2382, 27
        %v2676 = vpop.permute.xlu0 %2675
        %2677 = vrot.lane.b32.xlu0 %v2383, 27
        %v2678 = vpop.permute.xlu0 %2677
        %2679 = vrot.lane.b32.xlu0 %v2384, 27
        %v2680 = vpop.permute.xlu0 %2679
        %2681 = vrot.lane.b32.xlu0 %v2385, 27
        %v2682 = vpop.permute.xlu0 %2681
        %2683 = vrot.lane.b32.xlu0 %v2386, 27
        %v2684 = vpop.permute.xlu0 %2683
        %2685 = vrot.lane.b32.xlu0 %v2387, 27
        %v2686 = vpop.permute.xlu0 %2685
        %2687 = vrot.lane.b32.xlu0 %v2388, 27
        %v2688 = vpop.permute.xlu0 %2687
        %2689 = vrot.lane.b32.xlu0 %v2389, 27
        %v2690 = vpop.permute.xlu0 %2689
        %2691 = vrot.lane.b32.xlu0 %v2390, 27
        %v2692 = vpop.permute.xlu0 %2691
        %2727 = vrot.lane.b32.xlu0 %v2361, 36
        %v2728 = vpop.permute.xlu0 %2727
        %2729 = vrot.lane.b32.xlu0 %v2362, 36
        %v2730 = vpop.permute.xlu0 %2729
        %2731 = vrot.lane.b32.xlu0 %v2363, 36
        %v2732 = vpop.permute.xlu0 %2731
        %2733 = vrot.lane.b32.xlu0 %v2364, 36
        %v2734 = vpop.permute.xlu0 %2733
        %2735 = vrot.lane.b32.xlu0 %v2365, 36
        %v2736 = vpop.permute.xlu0 %2735
        %2737 = vrot.lane.b32.xlu0 %v2366, 36
        %v2738 = vpop.permute.xlu0 %2737
        %2739 = vrot.lane.b32.xlu0 %v2367, 36
        %v2740 = vpop.permute.xlu0 %2739
        %2741 = vrot.lane.b32.xlu0 %v2368, 36
        %v2742 = vpop.permute.xlu0 %2741
        %2743 = vrot.lane.b32.xlu0 %v2369, 36
        %v2744 = vpop.permute.xlu0 %2743
        %2745 = vrot.lane.b32.xlu0 %v2370, 36
        %v2746 = vpop.permute.xlu0 %2745
        %2747 = vrot.lane.b32.xlu0 %v2371, 36
        %v2748 = vpop.permute.xlu0 %2747
        %2749 = vrot.lane.b32.xlu0 %v2372, 36
        %v2750 = vpop.permute.xlu0 %2749
        %2751 = vrot.lane.b32.xlu0 %v2373, 36
        %v2752 = vpop.permute.xlu0 %2751
        %2753 = vrot.lane.b32.xlu0 %v2374, 36
        %v2754 = vpop.permute.xlu0 %2753
        %2755 = vrot.lane.b32.xlu0 %v2375, 36
        %v2756 = vpop.permute.xlu0 %2755
        %2757 = vrot.lane.b32.xlu0 %v2376, 36
        %v2758 = vpop.permute.xlu0 %2757
        %2759 = vrot.lane.b32.xlu0 %v2377, 36
        %v2760 = vpop.permute.xlu0 %2759
        %2761 = vrot.lane.b32.xlu0 %v2378, 36
        %v2762 = vpop.permute.xlu0 %2761
        %2763 = vrot.lane.b32.xlu0 %v2379, 36
        %v2764 = vpop.permute.xlu0 %2763
        %2765 = vrot.lane.b32.xlu0 %v2380, 36
        %v2766 = vpop.permute.xlu0 %2765
        %2767 = vrot.lane.b32.xlu0 %v2381, 36
        %v2768 = vpop.permute.xlu0 %2767
        %2769 = vrot.lane.b32.xlu0 %v2382, 36
        %v2770 = vpop.permute.xlu0 %2769
        %2771 = vrot.lane.b32.xlu0 %v2383, 36
        %v2772 = vpop.permute.xlu0 %2771
        %2773 = vrot.lane.b32.xlu0 %v2384, 36
        %v2774 = vpop.permute.xlu0 %2773
        %2775 = vrot.lane.b32.xlu0 %v2385, 36
        %v2776 = vpop.permute.xlu0 %2775
        %2777 = vrot.lane.b32.xlu0 %v2386, 36
        %v2778 = vpop.permute.xlu0 %2777
        %2779 = vrot.lane.b32.xlu0 %v2387, 36
        %v2780 = vpop.permute.xlu0 %2779
        %2781 = vrot.lane.b32.xlu0 %v2388, 36
        %v2782 = vpop.permute.xlu0 %2781
        %2783 = vrot.lane.b32.xlu0 %v2389, 36
        %v2784 = vpop.permute.xlu0 %2783
        %2785 = vrot.lane.b32.xlu0 %v2390, 36
        %v2786 = vpop.permute.xlu0 %2785
        %2787 = vrot.lane.b32.xlu0 %v2391, 36
        %v2788 = vpop.permute.xlu0 %2787
        %2789 = vrot.lane.b32.xlu0 %v2392, 36
        %v2790 = vpop.permute.xlu0 %2789
        %2825 = vrot.lane.b32.xlu0 %v2363, 45
        %v2826 = vpop.permute.xlu0 %2825
        %2827 = vrot.lane.b32.xlu0 %v2364, 45
        %v2828 = vpop.permute.xlu0 %2827
        %2829 = vrot.lane.b32.xlu0 %v2365, 45
        %v2830 = vpop.permute.xlu0 %2829
        %2831 = vrot.lane.b32.xlu0 %v2366, 45
        %v2832 = vpop.permute.xlu0 %2831
        %2833 = vrot.lane.b32.xlu0 %v2367, 45
        %v2834 = vpop.permute.xlu0 %2833
        %2835 = vrot.lane.b32.xlu0 %v2368, 45
        %v2836 = vpop.permute.xlu0 %2835
        %2837 = vrot.lane.b32.xlu0 %v2369, 45
        %v2838 = vpop.permute.xlu0 %2837
        %2839 = vrot.lane.b32.xlu0 %v2370, 45
        %v2840 = vpop.permute.xlu0 %2839
        %2841 = vrot.lane.b32.xlu0 %v2371, 45
        %v2842 = vpop.permute.xlu0 %2841
        %2843 = vrot.lane.b32.xlu0 %v2372, 45
        %v2844 = vpop.permute.xlu0 %2843
        %2845 = vrot.lane.b32.xlu0 %v2373, 45
        %v2846 = vpop.permute.xlu0 %2845
        %2847 = vrot.lane.b32.xlu0 %v2374, 45
        %v2848 = vpop.permute.xlu0 %2847
        %2849 = vrot.lane.b32.xlu0 %v2375, 45
        %v2850 = vpop.permute.xlu0 %2849
        %2851 = vrot.lane.b32.xlu0 %v2376, 45
        %v2852 = vpop.permute.xlu0 %2851
        %2853 = vrot.lane.b32.xlu0 %v2377, 45
        %v2854 = vpop.permute.xlu0 %2853
        %2855 = vrot.lane.b32.xlu0 %v2378, 45
        %v2856 = vpop.permute.xlu0 %2855
        %2857 = vrot.lane.b32.xlu0 %v2379, 45
        %v2858 = vpop.permute.xlu0 %2857
        %2859 = vrot.lane.b32.xlu0 %v2380, 45
        %v2860 = vpop.permute.xlu0 %2859
        %2861 = vrot.lane.b32.xlu0 %v2381, 45
        %v2862 = vpop.permute.xlu0 %2861
        %2863 = vrot.lane.b32.xlu0 %v2382, 45
        %v2864 = vpop.permute.xlu0 %2863
        %2865 = vrot.lane.b32.xlu0 %v2383, 45
        %v2866 = vpop.permute.xlu0 %2865
        %2867 = vrot.lane.b32.xlu0 %v2384, 45
        %v2868 = vpop.permute.xlu0 %2867
        %2869 = vrot.lane.b32.xlu0 %v2385, 45
        %v2870 = vpop.permute.xlu0 %2869
        %2871 = vrot.lane.b32.xlu0 %v2386, 45
        %v2872 = vpop.permute.xlu0 %2871
        %2873 = vrot.lane.b32.xlu0 %v2387, 45
        %v2874 = vpop.permute.xlu0 %2873
        %2875 = vrot.lane.b32.xlu0 %v2388, 45
        %v2876 = vpop.permute.xlu0 %2875
        %2877 = vrot.lane.b32.xlu0 %v2389, 45
        %v2878 = vpop.permute.xlu0 %2877
        %2879 = vrot.lane.b32.xlu0 %v2390, 45
        %v2880 = vpop.permute.xlu0 %2879
        %2881 = vrot.lane.b32.xlu0 %v2391, 45
        %v2882 = vpop.permute.xlu0 %2881
        %2883 = vrot.lane.b32.xlu0 %v2392, 45
        %v2884 = vpop.permute.xlu0 %2883
        %2885 = vrot.lane.b32.xlu0 %v2393, 45
        %v2886 = vpop.permute.xlu0 %2885
        %2887 = vrot.lane.b32.xlu0 %v2394, 45
        %v2888 = vpop.permute.xlu0 %2887
        %2923 = vrot.lane.b32.xlu0 %v2365, 54
        %v2924 = vpop.permute.xlu0 %2923
        %2925 = vrot.lane.b32.xlu0 %v2366, 54
        %v2926 = vpop.permute.xlu0 %2925
        %2927 = vrot.lane.b32.xlu0 %v2367, 54
        %v2928 = vpop.permute.xlu0 %2927
        %2929 = vrot.lane.b32.xlu0 %v2368, 54
        %v2930 = vpop.permute.xlu0 %2929
        %2931 = vrot.lane.b32.xlu0 %v2369, 54
        %v2932 = vpop.permute.xlu0 %2931
        %2933 = vrot.lane.b32.xlu0 %v2370, 54
        %v2934 = vpop.permute.xlu0 %2933
        %2935 = vrot.lane.b32.xlu0 %v2371, 54
        %v2936 = vpop.permute.xlu0 %2935
        %2937 = vrot.lane.b32.xlu0 %v2372, 54
        %v2938 = vpop.permute.xlu0 %2937
        %2939 = vrot.lane.b32.xlu0 %v2373, 54
        %v2940 = vpop.permute.xlu0 %2939
        %2941 = vrot.lane.b32.xlu0 %v2374, 54
        %v2942 = vpop.permute.xlu0 %2941
        %2943 = vrot.lane.b32.xlu0 %v2375, 54
        %v2944 = vpop.permute.xlu0 %2943
        %2945 = vrot.lane.b32.xlu0 %v2376, 54
        %v2946 = vpop.permute.xlu0 %2945
        %2947 = vrot.lane.b32.xlu0 %v2377, 54
        %v2948 = vpop.permute.xlu0 %2947
        %2949 = vrot.lane.b32.xlu0 %v2378, 54
        %v2950 = vpop.permute.xlu0 %2949
        %2951 = vrot.lane.b32.xlu0 %v2379, 54
        %v2952 = vpop.permute.xlu0 %2951
        %2953 = vrot.lane.b32.xlu0 %v2380, 54
        %v2954 = vpop.permute.xlu0 %2953
        %2955 = vrot.lane.b32.xlu0 %v2381, 54
        %v2956 = vpop.permute.xlu0 %2955
        %2957 = vrot.lane.b32.xlu0 %v2382, 54
        %v2958 = vpop.permute.xlu0 %2957
        %2959 = vrot.lane.b32.xlu0 %v2383, 54
        %v2960 = vpop.permute.xlu0 %2959
        %2961 = vrot.lane.b32.xlu0 %v2384, 54
        %v2962 = vpop.permute.xlu0 %2961
        %2963 = vrot.lane.b32.xlu0 %v2385, 54
        %v2964 = vpop.permute.xlu0 %2963
        %2965 = vrot.lane.b32.xlu0 %v2386, 54
        %v2966 = vpop.permute.xlu0 %2965
        %2967 = vrot.lane.b32.xlu0 %v2387, 54
        %v2968 = vpop.permute.xlu0 %2967
        %2969 = vrot.lane.b32.xlu0 %v2388, 54
        %v2970 = vpop.permute.xlu0 %2969
        %2971 = vrot.lane.b32.xlu0 %v2389, 54
        %v2972 = vpop.permute.xlu0 %2971
        %2973 = vrot.lane.b32.xlu0 %v2390, 54
        %v2974 = vpop.permute.xlu0 %2973
        %2975 = vrot.lane.b32.xlu0 %v2391, 54
        %v2976 = vpop.permute.xlu0 %2975
        %2977 = vrot.lane.b32.xlu0 %v2392, 54
        %v2978 = vpop.permute.xlu0 %2977
        %2979 = vrot.lane.b32.xlu0 %v2393, 54
        %v2980 = vpop.permute.xlu0 %2979
        %2981 = vrot.lane.b32.xlu0 %v2394, 54
        %v2982 = vpop.permute.xlu0 %2981
        %2983 = vrot.lane.b32.xlu0 %v2395, 54
        %v2984 = vpop.permute.xlu0 %2983
        %2985 = vrot.lane.b32.xlu0 %v2396, 54
        %v2986 = vpop.permute.xlu0 %2985
        %3021 = vrot.lane.b32.xlu0 %v2367, 63
        %v3022 = vpop.permute.xlu0 %3021
        %3023 = vrot.lane.b32.xlu0 %v2368, 63
        %v3024 = vpop.permute.xlu0 %3023
        %3025 = vrot.lane.b32.xlu0 %v2369, 63
        %v3026 = vpop.permute.xlu0 %3025
        %3027 = vrot.lane.b32.xlu0 %v2370, 63
        %v3028 = vpop.permute.xlu0 %3027
        %3029 = vrot.lane.b32.xlu0 %v2371, 63
        %v3030 = vpop.permute.xlu0 %3029
        %3031 = vrot.lane.b32.xlu0 %v2372, 63
        %v3032 = vpop.permute.xlu0 %3031
        %3033 = vrot.lane.b32.xlu0 %v2373, 63
        %v3034 = vpop.permute.xlu0 %3033
        %3035 = vrot.lane.b32.xlu0 %v2374, 63
        %v3036 = vpop.permute.xlu0 %3035
        %3037 = vrot.lane.b32.xlu0 %v2375, 63
        %v3038 = vpop.permute.xlu0 %3037
        %3039 = vrot.lane.b32.xlu0 %v2376, 63
        %v3040 = vpop.permute.xlu0 %3039
        %3041 = vrot.lane.b32.xlu0 %v2377, 63
        %v3042 = vpop.permute.xlu0 %3041
        %3043 = vrot.lane.b32.xlu0 %v2378, 63
        %v3044 = vpop.permute.xlu0 %3043
        %3045 = vrot.lane.b32.xlu0 %v2379, 63
        %v3046 = vpop.permute.xlu0 %3045
        %3047 = vrot.lane.b32.xlu0 %v2380, 63
        %v3048 = vpop.permute.xlu0 %3047
        %3049 = vrot.lane.b32.xlu0 %v2381, 63
        %v3050 = vpop.permute.xlu0 %3049
        %3051 = vrot.lane.b32.xlu0 %v2382, 63
        %v3052 = vpop.permute.xlu0 %3051
        %3053 = vrot.lane.b32.xlu0 %v2383, 63
        %v3054 = vpop.permute.xlu0 %3053
        %3055 = vrot.lane.b32.xlu0 %v2384, 63
        %v3056 = vpop.permute.xlu0 %3055
        %3057 = vrot.lane.b32.xlu0 %v2385, 63
        %v3058 = vpop.permute.xlu0 %3057
        %3059 = vrot.lane.b32.xlu0 %v2386, 63
        %v3060 = vpop.permute.xlu0 %3059
        %3061 = vrot.lane.b32.xlu0 %v2387, 63
        %v3062 = vpop.permute.xlu0 %3061
        %3063 = vrot.lane.b32.xlu0 %v2388, 63
        %v3064 = vpop.permute.xlu0 %3063
        %3065 = vrot.lane.b32.xlu0 %v2389, 63
        %v3066 = vpop.permute.xlu0 %3065
        %3067 = vrot.lane.b32.xlu0 %v2390, 63
        %v3068 = vpop.permute.xlu0 %3067
        %3069 = vrot.lane.b32.xlu0 %v2391, 63
        %v3070 = vpop.permute.xlu0 %3069
        %3071 = vrot.lane.b32.xlu0 %v2392, 63
        %v3072 = vpop.permute.xlu0 %3071
        %3073 = vrot.lane.b32.xlu0 %v2393, 63
        %v3074 = vpop.permute.xlu0 %3073
        %3075 = vrot.lane.b32.xlu0 %v2394, 63
        %v3076 = vpop.permute.xlu0 %3075
        %3077 = vrot.lane.b32.xlu0 %v2395, 63
        %v3078 = vpop.permute.xlu0 %3077
        %3079 = vrot.lane.b32.xlu0 %v2396, 63
        %v3080 = vpop.permute.xlu0 %3079
        %3081 = vrot.lane.b32.xlu0 %v2397, 63
        %v3082 = vpop.permute.xlu0 %3081
        %3083 = vrot.lane.b32.xlu0 %v2398, 63
        %v3084 = vpop.permute.xlu0 %3083
        %3119 = vrot.lane.b32.xlu0 %v2369, 72
        %v3120 = vpop.permute.xlu0 %3119
        %3121 = vrot.lane.b32.xlu0 %v2370, 72
        %v3122 = vpop.permute.xlu0 %3121
        %3123 = vrot.lane.b32.xlu0 %v2371, 72
        %v3124 = vpop.permute.xlu0 %3123
        %3125 = vrot.lane.b32.xlu0 %v2372, 72
        %v3126 = vpop.permute.xlu0 %3125
        %3127 = vrot.lane.b32.xlu0 %v2373, 72
        %v3128 = vpop.permute.xlu0 %3127
        %3129 = vrot.lane.b32.xlu0 %v2374, 72
        %v3130 = vpop.permute.xlu0 %3129
        %3131 = vrot.lane.b32.xlu0 %v2375, 72
        %v3132 = vpop.permute.xlu0 %3131
        %3133 = vrot.lane.b32.xlu0 %v2376, 72
        %v3134 = vpop.permute.xlu0 %3133
        %3135 = vrot.lane.b32.xlu0 %v2377, 72
        %v3136 = vpop.permute.xlu0 %3135
        %3137 = vrot.lane.b32.xlu0 %v2378, 72
        %v3138 = vpop.permute.xlu0 %3137
        %3139 = vrot.lane.b32.xlu0 %v2379, 72
        %v3140 = vpop.permute.xlu0 %3139
        %3141 = vrot.lane.b32.xlu0 %v2380, 72
        %v3142 = vpop.permute.xlu0 %3141
        %3143 = vrot.lane.b32.xlu0 %v2381, 72
        %v3144 = vpop.permute.xlu0 %3143
        %3145 = vrot.lane.b32.xlu0 %v2382, 72
        %v3146 = vpop.permute.xlu0 %3145
        %3147 = vrot.lane.b32.xlu0 %v2383, 72
        %v3148 = vpop.permute.xlu0 %3147
        %3149 = vrot.lane.b32.xlu0 %v2384, 72
        %v3150 = vpop.permute.xlu0 %3149
        %3151 = vrot.lane.b32.xlu0 %v2385, 72
        %v3152 = vpop.permute.xlu0 %3151
        %3153 = vrot.lane.b32.xlu0 %v2386, 72
        %v3154 = vpop.permute.xlu0 %3153
        %3155 = vrot.lane.b32.xlu0 %v2387, 72
        %v3156 = vpop.permute.xlu0 %3155
        %3157 = vrot.lane.b32.xlu0 %v2388, 72
        %v3158 = vpop.permute.xlu0 %3157
        %3159 = vrot.lane.b32.xlu0 %v2389, 72
        %v3160 = vpop.permute.xlu0 %3159
        %3161 = vrot.lane.b32.xlu0 %v2390, 72
        %v3162 = vpop.permute.xlu0 %3161
        %3163 = vrot.lane.b32.xlu0 %v2391, 72
        %v3164 = vpop.permute.xlu0 %3163
        %3165 = vrot.lane.b32.xlu0 %v2392, 72
        %v3166 = vpop.permute.xlu0 %3165
        %3167 = vrot.lane.b32.xlu0 %v2393, 72
        %v3168 = vpop.permute.xlu0 %3167
        %3169 = vrot.lane.b32.xlu0 %v2394, 72
        %v3170 = vpop.permute.xlu0 %3169
        %3171 = vrot.lane.b32.xlu0 %v2395, 72
        %v3172 = vpop.permute.xlu0 %3171
        %3173 = vrot.lane.b32.xlu0 %v2396, 72
        %v3174 = vpop.permute.xlu0 %3173
        %3175 = vrot.lane.b32.xlu0 %v2397, 72
        %v3176 = vpop.permute.xlu0 %3175
        %3177 = vrot.lane.b32.xlu0 %v2398, 72
        %v3178 = vpop.permute.xlu0 %3177
        %3179 = vrot.lane.b32.xlu0 %v2399, 72
        %v3180 = vpop.permute.xlu0 %3179
        %3181 = vrot.lane.b32.xlu0 %v2400, 72
        %v3182 = vpop.permute.xlu0 %3181
        %vm3215 = vcmask 72704
        %v3216 = vsel %vm3215, %v2353, %v2434
        %v3217 = vsel %vm3215, %v2354, %v2436
        %v3218 = vsel %vm3215, %v2355, %v2438
        %v3219 = vsel %vm3215, %v2356, %v2440
        %v3220 = vsel %vm3215, %v2357, %v2442
        %v3221 = vsel %vm3215, %v2358, %v2444
        %v3222 = vsel %vm3215, %v2359, %v2446
        %v3223 = vsel %vm3215, %v2360, %v2448
        %v3224 = vsel %vm3215, %v2361, %v2450
        %v3225 = vsel %vm3215, %v2362, %v2452
        %v3226 = vsel %vm3215, %v2363, %v2454
        %v3227 = vsel %vm3215, %v2364, %v2456
        %v3228 = vsel %vm3215, %v2365, %v2458
        %v3229 = vsel %vm3215, %v2366, %v2460
        %v3230 = vsel %vm3215, %v2367, %v2462
        %v3231 = vsel %vm3215, %v2368, %v2464
        %v3232 = vsel %vm3215, %v2369, %v2466
        %v3233 = vsel %vm3215, %v2370, %v2468
        %v3234 = vsel %vm3215, %v2371, %v2470
        %v3235 = vsel %vm3215, %v2372, %v2472
        %v3236 = vsel %vm3215, %v2373, %v2474
        %v3237 = vsel %vm3215, %v2374, %v2476
        %v3238 = vsel %vm3215, %v2375, %v2478
        %v3239 = vsel %vm3215, %v2376, %v2480
        %v3240 = vsel %vm3215, %v2377, %v2482
        %v3241 = vsel %vm3215, %v2378, %v2484
        %v3242 = vsel %vm3215, %v2379, %v2486
        %v3243 = vsel %vm3215, %v2380, %v2488
        %v3244 = vsel %vm3215, %v2381, %v2490
        %v3245 = vsel %vm3215, %v2382, %v2492
        %v3246 = vsel %vm3215, %v2383, %v2494
        %v3247 = vsel %vm3215, %v2384, %v2496
        %vm3248 = vcmask 146432
        %v3249 = vsel %vm3248, %v3216, %v2532
        %v3250 = vsel %vm3248, %v3217, %v2534
        %v3251 = vsel %vm3248, %v3218, %v2536
        %v3252 = vsel %vm3248, %v3219, %v2538
        %v3253 = vsel %vm3248, %v3220, %v2540
        %v3254 = vsel %vm3248, %v3221, %v2542
        %v3255 = vsel %vm3248, %v3222, %v2544
        %v3256 = vsel %vm3248, %v3223, %v2546
        %v3257 = vsel %vm3248, %v3224, %v2548
        %v3258 = vsel %vm3248, %v3225, %v2550
        %v3259 = vsel %vm3248, %v3226, %v2552
        %v3260 = vsel %vm3248, %v3227, %v2554
        %v3261 = vsel %vm3248, %v3228, %v2556
        %v3262 = vsel %vm3248, %v3229, %v2558
        %v3263 = vsel %vm3248, %v3230, %v2560
        %v3264 = vsel %vm3248, %v3231, %v2562
        %v3265 = vsel %vm3248, %v3232, %v2564
        %v3266 = vsel %vm3248, %v3233, %v2566
        %v3267 = vsel %vm3248, %v3234, %v2568
        %v3268 = vsel %vm3248, %v3235, %v2570
        %v3269 = vsel %vm3248, %v3236, %v2572
        %v3270 = vsel %vm3248, %v3237, %v2574
        %v3271 = vsel %vm3248, %v3238, %v2576
        %v3272 = vsel %vm3248, %v3239, %v2578
        %v3273 = vsel %vm3248, %v3240, %v2580
        %v3274 = vsel %vm3248, %v3241, %v2582
        %v3275 = vsel %vm3248, %v3242, %v2584
        %v3276 = vsel %vm3248, %v3243, %v2586
        %v3277 = vsel %vm3248, %v3244, %v2588
        %v3278 = vsel %vm3248, %v3245, %v2590
        %v3279 = vsel %vm3248, %v3246, %v2592
        %v3280 = vsel %vm3248, %v3247, %v2594
        %vm3281 = vcmask 220160
        %v3282 = vsel %vm3281, %v3249, %v2630
        %v3283 = vsel %vm3281, %v3250, %v2632
        %v3284 = vsel %vm3281, %v3251, %v2634
        %v3285 = vsel %vm3281, %v3252, %v2636
        %v3286 = vsel %vm3281, %v3253, %v2638
        %v3287 = vsel %vm3281, %v3254, %v2640
        %v3288 = vsel %vm3281, %v3255, %v2642
        %v3289 = vsel %vm3281, %v3256, %v2644
        %v3290 = vsel %vm3281, %v3257, %v2646
        %v3291 = vsel %vm3281, %v3258, %v2648
        %v3292 = vsel %vm3281, %v3259, %v2650
        %v3293 = vsel %vm3281, %v3260, %v2652
        %v3294 = vsel %vm3281, %v3261, %v2654
        %v3295 = vsel %vm3281, %v3262, %v2656
        %v3296 = vsel %vm3281, %v3263, %v2658
        %v3297 = vsel %vm3281, %v3264, %v2660
        %v3298 = vsel %vm3281, %v3265, %v2662
        %v3299 = vsel %vm3281, %v3266, %v2664
        %v3300 = vsel %vm3281, %v3267, %v2666
        %v3301 = vsel %vm3281, %v3268, %v2668
        %v3302 = vsel %vm3281, %v3269, %v2670
        %v3303 = vsel %vm3281, %v3270, %v2672
        %v3304 = vsel %vm3281, %v3271, %v2674
        %v3305 = vsel %vm3281, %v3272, %v2676
        %v3306 = vsel %vm3281, %v3273, %v2678
        %v3307 = vsel %vm3281, %v3274, %v2680
        %v3308 = vsel %vm3281, %v3275, %v2682
        %v3309 = vsel %vm3281, %v3276, %v2684
        %v3310 = vsel %vm3281, %v3277, %v2686
        %v3311 = vsel %vm3281, %v3278, %v2688
        %v3312 = vsel %vm3281, %v3279, %v2690
        %v3313 = vsel %vm3281, %v3280, %v2692
        %vm3314 = vcmask 293888
        %v3315 = vsel %vm3314, %v3282, %v2728
        %v3316 = vsel %vm3314, %v3283, %v2730
        %v3317 = vsel %vm3314, %v3284, %v2732
        %v3318 = vsel %vm3314, %v3285, %v2734
        %v3319 = vsel %vm3314, %v3286, %v2736
        %v3320 = vsel %vm3314, %v3287, %v2738
        %v3321 = vsel %vm3314, %v3288, %v2740
        %v3322 = vsel %vm3314, %v3289, %v2742
        %v3323 = vsel %vm3314, %v3290, %v2744
        %v3324 = vsel %vm3314, %v3291, %v2746
        %v3325 = vsel %vm3314, %v3292, %v2748
        %v3326 = vsel %vm3314, %v3293, %v2750
        %v3327 = vsel %vm3314, %v3294, %v2752
        %v3328 = vsel %vm3314, %v3295, %v2754
        %v3329 = vsel %vm3314, %v3296, %v2756
        %v3330 = vsel %vm3314, %v3297, %v2758
        %v3331 = vsel %vm3314, %v3298, %v2760
        %v3332 = vsel %vm3314, %v3299, %v2762
        %v3333 = vsel %vm3314, %v3300, %v2764
        %v3334 = vsel %vm3314, %v3301, %v2766
        %v3335 = vsel %vm3314, %v3302, %v2768
        %v3336 = vsel %vm3314, %v3303, %v2770
        %v3337 = vsel %vm3314, %v3304, %v2772
        %v3338 = vsel %vm3314, %v3305, %v2774
        %v3339 = vsel %vm3314, %v3306, %v2776
        %v3340 = vsel %vm3314, %v3307, %v2778
        %v3341 = vsel %vm3314, %v3308, %v2780
        %v3342 = vsel %vm3314, %v3309, %v2782
        %v3343 = vsel %vm3314, %v3310, %v2784
        %v3344 = vsel %vm3314, %v3311, %v2786
        %v3345 = vsel %vm3314, %v3312, %v2788
        %v3346 = vsel %vm3314, %v3313, %v2790
        %vm3347 = vcmask 367616
        %v3348 = vsel %vm3347, %v3315, %v2826
        %v3349 = vsel %vm3347, %v3316, %v2828
        %v3350 = vsel %vm3347, %v3317, %v2830
        %v3351 = vsel %vm3347, %v3318, %v2832
        %v3352 = vsel %vm3347, %v3319, %v2834
        %v3353 = vsel %vm3347, %v3320, %v2836
        %v3354 = vsel %vm3347, %v3321, %v2838
        %v3355 = vsel %vm3347, %v3322, %v2840
        %v3356 = vsel %vm3347, %v3323, %v2842
        %v3357 = vsel %vm3347, %v3324, %v2844
        %v3358 = vsel %vm3347, %v3325, %v2846
        %v3359 = vsel %vm3347, %v3326, %v2848
        %v3360 = vsel %vm3347, %v3327, %v2850
        %v3361 = vsel %vm3347, %v3328, %v2852
        %v3362 = vsel %vm3347, %v3329, %v2854
        %v3363 = vsel %vm3347, %v3330, %v2856
        %v3364 = vsel %vm3347, %v3331, %v2858
        %v3365 = vsel %vm3347, %v3332, %v2860
        %v3366 = vsel %vm3347, %v3333, %v2862
        %v3367 = vsel %vm3347, %v3334, %v2864
        %v3368 = vsel %vm3347, %v3335, %v2866
        %v3369 = vsel %vm3347, %v3336, %v2868
        %v3370 = vsel %vm3347, %v3337, %v2870
        %v3371 = vsel %vm3347, %v3338, %v2872
        %v3372 = vsel %vm3347, %v3339, %v2874
        %v3373 = vsel %vm3347, %v3340, %v2876
        %v3374 = vsel %vm3347, %v3341, %v2878
        %v3375 = vsel %vm3347, %v3342, %v2880
        %v3376 = vsel %vm3347, %v3343, %v2882
        %v3377 = vsel %vm3347, %v3344, %v2884
        %v3378 = vsel %vm3347, %v3345, %v2886
        %v3379 = vsel %vm3347, %v3346, %v2888
        %vm3380 = vcmask 441344
        %v3381 = vsel %vm3380, %v3348, %v2924
        %v3382 = vsel %vm3380, %v3349, %v2926
        %v3383 = vsel %vm3380, %v3350, %v2928
        %v3384 = vsel %vm3380, %v3351, %v2930
        %v3385 = vsel %vm3380, %v3352, %v2932
        %v3386 = vsel %vm3380, %v3353, %v2934
        %v3387 = vsel %vm3380, %v3354, %v2936
        %v3388 = vsel %vm3380, %v3355, %v2938
        %v3389 = vsel %vm3380, %v3356, %v2940
        %v3390 = vsel %vm3380, %v3357, %v2942
        %v3391 = vsel %vm3380, %v3358, %v2944
        %v3392 = vsel %vm3380, %v3359, %v2946
        %v3393 = vsel %vm3380, %v3360, %v2948
        %v3394 = vsel %vm3380, %v3361, %v2950
        %v3395 = vsel %vm3380, %v3362, %v2952
        %v3396 = vsel %vm3380, %v3363, %v2954
        %v3397 = vsel %vm3380, %v3364, %v2956
        %v3398 = vsel %vm3380, %v3365, %v2958
        %v3399 = vsel %vm3380, %v3366, %v2960
        %v3400 = vsel %vm3380, %v3367, %v2962
        %v3401 = vsel %vm3380, %v3368, %v2964
        %v3402 = vsel %vm3380, %v3369, %v2966
        %v3403 = vsel %vm3380, %v3370, %v2968
        %v3404 = vsel %vm3380, %v3371, %v2970
        %v3405 = vsel %vm3380, %v3372, %v2972
        %v3406 = vsel %vm3380, %v3373, %v2974
        %v3407 = vsel %vm3380, %v3374, %v2976
        %v3408 = vsel %vm3380, %v3375, %v2978
        %v3409 = vsel %vm3380, %v3376, %v2980
        %v3410 = vsel %vm3380, %v3377, %v2982
        %v3411 = vsel %vm3380, %v3378, %v2984
        %v3412 = vsel %vm3380, %v3379, %v2986
        %vm3413 = vcmask 515072
        %v3414 = vsel %vm3413, %v3381, %v3022
        %v3415 = vsel %vm3413, %v3382, %v3024
        %v3416 = vsel %vm3413, %v3383, %v3026
        %v3417 = vsel %vm3413, %v3384, %v3028
        %v3418 = vsel %vm3413, %v3385, %v3030
        %v3419 = vsel %vm3413, %v3386, %v3032
        %v3420 = vsel %vm3413, %v3387, %v3034
        %v3421 = vsel %vm3413, %v3388, %v3036
        %v3422 = vsel %vm3413, %v3389, %v3038
        %v3423 = vsel %vm3413, %v3390, %v3040
        %v3424 = vsel %vm3413, %v3391, %v3042
        %v3425 = vsel %vm3413, %v3392, %v3044
        %v3426 = vsel %vm3413, %v3393, %v3046
        %v3427 = vsel %vm3413, %v3394, %v3048
        %v3428 = vsel %vm3413, %v3395, %v3050
        %v3429 = vsel %vm3413, %v3396, %v3052
        %v3430 = vsel %vm3413, %v3397, %v3054
        %v3431 = vsel %vm3413, %v3398, %v3056
        %v3432 = vsel %vm3413, %v3399, %v3058
        %v3433 = vsel %vm3413, %v3400, %v3060
        %v3434 = vsel %vm3413, %v3401, %v3062
        %v3435 = vsel %vm3413, %v3402, %v3064
        %v3436 = vsel %vm3413, %v3403, %v3066
        %v3437 = vsel %vm3413, %v3404, %v3068
        %v3438 = vsel %vm3413, %v3405, %v3070
        %v3439 = vsel %vm3413, %v3406, %v3072
        %v3440 = vsel %vm3413, %v3407, %v3074
        %v3441 = vsel %vm3413, %v3408, %v3076
        %v3442 = vsel %vm3413, %v3409, %v3078
        %v3443 = vsel %vm3413, %v3410, %v3080
        %v3444 = vsel %vm3413, %v3411, %v3082
        %v3445 = vsel %vm3413, %v3412, %v3084
        %vm3446 = vcmask 588800
        %v3447 = vsel %vm3446, %v3414, %v3120
        %v3448 = vsel %vm3446, %v3415, %v3122
        %v3449 = vsel %vm3446, %v3416, %v3124
        %v3450 = vsel %vm3446, %v3417, %v3126
        %v3451 = vsel %vm3446, %v3418, %v3128
        %v3452 = vsel %vm3446, %v3419, %v3130
        %v3453 = vsel %vm3446, %v3420, %v3132
        %v3454 = vsel %vm3446, %v3421, %v3134
        %v3455 = vsel %vm3446, %v3422, %v3136
        %v3456 = vsel %vm3446, %v3423, %v3138
        %v3457 = vsel %vm3446, %v3424, %v3140
        %v3458 = vsel %vm3446, %v3425, %v3142
        %v3459 = vsel %vm3446, %v3426, %v3144
        %v3460 = vsel %vm3446, %v3427, %v3146
        %v3461 = vsel %vm3446, %v3428, %v3148
        %v3462 = vsel %vm3446, %v3429, %v3150
        %v3463 = vsel %vm3446, %v3430, %v3152
        %v3464 = vsel %vm3446, %v3431, %v3154
        %v3465 = vsel %vm3446, %v3432, %v3156
        %v3466 = vsel %vm3446, %v3433, %v3158
        %v3467 = vsel %vm3446, %v3434, %v3160
        %v3468 = vsel %vm3446, %v3435, %v3162
        %v3469 = vsel %vm3446, %v3436, %v3164
        %v3470 = vsel %vm3446, %v3437, %v3166
        %v3471 = vsel %vm3446, %v3438, %v3168
        %v3472 = vsel %vm3446, %v3439, %v3170
        %v3473 = vsel %vm3446, %v3440, %v3172
        %v3474 = vsel %vm3446, %v3441, %v3174
        %v3475 = vsel %vm3446, %v3442, %v3176
        %v3476 = vsel %vm3446, %v3443, %v3178
        %v3477 = vsel %vm3446, %v3444, %v3180
        %v3478 = vsel %vm3446, %v3445, %v3182
        %v3479 = vld [vmem:[%s1] sm:$0xff]
        %v3480 = vld [vmem:[%s1 + $0x8] sm:$0xff]
        %v3481 = vld [vmem:[%s1 + $0x10] sm:$0xff]
        %v3482 = vld [vmem:[%s1 + $0x18] sm:$0xff]
        %v3483 = vld [vmem:[%s1 + $0x20] sm:$0xff]
        %v3484 = vld [vmem:[%s1 + $0x28] sm:$0xff]
        %v3485 = vld [vmem:[%s1 + $0x30] sm:$0xff]
        %v3486 = vld [vmem:[%s1 + $0x38] sm:$0xff]
        %v3487 = vld [vmem:[%s1 + $0x40] sm:$0xff]
        %v3488 = vld [vmem:[%s1 + $0x48] sm:$0xff]
        %v3489 = vld [vmem:[%s1 + $0x50] sm:$0x1]
        %v3490 = vld [vmem:[%s2] sm:$0x1]
        %v3492 = vlaneseq
        %v3493 = vshrl.u32 %v3492, 7
        %v3494 = vsub.s32 0, %v3493
        %v3495 = vrot.slane %v3490, %v3494
        %vm3497 = vcmask 662528
        %v3499 = vsel %vm3497, %v3447, 0
        %v3502 = vsel %vm3497, %v3448, 0
        %v3505 = vsel %vm3497, %v3449, 0
        %v3508 = vsel %vm3497, %v3450, 0
        %v3511 = vsel %vm3497, %v3451, 0
        %v3514 = vsel %vm3497, %v3452, 0
        %v3517 = vsel %vm3497, %v3453, 0
        %v3520 = vsel %vm3497, %v3454, 0
        %v3523 = vsel %vm3497, %v3455, 0
        %v3526 = vsel %vm3497, %v3456, 0
        %v3529 = vsel %vm3497, %v3457, 0
        %v3532 = vsel %vm3497, %v3458, 0
        %v3535 = vsel %vm3497, %v3459, 0
        %v3538 = vsel %vm3497, %v3460, 0
        %v3541 = vsel %vm3497, %v3461, 0
        %v3544 = vsel %vm3497, %v3462, 0
        %v3547 = vsel %vm3497, %v3463, 0
        %v3550 = vsel %vm3497, %v3464, 0
        %v3553 = vsel %vm3497, %v3465, 0
        %v3556 = vsel %vm3497, %v3466, 0
        %v3559 = vsel %vm3497, %v3467, 0
        %v3562 = vsel %vm3497, %v3468, 0
        %v3565 = vsel %vm3497, %v3469, 0
        %v3568 = vsel %vm3497, %v3470, 0
        %v3571 = vsel %vm3497, %v3471, 0
        %v3574 = vsel %vm3497, %v3472, 0
        %v3577 = vsel %vm3497, %v3473, 0
        %v3580 = vsel %vm3497, %v3474, 0
        %v3583 = vsel %vm3497, %v3475, 0
        %v3586 = vsel %vm3497, %v3476, 0
        %v3589 = vsel %vm3497, %v3477, 0
        %v3592 = vsel %vm3497, %v3478, 0
        %vm3594 = vcmask 1040384
        %v3596 = vsel %vm3594, %v3489, 0
        %3598 = vmatprep.subr.mxu0 0.0
        %3599 = vmatpush1.msra.mxu0 %v3479
        %3600 = vmatprep.subr.mxu0 0.0
        %3601 = vmatpush1.msra.mxu0 %v3480
        %3602 = vmatprep.subr.mxu0 0.0
        %3603 = vmatpush1.msra.mxu0 %v3481
        %3604 = vmatprep.subr.mxu0 0.0
        %3605 = vmatpush1.msra.mxu0 %v3482
        %3606 = vmatprep.subr.mxu0 0.0
        %3607 = vmatpush1.msra.mxu0 %v3483
        %3608 = vmatprep.subr.mxu0 0.0
        %3609 = vmatpush1.msra.mxu0 %v3484
        %3610 = vmatprep.subr.mxu0 0.0
        %3611 = vmatpush1.msra.mxu0 %v3485
        %3612 = vmatprep.subr.mxu0 0.0
        %3613 = vmatpush1.msra.mxu0 %v3486
        %3614 = vmatprep.subr.mxu0 0.0
        %3615 = vmatpush1.msra.mxu0 %v3487
        %3616 = vmatprep.subr.mxu0 0.0
        %3617 = vmatpush1.msra.mxu0 %v3488
        %3618 = vmatprep.subr.mxu0 0.0
        %3619 = vmatpush1.msra.mxu0 %v3596
        %3620 = vmatprep.subr.mxu0 0.0
        %3621 = vmatpush1.msra.mxu0 0.0
        %3622 = vmatprep.subr.mxu0 0.0
        %3623 = vmatpush1.msra.mxu0 0.0
        %3624 = vmatprep.subr.mxu0 0.0
        %3625 = vmatpush1.msra.mxu0 0.0
        %3626 = vmatprep.subr.mxu0 0.0
        %3627 = vmatpush1.msra.mxu0 0.0
        %3628 = vmatprep.subr.mxu0 0.0
        %3629 = vmatpush1.msra.mxu0 0.0
        %3630 = vmatprep.subr.mxu0 0.0
        %3631 = vmatpush1.msra.mxu0 0.0
        %3632 = vmatprep.subr.mxu0 0.0
        %3633 = vmatpush1.msra.mxu0 0.0
        %3634 = vmatprep.subr.mxu0 0.0
        %3635 = vmatpush1.msra.mxu0 0.0
        %3636 = vmatprep.subr.mxu0 0.0
        %3637 = vmatpush1.msra.mxu0 0.0
        %3638 = vmatprep.subr.mxu0 0.0
        %3639 = vmatpush1.msra.mxu0 0.0
        %3640 = vmatprep.subr.mxu0 0.0
        %3641 = vmatpush1.msra.mxu0 0.0
        %3642 = vmatprep.subr.mxu0 0.0
        %3643 = vmatpush1.msra.mxu0 0.0
        %3644 = vmatprep.subr.mxu0 0.0
        %3645 = vmatpush1.msra.mxu0 0.0
        %3646 = vmatprep.subr.mxu0 0.0
        %3647 = vmatpush1.msra.mxu0 0.0
        %3648 = vmatprep.subr.mxu0 0.0
        %3649 = vmatpush1.msra.mxu0 0.0
        %3650 = vmatprep.subr.mxu0 0.0
        %3651 = vmatpush1.msra.mxu0 0.0
        %3652 = vmatprep.subr.mxu0 0.0
        %3653 = vmatpush1.msra.mxu0 0.0
        %3654 = vmatprep.subr.mxu0 0.0
        %3655 = vmatpush1.msra.mxu0 0.0
        %3656 = vmatprep.subr.mxu0 0.0
        %3657 = vmatpush1.msra.mxu0 0.0
        %3658 = vmatprep.subr.mxu0 0.0
        %3659 = vmatpush1.msra.mxu0 0.0
        %3660 = vmatprep.subr.mxu0 0.0
        %3661 = vmatpush1.msra.mxu0 0.0
        %3662 = vmatprep.mubr.f32.mxu0 0.0
        %3663 = vmatmul.mubr.f32.gmra.mrb[0].mxu0 %v3499
        %v3664 = vpop.f32.mrb[0].mxu0
        %v3665 = vadd.f32 %v3495, %v3664
        %v3666 = vpop.f32.mrb[0].mxu0
        %3667 = vmatprep.mubr.f32.mxu0 0.0
        %3668 = vmatmul.mubr.f32.gmra.mrb[0].mxu0 %v3502
        %v3669 = vpop.f32.mrb[0].mxu0
        %v3670 = vadd.f32 %v3495, %v3669
        %v3671 = vpop.f32.mrb[0].mxu0
        %3672 = vmatprep.mubr.f32.mxu0 0.0
        %3673 = vmatmul.mubr.f32.gmra.mrb[0].mxu0 %v3505
        %v3674 = vpop.f32.mrb[0].mxu0
        %v3675 = vadd.f32 %v3495, %v3674
        %v3676 = vpop.f32.mrb[0].mxu0
        %3677 = vmatprep.mubr.f32.mxu0 0.0
        %3678 = vmatmul.mubr.f32.gmra.mrb[0].mxu0 %v3508
        %v3679 = vpop.f32.mrb[0].mxu0
        %v3680 = vadd.f32 %v3495, %v3679
        %v3681 = vpop.f32.mrb[0].mxu0
        %3682 = vmatprep.mubr.f32.mxu0 0.0
        %3683 = vmatmul.mubr.f32.gmra.mrb[0].mxu0 %v3511
        %v3684 = vpop.f32.mrb[0].mxu0
        %v3685 = vadd.f32 %v3495, %v3684
        %v3686 = vpop.f32.mrb[0].mxu0
        %3687 = vmatprep.mubr.f32.mxu0 0.0
        %3688 = vmatmul.mubr.f32.gmra.mrb[0].mxu0 %v3514
        %v3689 = vpop.f32.mrb[0].mxu0
        %v3690 = vadd.f32 %v3495, %v3689
        %v3691 = vpop.f32.mrb[0].mxu0
        %3692 = vmatprep.mubr.f32.mxu0 0.0
        %3693 = vmatmul.mubr.f32.gmra.mrb[0].mxu0 %v3517
        %v3694 = vpop.f32.mrb[0].mxu0
        %v3695 = vadd.f32 %v3495, %v3694
        %v3696 = vpop.f32.mrb[0].mxu0
        %3697 = vmatprep.mubr.f32.mxu0 0.0
        %3698 = vmatmul.mubr.f32.gmra.mrb[0].mxu0 %v3520
        %v3699 = vpop.f32.mrb[0].mxu0
        %v3700 = vadd.f32 %v3495, %v3699
        %v3701 = vpop.f32.mrb[0].mxu0
        %3702 = vmatprep.mubr.f32.mxu0 0.0
        %3703 = vmatmul.mubr.f32.gmra.mrb[0].mxu0 %v3523
        %v3704 = vpop.f32.mrb[0].mxu0
        %v3705 = vadd.f32 %v3495, %v3704
        %v3706 = vpop.f32.mrb[0].mxu0
        %3707 = vmatprep.mubr.f32.mxu0 0.0
        %3708 = vmatmul.mubr.f32.gmra.mrb[0].mxu0 %v3526
        %v3709 = vpop.f32.mrb[0].mxu0
        %v3710 = vadd.f32 %v3495, %v3709
        %v3711 = vpop.f32.mrb[0].mxu0
        %3712 = vmatprep.mubr.f32.mxu0 0.0
        %3713 = vmatmul.mubr.f32.gmra.mrb[0].mxu0 %v3529
        %v3714 = vpop.f32.mrb[0].mxu0
        %v3715 = vadd.f32 %v3495, %v3714
        %v3716 = vpop.f32.mrb[0].mxu0
        %3717 = vmatprep.mubr.f32.mxu0 0.0
        %3718 = vmatmul.mubr.f32.gmra.mrb[0].mxu0 %v3532
        %v3719 = vpop.f32.mrb[0].mxu0
        %v3720 = vadd.f32 %v3495, %v3719
        %v3721 = vpop.f32.mrb[0].mxu0
        %3722 = vmatprep.mubr.f32.mxu0 0.0
        %3723 = vmatmul.mubr.f32.gmra.mrb[0].mxu0 %v3535
        %v3724 = vpop.f32.mrb[0].mxu0
        %v3725 = vadd.f32 %v3495, %v3724
        %v3726 = vpop.f32.mrb[0].mxu0
        %3727 = vmatprep.mubr.f32.mxu0 0.0
        %3728 = vmatmul.mubr.f32.gmra.mrb[0].mxu0 %v3538
        %v3729 = vpop.f32.mrb[0].mxu0
        %v3730 = vadd.f32 %v3495, %v3729
        %v3731 = vpop.f32.mrb[0].mxu0
        %3732 = vmatprep.mubr.f32.mxu0 0.0
        %3733 = vmatmul.mubr.f32.gmra.mrb[0].mxu0 %v3541
        %v3734 = vpop.f32.mrb[0].mxu0
        %v3735 = vadd.f32 %v3495, %v3734
        %v3736 = vpop.f32.mrb[0].mxu0
        %3737 = vmatprep.mubr.f32.mxu0 0.0
        %3738 = vmatmul.mubr.f32.gmra.mrb[0].mxu0 %v3544
        %v3739 = vpop.f32.mrb[0].mxu0
        %v3740 = vadd.f32 %v3495, %v3739
        %v3741 = vpop.f32.mrb[0].mxu0
        %3742 = vmatprep.mubr.f32.mxu0 0.0
        %3743 = vmatmul.mubr.f32.gmra.mrb[0].mxu0 %v3547
        %v3744 = vpop.f32.mrb[0].mxu0
        %v3745 = vadd.f32 %v3495, %v3744
        %v3746 = vpop.f32.mrb[0].mxu0
        %3747 = vmatprep.mubr.f32.mxu0 0.0
        %3748 = vmatmul.mubr.f32.gmra.mrb[0].mxu0 %v3550
        %v3749 = vpop.f32.mrb[0].mxu0
        %v3750 = vadd.f32 %v3495, %v3749
        %v3751 = vpop.f32.mrb[0].mxu0
        %3752 = vmatprep.mubr.f32.mxu0 0.0
        %3753 = vmatmul.mubr.f32.gmra.mrb[0].mxu0 %v3553
        %v3754 = vpop.f32.mrb[0].mxu0
        %v3755 = vadd.f32 %v3495, %v3754
        %v3756 = vpop.f32.mrb[0].mxu0
        %3757 = vmatprep.mubr.f32.mxu0 0.0
        %3758 = vmatmul.mubr.f32.gmra.mrb[0].mxu0 %v3556
        %v3759 = vpop.f32.mrb[0].mxu0
        %v3760 = vadd.f32 %v3495, %v3759
        %v3761 = vpop.f32.mrb[0].mxu0
        %3762 = vmatprep.mubr.f32.mxu0 0.0
        %3763 = vmatmul.mubr.f32.gmra.mrb[0].mxu0 %v3559
        %v3764 = vpop.f32.mrb[0].mxu0
        %v3765 = vadd.f32 %v3495, %v3764
        %v3766 = vpop.f32.mrb[0].mxu0
        %3767 = vmatprep.mubr.f32.mxu0 0.0
        %3768 = vmatmul.mubr.f32.gmra.mrb[0].mxu0 %v3562
        %v3769 = vpop.f32.mrb[0].mxu0
        %v3770 = vadd.f32 %v3495, %v3769
        %v3771 = vpop.f32.mrb[0].mxu0
        %3772 = vmatprep.mubr.f32.mxu0 0.0
        %3773 = vmatmul.mubr.f32.gmra.mrb[0].mxu0 %v3565
        %v3774 = vpop.f32.mrb[0].mxu0
        %v3775 = vadd.f32 %v3495, %v3774
        %v3776 = vpop.f32.mrb[0].mxu0
        %3777 = vmatprep.mubr.f32.mxu0 0.0
        %3778 = vmatmul.mubr.f32.gmra.mrb[0].mxu0 %v3568
        %v3779 = vpop.f32.mrb[0].mxu0
        %v3780 = vadd.f32 %v3495, %v3779
        %v3781 = vpop.f32.mrb[0].mxu0
        %3782 = vmatprep.mubr.f32.mxu0 0.0
        %3783 = vmatmul.mubr.f32.gmra.mrb[0].mxu0 %v3571
        %v3784 = vpop.f32.mrb[0].mxu0
        %v3785 = vadd.f32 %v3495, %v3784
        %v3786 = vpop.f32.mrb[0].mxu0
        %3787 = vmatprep.mubr.f32.mxu0 0.0
        %3788 = vmatmul.mubr.f32.gmra.mrb[0].mxu0 %v3574
        %v3789 = vpop.f32.mrb[0].mxu0
        %v3790 = vadd.f32 %v3495, %v3789
        %v3791 = vpop.f32.mrb[0].mxu0
        %3792 = vmatprep.mubr.f32.mxu0 0.0
        %3793 = vmatmul.mubr.f32.gmra.mrb[0].mxu0 %v3577
        %v3794 = vpop.f32.mrb[0].mxu0
        %v3795 = vadd.f32 %v3495, %v3794
        %v3796 = vpop.f32.mrb[0].mxu0
        %3797 = vmatprep.mubr.f32.mxu0 0.0
        %3798 = vmatmul.mubr.f32.gmra.mrb[0].mxu0 %v3580
        %v3799 = vpop.f32.mrb[0].mxu0
        %v3800 = vadd.f32 %v3495, %v3799
        %v3801 = vpop.f32.mrb[0].mxu0
        %3802 = vmatprep.mubr.f32.mxu0 0.0
        %3803 = vmatmul.mubr.f32.gmra.mrb[0].mxu0 %v3583
        %v3804 = vpop.f32.mrb[0].mxu0
        %v3805 = vadd.f32 %v3495, %v3804
        %v3806 = vpop.f32.mrb[0].mxu0
        %3807 = vmatprep.mubr.f32.mxu0 0.0
        %3808 = vmatmul.mubr.f32.gmra.mrb[0].mxu0 %v3586
        %v3809 = vpop.f32.mrb[0].mxu0
        %v3810 = vadd.f32 %v3495, %v3809
        %v3811 = vpop.f32.mrb[0].mxu0
        %3812 = vmatprep.mubr.f32.mxu0 0.0
        %3813 = vmatmul.mubr.f32.gmra.mrb[0].mxu0 %v3589
        %v3814 = vpop.f32.mrb[0].mxu0
        %v3815 = vadd.f32 %v3495, %v3814
        %v3816 = vpop.f32.mrb[0].mxu0
        %3817 = vmatprep.mubr.f32.mxu0 0.0
        %3818 = vmatmul.mubr.f32.gmra.mrb[0].mxu0 %v3592
        %v3819 = vpop.f32.mrb[0].mxu0
        %v3820 = vadd.f32 %v3495, %v3819
        %v3821 = vpop.f32.mrb[0].mxu0
        %3822 = vdwg.mxu0
        %v3823 = vmax.f32 %v3665, 0.0
        %v3824 = vmax.f32 %v3670, 0.0
        %v3825 = vmax.f32 %v3675, 0.0
        %v3826 = vmax.f32 %v3680, 0.0
        %v3827 = vmax.f32 %v3685, 0.0
        %v3828 = vmax.f32 %v3690, 0.0
        %v3829 = vmax.f32 %v3695, 0.0
        %v3830 = vmax.f32 %v3700, 0.0
        %v3831 = vmax.f32 %v3705, 0.0
        %v3832 = vmax.f32 %v3710, 0.0
        %v3833 = vmax.f32 %v3715, 0.0
        %v3834 = vmax.f32 %v3720, 0.0
        %v3835 = vmax.f32 %v3725, 0.0
        %v3836 = vmax.f32 %v3730, 0.0
        %v3837 = vmax.f32 %v3735, 0.0
        %v3838 = vmax.f32 %v3740, 0.0
        %v3839 = vmax.f32 %v3745, 0.0
        %v3840 = vmax.f32 %v3750, 0.0
        %v3841 = vmax.f32 %v3755, 0.0
        %v3842 = vmax.f32 %v3760, 0.0
        %v3843 = vmax.f32 %v3765, 0.0
        %v3844 = vmax.f32 %v3770, 0.0
        %v3845 = vmax.f32 %v3775, 0.0
        %v3846 = vmax.f32 %v3780, 0.0
        %v3847 = vmax.f32 %v3785, 0.0
        %v3848 = vmax.f32 %v3790, 0.0
        %v3849 = vmax.f32 %v3795, 0.0
        %v3850 = vmax.f32 %v3800, 0.0
        %v3851 = vmax.f32 %v3805, 0.0
        %v3852 = vmax.f32 %v3810, 0.0
        %v3853 = vmax.f32 %v3815, 0.0
        %v3854 = vmax.f32 %v3820, 0.0
        %v3855 = vld [vmem:[%s3] sm:$0xff]
        %v3856 = vld [vmem:[%s3 + $0x8] sm:$0xff]
        %v3857 = vld [vmem:[%s3 + $0x10] sm:$0xff]
        %v3858 = vld [vmem:[%s3 + $0x18] sm:$0xff]
        %v3859 = vld [vmem:[%s3 + $0x20] sm:$0xff]
        %v3860 = vld [vmem:[%s3 + $0x28] sm:$0xff]
        %v3861 = vld [vmem:[%s3 + $0x30] sm:$0xff]
        %v3862 = vld [vmem:[%s3 + $0x38] sm:$0xff]
        %v3863 = vld [vmem:[%s4] sm:$0x1]
        %v3865 = vlaneseq
        %v3866 = vshrl.u32 %v3865, 7
        %v3867 = vsub.s32 0, %v3866
        %v3868 = vrot.slane %v3863, %v3867
        %vm3870 = vcmask 523264
        %v3872 = vsel %vm3870, %v3823, 0
        %v3875 = vsel %vm3870, %v3824, 0
        %v3878 = vsel %vm3870, %v3825, 0
        %v3881 = vsel %vm3870, %v3826, 0
        %v3884 = vsel %vm3870, %v3827, 0
        %v3887 = vsel %vm3870, %v3828, 0
        %v3890 = vsel %vm3870, %v3829, 0
        %v3893 = vsel %vm3870, %v3830, 0
        %v3896 = vsel %vm3870, %v3831, 0
        %v3899 = vsel %vm3870, %v3832, 0
        %v3902 = vsel %vm3870, %v3833, 0
        %v3905 = vsel %vm3870, %v3834, 0
        %v3908 = vsel %vm3870, %v3835, 0
        %v3911 = vsel %vm3870, %v3836, 0
        %v3914 = vsel %vm3870, %v3837, 0
        %v3917 = vsel %vm3870, %v3838, 0
        %v3920 = vsel %vm3870, %v3839, 0
        %v3923 = vsel %vm3870, %v3840, 0
        %v3926 = vsel %vm3870, %v3841, 0
        %v3929 = vsel %vm3870, %v3842, 0
        %v3932 = vsel %vm3870, %v3843, 0
        %v3935 = vsel %vm3870, %v3844, 0
        %v3938 = vsel %vm3870, %v3845, 0
        %v3941 = vsel %vm3870, %v3846, 0
        %v3944 = vsel %vm3870, %v3847, 0
        %v3947 = vsel %vm3870, %v3848, 0
        %v3950 = vsel %vm3870, %v3849, 0
        %v3953 = vsel %vm3870, %v3850, 0
        %v3956 = vsel %vm3870, %v3851, 0
        %v3959 = vsel %vm3870, %v3852, 0
        %v3962 = vsel %vm3870, %v3853, 0
        %v3965 = vsel %vm3870, %v3854, 0
        %3967 = vmatprep.subr.mxu0 0.0
        %3968 = vmatpush1.msra.mxu0 %v3855
        %3969 = vmatprep.subr.mxu0 0.0
        %3970 = vmatpush1.msra.mxu0 %v3856
        %3971 = vmatprep.subr.mxu0 0.0
        %3972 = vmatpush1.msra.mxu0 %v3857
        %3973 = vmatprep.subr.mxu0 0.0
        %3974 = vmatpush1.msra.mxu0 %v3858
        %3975 = vmatprep.subr.mxu0 0.0
        %3976 = vmatpush1.msra.mxu0 %v3859
        %3977 = vmatprep.subr.mxu0 0.0
        %3978 = vmatpush1.msra.mxu0 %v3860
        %3979 = vmatprep.subr.mxu0 0.0
        %3980 = vmatpush1.msra.mxu0 %v3861
        %3981 = vmatprep.subr.mxu0 0.0
        %3982 = vmatpush1.msra.mxu0 %v3862
        %3983 = vmatprep.subr.mxu0 0.0
        %3984 = vmatpush1.msra.mxu0 0.0
        %3985 = vmatprep.subr.mxu0 0.0
        %3986 = vmatpush1.msra.mxu0 0.0
        %3987 = vmatprep.subr.mxu0 0.0
        %3988 = vmatpush1.msra.mxu0 0.0
        %3989 = vmatprep.subr.mxu0 0.0
        %3990 = vmatpush1.msra.mxu0 0.0
        %3991 = vmatprep.subr.mxu0 0.0
        %3992 = vmatpush1.msra.mxu0 0.0
        %3993 = vmatprep.subr.mxu0 0.0
        %3994 = vmatpush1.msra.mxu0 0.0
        %3995 = vmatprep.subr.mxu0 0.0
        %3996 = vmatpush1.msra.mxu0 0.0
        %3997 = vmatprep.subr.mxu0 0.0
        %3998 = vmatpush1.msra.mxu0 0.0
        %3999 = vmatprep.subr.mxu0 0.0
        %4000 = vmatpush1.msra.mxu0 0.0
        %4001 = vmatprep.subr.mxu0 0.0
        %4002 = vmatpush1.msra.mxu0 0.0
        %4003 = vmatprep.subr.mxu0 0.0
        %4004 = vmatpush1.msra.mxu0 0.0
        %4005 = vmatprep.subr.mxu0 0.0
        %4006 = vmatpush1.msra.mxu0 0.0
        %4007 = vmatprep.subr.mxu0 0.0
        %4008 = vmatpush1.msra.mxu0 0.0
        %4009 = vmatprep.subr.mxu0 0.0
        %4010 = vmatpush1.msra.mxu0 0.0
        %4011 = vmatprep.subr.mxu0 0.0
        %4012 = vmatpush1.msra.mxu0 0.0
        %4013 = vmatprep.subr.mxu0 0.0
        %4014 = vmatpush1.msra.mxu0 0.0
        %4015 = vmatprep.subr.mxu0 0.0
        %4016 = vmatpush1.msra.mxu0 0.0
        %4017 = vmatprep.subr.mxu0 0.0
        %4018 = vmatpush1.msra.mxu0 0.0
        %4019 = vmatprep.subr.mxu0 0.0
        %4020 = vmatpush1.msra.mxu0 0.0
        %4021 = vmatprep.subr.mxu0 0.0
        %4022 = vmatpush1.msra.mxu0 0.0
        %4023 = vmatprep.subr.mxu0 0.0
        %4024 = vmatpush1.msra.mxu0 0.0
        %4025 = vmatprep.subr.mxu0 0.0
        %4026 = vmatpush1.msra.mxu0 0.0
        %4027 = vmatprep.subr.mxu0 0.0
        %4028 = vmatpush1.msra.mxu0 0.0
        %4029 = vmatprep.subr.mxu0 0.0
        %4030 = vmatpush1.msra.mxu0 0.0
        %4031 = vmatprep.mubr.f32.mxu0 0.0
        %4032 = vmatmul.mubr.f32.gmra.mrb[0].mxu0 %v3872
        %v4033 = vpop.f32.mrb[0].mxu0
        %v4034 = vadd.f32 %v3868, %v4033
        %v4035 = vpop.f32.mrb[0].mxu0
        %4036 = vmatprep.mubr.f32.mxu0 0.0
        %4037 = vmatmul.mubr.f32.gmra.mrb[0].mxu0 %v3875
        %v4038 = vpop.f32.mrb[0].mxu0
        %v4039 = vadd.f32 %v3868, %v4038
        %v4040 = vpop.f32.mrb[0].mxu0
        %4041 = vmatprep.mubr.f32.mxu0 0.0
        %4042 = vmatmul.mubr.f32.gmra.mrb[0].mxu0 %v3878
        %v4043 = vpop.f32.mrb[0].mxu0
        %v4044 = vadd.f32 %v3868, %v4043
        %v4045 = vpop.f32.mrb[0].mxu0
        %4046 = vmatprep.mubr.f32.mxu0 0.0
        %4047 = vmatmul.mubr.f32.gmra.mrb[0].mxu0 %v3881
        %v4048 = vpop.f32.mrb[0].mxu0
        %v4049 = vadd.f32 %v3868, %v4048
        %v4050 = vpop.f32.mrb[0].mxu0
        %4051 = vmatprep.mubr.f32.mxu0 0.0
        %4052 = vmatmul.mubr.f32.gmra.mrb[0].mxu0 %v3884
        %v4053 = vpop.f32.mrb[0].mxu0
        %v4054 = vadd.f32 %v3868, %v4053
        %v4055 = vpop.f32.mrb[0].mxu0
        %4056 = vmatprep.mubr.f32.mxu0 0.0
        %4057 = vmatmul.mubr.f32.gmra.mrb[0].mxu0 %v3887
        %v4058 = vpop.f32.mrb[0].mxu0
        %v4059 = vadd.f32 %v3868, %v4058
        %v4060 = vpop.f32.mrb[0].mxu0
        %4061 = vmatprep.mubr.f32.mxu0 0.0
        %4062 = vmatmul.mubr.f32.gmra.mrb[0].mxu0 %v3890
        %v4063 = vpop.f32.mrb[0].mxu0
        %v4064 = vadd.f32 %v3868, %v4063
        %v4065 = vpop.f32.mrb[0].mxu0
        %4066 = vmatprep.mubr.f32.mxu0 0.0
        %4067 = vmatmul.mubr.f32.gmra.mrb[0].mxu0 %v3893
        %v4068 = vpop.f32.mrb[0].mxu0
        %v4069 = vadd.f32 %v3868, %v4068
        %v4070 = vpop.f32.mrb[0].mxu0
        %4071 = vmatprep.mubr.f32.mxu0 0.0
        %4072 = vmatmul.mubr.f32.gmra.mrb[0].mxu0 %v3896
        %v4073 = vpop.f32.mrb[0].mxu0
        %v4074 = vadd.f32 %v3868, %v4073
        %v4075 = vpop.f32.mrb[0].mxu0
        %4076 = vmatprep.mubr.f32.mxu0 0.0
        %4077 = vmatmul.mubr.f32.gmra.mrb[0].mxu0 %v3899
        %v4078 = vpop.f32.mrb[0].mxu0
        %v4079 = vadd.f32 %v3868, %v4078
        %v4080 = vpop.f32.mrb[0].mxu0
        %4081 = vmatprep.mubr.f32.mxu0 0.0
        %4082 = vmatmul.mubr.f32.gmra.mrb[0].mxu0 %v3902
        %v4083 = vpop.f32.mrb[0].mxu0
        %v4084 = vadd.f32 %v3868, %v4083
        %v4085 = vpop.f32.mrb[0].mxu0
        %4086 = vmatprep.mubr.f32.mxu0 0.0
        %4087 = vmatmul.mubr.f32.gmra.mrb[0].mxu0 %v3905
        %v4088 = vpop.f32.mrb[0].mxu0
        %v4089 = vadd.f32 %v3868, %v4088
        %v4090 = vpop.f32.mrb[0].mxu0
        %4091 = vmatprep.mubr.f32.mxu0 0.0
        %4092 = vmatmul.mubr.f32.gmra.mrb[0].mxu0 %v3908
        %v4093 = vpop.f32.mrb[0].mxu0
        %v4094 = vadd.f32 %v3868, %v4093
        %v4095 = vpop.f32.mrb[0].mxu0
        %4096 = vmatprep.mubr.f32.mxu0 0.0
        %4097 = vmatmul.mubr.f32.gmra.mrb[0].mxu0 %v3911
        %v4098 = vpop.f32.mrb[0].mxu0
        %v4099 = vadd.f32 %v3868, %v4098
        %v4100 = vpop.f32.mrb[0].mxu0
        %4101 = vmatprep.mubr.f32.mxu0 0.0
        %4102 = vmatmul.mubr.f32.gmra.mrb[0].mxu0 %v3914
        %v4103 = vpop.f32.mrb[0].mxu0
        %v4104 = vadd.f32 %v3868, %v4103
        %v4105 = vpop.f32.mrb[0].mxu0
        %4106 = vmatprep.mubr.f32.mxu0 0.0
        %4107 = vmatmul.mubr.f32.gmra.mrb[0].mxu0 %v3917
        %v4108 = vpop.f32.mrb[0].mxu0
        %v4109 = vadd.f32 %v3868, %v4108
        %v4110 = vpop.f32.mrb[0].mxu0
        %4111 = vmatprep.mubr.f32.mxu0 0.0
        %4112 = vmatmul.mubr.f32.gmra.mrb[0].mxu0 %v3920
        %v4113 = vpop.f32.mrb[0].mxu0
        %v4114 = vadd.f32 %v3868, %v4113
        %v4115 = vpop.f32.mrb[0].mxu0
        %4116 = vmatprep.mubr.f32.mxu0 0.0
        %4117 = vmatmul.mubr.f32.gmra.mrb[0].mxu0 %v3923
        %v4118 = vpop.f32.mrb[0].mxu0
        %v4119 = vadd.f32 %v3868, %v4118
        %v4120 = vpop.f32.mrb[0].mxu0
        %4121 = vmatprep.mubr.f32.mxu0 0.0
        %4122 = vmatmul.mubr.f32.gmra.mrb[0].mxu0 %v3926
        %v4123 = vpop.f32.mrb[0].mxu0
        %v4124 = vadd.f32 %v3868, %v4123
        %v4125 = vpop.f32.mrb[0].mxu0
        %4126 = vmatprep.mubr.f32.mxu0 0.0
        %4127 = vmatmul.mubr.f32.gmra.mrb[0].mxu0 %v3929
        %v4128 = vpop.f32.mrb[0].mxu0
        %v4129 = vadd.f32 %v3868, %v4128
        %v4130 = vpop.f32.mrb[0].mxu0
        %4131 = vmatprep.mubr.f32.mxu0 0.0
        %4132 = vmatmul.mubr.f32.gmra.mrb[0].mxu0 %v3932
        %v4133 = vpop.f32.mrb[0].mxu0
        %v4134 = vadd.f32 %v3868, %v4133
        %v4135 = vpop.f32.mrb[0].mxu0
        %4136 = vmatprep.mubr.f32.mxu0 0.0
        %4137 = vmatmul.mubr.f32.gmra.mrb[0].mxu0 %v3935
        %v4138 = vpop.f32.mrb[0].mxu0
        %v4139 = vadd.f32 %v3868, %v4138
        %v4140 = vpop.f32.mrb[0].mxu0
        %4141 = vmatprep.mubr.f32.mxu0 0.0
        %4142 = vmatmul.mubr.f32.gmra.mrb[0].mxu0 %v3938
        %v4143 = vpop.f32.mrb[0].mxu0
        %v4144 = vadd.f32 %v3868, %v4143
        %v4145 = vpop.f32.mrb[0].mxu0
        %4146 = vmatprep.mubr.f32.mxu0 0.0
        %4147 = vmatmul.mubr.f32.gmra.mrb[0].mxu0 %v3941
        %v4148 = vpop.f32.mrb[0].mxu0
        %v4149 = vadd.f32 %v3868, %v4148
        %v4150 = vpop.f32.mrb[0].mxu0
        %4151 = vmatprep.mubr.f32.mxu0 0.0
        %4152 = vmatmul.mubr.f32.gmra.mrb[0].mxu0 %v3944
        %v4153 = vpop.f32.mrb[0].mxu0
        %v4154 = vadd.f32 %v3868, %v4153
        %v4155 = vpop.f32.mrb[0].mxu0
        %4156 = vmatprep.mubr.f32.mxu0 0.0
        %4157 = vmatmul.mubr.f32.gmra.mrb[0].mxu0 %v3947
        %v4158 = vpop.f32.mrb[0].mxu0
        %v4159 = vadd.f32 %v3868, %v4158
        %v4160 = vpop.f32.mrb[0].mxu0
        %4161 = vmatprep.mubr.f32.mxu0 0.0
        %4162 = vmatmul.mubr.f32.gmra.mrb[0].mxu0 %v3950
        %v4163 = vpop.f32.mrb[0].mxu0
        %v4164 = vadd.f32 %v3868, %v4163
        %v4165 = vpop.f32.mrb[0].mxu0
        %4166 = vmatprep.mubr.f32.mxu0 0.0
        %4167 = vmatmul.mubr.f32.gmra.mrb[0].mxu0 %v3953
        %v4168 = vpop.f32.mrb[0].mxu0
        %v4169 = vadd.f32 %v3868, %v4168
        %v4170 = vpop.f32.mrb[0].mxu0
        %4171 = vmatprep.mubr.f32.mxu0 0.0
        %4172 = vmatmul.mubr.f32.gmra.mrb[0].mxu0 %v3956
        %v4173 = vpop.f32.mrb[0].mxu0
        %v4174 = vadd.f32 %v3868, %v4173
        %v4175 = vpop.f32.mrb[0].mxu0
        %4176 = vmatprep.mubr.f32.mxu0 0.0
        %4177 = vmatmul.mubr.f32.gmra.mrb[0].mxu0 %v3959
        %v4178 = vpop.f32.mrb[0].mxu0
        %v4179 = vadd.f32 %v3868, %v4178
        %v4180 = vpop.f32.mrb[0].mxu0
        %4181 = vmatprep.mubr.f32.mxu0 0.0
        %4182 = vmatmul.mubr.f32.gmra.mrb[0].mxu0 %v3962
        %v4183 = vpop.f32.mrb[0].mxu0
        %v4184 = vadd.f32 %v3868, %v4183
        %v4185 = vpop.f32.mrb[0].mxu0
        %4186 = vmatprep.mubr.f32.mxu0 0.0
        %4187 = vmatmul.mubr.f32.gmra.mrb[0].mxu0 %v3965
        %v4188 = vpop.f32.mrb[0].mxu0
        %v4189 = vadd.f32 %v3868, %v4188
        %v4190 = vpop.f32.mrb[0].mxu0
        %4191 = vdwg.mxu0
        %v4192 = vmax.f32 %v4034, 0.0
        %v4193 = vmax.f32 %v4039, 0.0
        %v4194 = vmax.f32 %v4044, 0.0
        %v4195 = vmax.f32 %v4049, 0.0
        %v4196 = vmax.f32 %v4054, 0.0
        %v4197 = vmax.f32 %v4059, 0.0
        %v4198 = vmax.f32 %v4064, 0.0
        %v4199 = vmax.f32 %v4069, 0.0
        %v4200 = vmax.f32 %v4074, 0.0
        %v4201 = vmax.f32 %v4079, 0.0
        %v4202 = vmax.f32 %v4084, 0.0
        %v4203 = vmax.f32 %v4089, 0.0
        %v4204 = vmax.f32 %v4094, 0.0
        %v4205 = vmax.f32 %v4099, 0.0
        %v4206 = vmax.f32 %v4104, 0.0
        %v4207 = vmax.f32 %v4109, 0.0
        %v4208 = vmax.f32 %v4114, 0.0
        %v4209 = vmax.f32 %v4119, 0.0
        %v4210 = vmax.f32 %v4124, 0.0
        %v4211 = vmax.f32 %v4129, 0.0
        %v4212 = vmax.f32 %v4134, 0.0
        %v4213 = vmax.f32 %v4139, 0.0
        %v4214 = vmax.f32 %v4144, 0.0
        %v4215 = vmax.f32 %v4149, 0.0
        %v4216 = vmax.f32 %v4154, 0.0
        %v4217 = vmax.f32 %v4159, 0.0
        %v4218 = vmax.f32 %v4164, 0.0
        %v4219 = vmax.f32 %v4169, 0.0
        %v4220 = vmax.f32 %v4174, 0.0
        %v4221 = vmax.f32 %v4179, 0.0
        %v4222 = vmax.f32 %v4184, 0.0
        %v4223 = vmax.f32 %v4189, 0.0
        %vm4257 = vcmask 1041408
        %v4258 = vrot.slane 0.0, 6
        %v4259 = vsel %vm4257, %v4258, %v4258
        %v4260 = vrot.slane %v4192, 6
        %v4261 = vrot.slane %v4193, 6
        %v4262 = vsel %vm4257, %v4260, %v4261
        %v4263 = vrot.slane %v4194, 6
        %v4264 = vrot.slane %v4195, 6
        %v4265 = vsel %vm4257, %v4263, %v4264
        %v4266 = vrot.slane %v4196, 6
        %v4267 = vrot.slane %v4197, 6
        %v4268 = vsel %vm4257, %v4266, %v4267
        %v4269 = vrot.slane %v4198, 6
        %v4270 = vrot.slane %v4199, 6
        %v4271 = vsel %vm4257, %v4269, %v4270
        %v4272 = vrot.slane %v4200, 6
        %v4273 = vrot.slane %v4201, 6
        %v4274 = vsel %vm4257, %v4272, %v4273
        %v4275 = vrot.slane %v4202, 6
        %v4276 = vrot.slane %v4203, 6
        %v4277 = vsel %vm4257, %v4275, %v4276
        %v4278 = vrot.slane %v4204, 6
        %v4279 = vrot.slane %v4205, 6
        %v4280 = vsel %vm4257, %v4278, %v4279
        %v4281 = vrot.slane %v4206, 6
        %v4282 = vrot.slane %v4207, 6
        %v4283 = vsel %vm4257, %v4281, %v4282
        %v4284 = vrot.slane %v4208, 6
        %v4285 = vrot.slane %v4209, 6
        %v4286 = vsel %vm4257, %v4284, %v4285
        %v4287 = vrot.slane %v4210, 6
        %v4288 = vrot.slane %v4211, 6
        %v4289 = vsel %vm4257, %v4287, %v4288
        %v4290 = vrot.slane %v4212, 6
        %v4291 = vrot.slane %v4213, 6
        %v4292 = vsel %vm4257, %v4290, %v4291
        %v4293 = vrot.slane %v4214, 6
        %v4294 = vrot.slane %v4215, 6
        %v4295 = vsel %vm4257, %v4293, %v4294
        %v4296 = vrot.slane %v4216, 6
        %v4297 = vrot.slane %v4217, 6
        %v4298 = vsel %vm4257, %v4296, %v4297
        %v4299 = vrot.slane %v4218, 6
        %v4300 = vrot.slane %v4219, 6
        %v4301 = vsel %vm4257, %v4299, %v4300
        %v4302 = vrot.slane %v4220, 6
        %v4303 = vrot.slane %v4221, 6
        %v4304 = vsel %vm4257, %v4302, %v4303
        %v4305 = vrot.slane %v4222, 6
        %v4306 = vrot.slane %v4223, 6
        %v4307 = vsel %vm4257, %v4305, %v4306
        %v4358 = vsel %vm4257, 0.0, %v4258
        %v4359 = vsel %vm4257, 0.0, %v4260
        %v4360 = vsel %vm4257, 0.0, %v4263
        %v4361 = vsel %vm4257, 0.0, %v4266
        %v4362 = vsel %vm4257, 0.0, %v4269
        %v4363 = vsel %vm4257, 0.0, %v4272
        %v4364 = vsel %vm4257, 0.0, %v4275
        %v4365 = vsel %vm4257, 0.0, %v4278
        %v4366 = vsel %vm4257, 0.0, %v4281
        %v4367 = vsel %vm4257, 0.0, %v4284
        %v4368 = vsel %vm4257, 0.0, %v4287
        %v4369 = vsel %vm4257, 0.0, %v4290
        %v4370 = vsel %vm4257, 0.0, %v4293
        %v4371 = vsel %vm4257, 0.0, %v4296
        %v4372 = vsel %vm4257, 0.0, %v4299
        %v4373 = vsel %vm4257, 0.0, %v4302
        %v4374 = vsel %vm4257, 0.0, %v4305
        %v4375 = vsel %vm4257, %v4258, 0.0
        %v4376 = vsel %vm4257, %v4261, 0.0
        %v4377 = vsel %vm4257, %v4264, 0.0
        %v4378 = vsel %vm4257, %v4267, 0.0
        %v4379 = vsel %vm4257, %v4270, 0.0
        %v4380 = vsel %vm4257, %v4273, 0.0
        %v4381 = vsel %vm4257, %v4276, 0.0
        %v4382 = vsel %vm4257, %v4279, 0.0
        %v4383 = vsel %vm4257, %v4282, 0.0
        %v4384 = vsel %vm4257, %v4285, 0.0
        %v4385 = vsel %vm4257, %v4288, 0.0
        %v4386 = vsel %vm4257, %v4291, 0.0
        %v4387 = vsel %vm4257, %v4294, 0.0
        %v4388 = vsel %vm4257, %v4297, 0.0
        %v4389 = vsel %vm4257, %v4300, 0.0
        %v4390 = vsel %vm4257, %v4303, 0.0
        %v4391 = vsel %vm4257, %v4306, 0.0
        %vm4422 = vcmask 1046528
        %v4423 = vrot.slane %v4358, 1
        %v4424 = vrot.slane %v4259, 1
        %v4425 = vsel %vm4422, %v4423, %v4424
        %v4426 = vrot.slane %v4375, 1
        %v4427 = vsel %vm4422, %v4424, %v4426
        %v4428 = vrot.slane %v4359, 1
        %v4429 = vrot.slane %v4262, 1
        %v4430 = vsel %vm4422, %v4428, %v4429
        %v4431 = vrot.slane %v4376, 1
        %v4432 = vsel %vm4422, %v4429, %v4431
        %v4433 = vrot.slane %v4360, 1
        %v4434 = vrot.slane %v4265, 1
        %v4435 = vsel %vm4422, %v4433, %v4434
        %v4436 = vrot.slane %v4377, 1
        %v4437 = vsel %vm4422, %v4434, %v4436
        %v4438 = vrot.slane %v4361, 1
        %v4439 = vrot.slane %v4268, 1
        %v4440 = vsel %vm4422, %v4438, %v4439
        %v4441 = vrot.slane %v4378, 1
        %v4442 = vsel %vm4422, %v4439, %v4441
        %v4443 = vrot.slane %v4362, 1
        %v4444 = vrot.slane %v4271, 1
        %v4445 = vsel %vm4422, %v4443, %v4444
        %v4446 = vrot.slane %v4379, 1
        %v4447 = vsel %vm4422, %v4444, %v4446
        %v4448 = vrot.slane %v4363, 1
        %v4449 = vrot.slane %v4274, 1
        %v4450 = vsel %vm4422, %v4448, %v4449
        %v4451 = vrot.slane %v4380, 1
        %v4452 = vsel %vm4422, %v4449, %v4451
        %v4453 = vrot.slane %v4364, 1
        %v4454 = vrot.slane %v4277, 1
        %v4455 = vsel %vm4422, %v4453, %v4454
        %v4456 = vrot.slane %v4381, 1
        %v4457 = vsel %vm4422, %v4454, %v4456
        %v4458 = vrot.slane %v4365, 1
        %v4459 = vrot.slane %v4280, 1
        %v4460 = vsel %vm4422, %v4458, %v4459
        %v4461 = vrot.slane %v4382, 1
        %v4462 = vsel %vm4422, %v4459, %v4461
        %v4463 = vrot.slane %v4366, 1
        %v4464 = vrot.slane %v4283, 1
        %v4465 = vsel %vm4422, %v4463, %v4464
        %v4466 = vrot.slane %v4383, 1
        %v4467 = vsel %vm4422, %v4464, %v4466
        %v4468 = vrot.slane %v4367, 1
        %v4469 = vrot.slane %v4286, 1
        %v4470 = vsel %vm4422, %v4468, %v4469
        %v4471 = vrot.slane %v4384, 1
        %v4472 = vsel %vm4422, %v4469, %v4471
        %v4473 = vrot.slane %v4368, 1
        %v4474 = vrot.slane %v4289, 1
        %v4475 = vsel %vm4422, %v4473, %v4474
        %v4476 = vrot.slane %v4385, 1
        %v4477 = vsel %vm4422, %v4474, %v4476
        %v4478 = vrot.slane %v4369, 1
        %v4479 = vrot.slane %v4292, 1
        %v4480 = vsel %vm4422, %v4478, %v4479
        %v4481 = vrot.slane %v4386, 1
        %v4482 = vsel %vm4422, %v4479, %v4481
        %v4483 = vrot.slane %v4370, 1
        %v4484 = vrot.slane %v4295, 1
        %v4485 = vsel %vm4422, %v4483, %v4484
        %v4486 = vrot.slane %v4387, 1
        %v4487 = vsel %vm4422, %v4484, %v4486
        %v4488 = vrot.slane %v4371, 1
        %v4489 = vrot.slane %v4298, 1
        %v4490 = vsel %vm4422, %v4488, %v4489
        %v4491 = vrot.slane %v4388, 1
        %v4492 = vsel %vm4422, %v4489, %v4491
        %v4493 = vrot.slane %v4372, 1
        %v4494 = vrot.slane %v4301, 1
        %v4495 = vsel %vm4422, %v4493, %v4494
        %v4496 = vrot.slane %v4389, 1
        %v4497 = vsel %vm4422, %v4494, %v4496
        %vm4498 = vcmask 1045504
        %v4499 = vrot.slane %v4358, 2
        %v4500 = vrot.slane %v4259, 2
        %v4501 = vsel %vm4498, %v4499, %v4500
        %v4502 = vrot.slane %v4375, 2
        %v4503 = vsel %vm4498, %v4500, %v4502
        %v4504 = vrot.slane %v4359, 2
        %v4505 = vrot.slane %v4262, 2
        %v4506 = vsel %vm4498, %v4504, %v4505
        %v4507 = vrot.slane %v4376, 2
        %v4508 = vsel %vm4498, %v4505, %v4507
        %v4509 = vrot.slane %v4360, 2
        %v4510 = vrot.slane %v4265, 2
        %v4511 = vsel %vm4498, %v4509, %v4510
        %v4512 = vrot.slane %v4377, 2
        %v4513 = vsel %vm4498, %v4510, %v4512
        %v4514 = vrot.slane %v4361, 2
        %v4515 = vrot.slane %v4268, 2
        %v4516 = vsel %vm4498, %v4514, %v4515
        %v4517 = vrot.slane %v4378, 2
        %v4518 = vsel %vm4498, %v4515, %v4517
        %v4519 = vrot.slane %v4362, 2
        %v4520 = vrot.slane %v4271, 2
        %v4521 = vsel %vm4498, %v4519, %v4520
        %v4522 = vrot.slane %v4379, 2
        %v4523 = vsel %vm4498, %v4520, %v4522
        %v4524 = vrot.slane %v4363, 2
        %v4525 = vrot.slane %v4274, 2
        %v4526 = vsel %vm4498, %v4524, %v4525
        %v4527 = vrot.slane %v4380, 2
        %v4528 = vsel %vm4498, %v4525, %v4527
        %v4529 = vrot.slane %v4364, 2
        %v4530 = vrot.slane %v4277, 2
        %v4531 = vsel %vm4498, %v4529, %v4530
        %v4532 = vrot.slane %v4381, 2
        %v4533 = vsel %vm4498, %v4530, %v4532
        %v4534 = vrot.slane %v4365, 2
        %v4535 = vrot.slane %v4280, 2
        %v4536 = vsel %vm4498, %v4534, %v4535
        %v4537 = vrot.slane %v4382, 2
        %v4538 = vsel %vm4498, %v4535, %v4537
        %v4539 = vrot.slane %v4366, 2
        %v4540 = vrot.slane %v4283, 2
        %v4541 = vsel %vm4498, %v4539, %v4540
        %v4542 = vrot.slane %v4383, 2
        %v4543 = vsel %vm4498, %v4540, %v4542
        %v4544 = vrot.slane %v4367, 2
        %v4545 = vrot.slane %v4286, 2
        %v4546 = vsel %vm4498, %v4544, %v4545
        %v4547 = vrot.slane %v4384, 2
        %v4548 = vsel %vm4498, %v4545, %v4547
        %v4549 = vrot.slane %v4368, 2
        %v4550 = vrot.slane %v4289, 2
        %v4551 = vsel %vm4498, %v4549, %v4550
        %v4552 = vrot.slane %v4385, 2
        %v4553 = vsel %vm4498, %v4550, %v4552
        %v4554 = vrot.slane %v4369, 2
        %v4555 = vrot.slane %v4292, 2
        %v4556 = vsel %vm4498, %v4554, %v4555
        %v4557 = vrot.slane %v4386, 2
        %v4558 = vsel %vm4498, %v4555, %v4557
        %v4559 = vrot.slane %v4370, 2
        %v4560 = vrot.slane %v4295, 2
        %v4561 = vsel %vm4498, %v4559, %v4560
        %v4562 = vrot.slane %v4387, 2
        %v4563 = vsel %vm4498, %v4560, %v4562
        %v4564 = vrot.slane %v4371, 2
        %v4565 = vrot.slane %v4298, 2
        %v4566 = vsel %vm4498, %v4564, %v4565
        %v4567 = vrot.slane %v4388, 2
        %v4568 = vsel %vm4498, %v4565, %v4567
        %v4569 = vrot.slane %v4372, 2
        %v4570 = vrot.slane %v4301, 2
        %v4571 = vsel %vm4498, %v4569, %v4570
        %v4572 = vrot.slane %v4389, 2
        %v4573 = vsel %vm4498, %v4570, %v4572
        %vm4574 = vcmask 1044480
        %v4575 = vrot.slane %v4358, 3
        %v4576 = vrot.slane %v4259, 3
        %v4577 = vsel %vm4574, %v4575, %v4576
        %v4578 = vrot.slane %v4375, 3
        %v4579 = vsel %vm4574, %v4576, %v4578
        %v4580 = vrot.slane %v4359, 3
        %v4581 = vrot.slane %v4262, 3
        %v4582 = vsel %vm4574, %v4580, %v4581
        %v4583 = vrot.slane %v4376, 3
        %v4584 = vsel %vm4574, %v4581, %v4583
        %v4585 = vrot.slane %v4360, 3
        %v4586 = vrot.slane %v4265, 3
        %v4587 = vsel %vm4574, %v4585, %v4586
        %v4588 = vrot.slane %v4377, 3
        %v4589 = vsel %vm4574, %v4586, %v4588
        %v4590 = vrot.slane %v4361, 3
        %v4591 = vrot.slane %v4268, 3
        %v4592 = vsel %vm4574, %v4590, %v4591
        %v4593 = vrot.slane %v4378, 3
        %v4594 = vsel %vm4574, %v4591, %v4593
        %v4595 = vrot.slane %v4362, 3
        %v4596 = vrot.slane %v4271, 3
        %v4597 = vsel %vm4574, %v4595, %v4596
        %v4598 = vrot.slane %v4379, 3
        %v4599 = vsel %vm4574, %v4596, %v4598
        %v4600 = vrot.slane %v4363, 3
        %v4601 = vrot.slane %v4274, 3
        %v4602 = vsel %vm4574, %v4600, %v4601
        %v4603 = vrot.slane %v4380, 3
        %v4604 = vsel %vm4574, %v4601, %v4603
        %v4605 = vrot.slane %v4364, 3
        %v4606 = vrot.slane %v4277, 3
        %v4607 = vsel %vm4574, %v4605, %v4606
        %v4608 = vrot.slane %v4381, 3
        %v4609 = vsel %vm4574, %v4606, %v4608
        %v4610 = vrot.slane %v4365, 3
        %v4611 = vrot.slane %v4280, 3
        %v4612 = vsel %vm4574, %v4610, %v4611
        %v4613 = vrot.slane %v4382, 3
        %v4614 = vsel %vm4574, %v4611, %v4613
        %v4615 = vrot.slane %v4366, 3
        %v4616 = vrot.slane %v4283, 3
        %v4617 = vsel %vm4574, %v4615, %v4616
        %v4618 = vrot.slane %v4383, 3
        %v4619 = vsel %vm4574, %v4616, %v4618
        %v4620 = vrot.slane %v4367, 3
        %v4621 = vrot.slane %v4286, 3
        %v4622 = vsel %vm4574, %v4620, %v4621
        %v4623 = vrot.slane %v4384, 3
        %v4624 = vsel %vm4574, %v4621, %v4623
        %v4625 = vrot.slane %v4368, 3
        %v4626 = vrot.slane %v4289, 3
        %v4627 = vsel %vm4574, %v4625, %v4626
        %v4628 = vrot.slane %v4385, 3
        %v4629 = vsel %vm4574, %v4626, %v4628
        %v4630 = vrot.slane %v4369, 3
        %v4631 = vrot.slane %v4292, 3
        %v4632 = vsel %vm4574, %v4630, %v4631
        %v4633 = vrot.slane %v4386, 3
        %v4634 = vsel %vm4574, %v4631, %v4633
        %v4635 = vrot.slane %v4370, 3
        %v4636 = vrot.slane %v4295, 3
        %v4637 = vsel %vm4574, %v4635, %v4636
        %v4638 = vrot.slane %v4387, 3
        %v4639 = vsel %vm4574, %v4636, %v4638
        %v4640 = vrot.slane %v4371, 3
        %v4641 = vrot.slane %v4298, 3
        %v4642 = vsel %vm4574, %v4640, %v4641
        %v4643 = vrot.slane %v4388, 3
        %v4644 = vsel %vm4574, %v4641, %v4643
        %v4645 = vrot.slane %v4372, 3
        %v4646 = vrot.slane %v4301, 3
        %v4647 = vsel %vm4574, %v4645, %v4646
        %v4648 = vrot.slane %v4389, 3
        %v4649 = vsel %vm4574, %v4646, %v4648
        %v4650 = vrot.slane %v4358, 4
        %v4651 = vrot.slane %v4259, 4
        %v4652 = vsel %vm297, %v4650, %v4651
        %v4653 = vrot.slane %v4375, 4
        %v4654 = vsel %vm297, %v4651, %v4653
        %v4655 = vrot.slane %v4359, 4
        %v4656 = vrot.slane %v4262, 4
        %v4657 = vsel %vm297, %v4655, %v4656
        %v4658 = vrot.slane %v4376, 4
        %v4659 = vsel %vm297, %v4656, %v4658
        %v4660 = vrot.slane %v4360, 4
        %v4661 = vrot.slane %v4265, 4
        %v4662 = vsel %vm297, %v4660, %v4661
        %v4663 = vrot.slane %v4377, 4
        %v4664 = vsel %vm297, %v4661, %v4663
        %v4665 = vrot.slane %v4361, 4
        %v4666 = vrot.slane %v4268, 4
        %v4667 = vsel %vm297, %v4665, %v4666
        %v4668 = vrot.slane %v4378, 4
        %v4669 = vsel %vm297, %v4666, %v4668
        %v4670 = vrot.slane %v4362, 4
        %v4671 = vrot.slane %v4271, 4
        %v4672 = vsel %vm297, %v4670, %v4671
        %v4673 = vrot.slane %v4379, 4
        %v4674 = vsel %vm297, %v4671, %v4673
        %v4675 = vrot.slane %v4363, 4
        %v4676 = vrot.slane %v4274, 4
        %v4677 = vsel %vm297, %v4675, %v4676
        %v4678 = vrot.slane %v4380, 4
        %v4679 = vsel %vm297, %v4676, %v4678
        %v4680 = vrot.slane %v4364, 4
        %v4681 = vrot.slane %v4277, 4
        %v4682 = vsel %vm297, %v4680, %v4681
        %v4683 = vrot.slane %v4381, 4
        %v4684 = vsel %vm297, %v4681, %v4683
        %v4685 = vrot.slane %v4365, 4
        %v4686 = vrot.slane %v4280, 4
        %v4687 = vsel %vm297, %v4685, %v4686
        %v4688 = vrot.slane %v4382, 4
        %v4689 = vsel %vm297, %v4686, %v4688
        %v4690 = vrot.slane %v4366, 4
        %v4691 = vrot.slane %v4283, 4
        %v4692 = vsel %vm297, %v4690, %v4691
        %v4693 = vrot.slane %v4383, 4
        %v4694 = vsel %vm297, %v4691, %v4693
        %v4695 = vrot.slane %v4367, 4
        %v4696 = vrot.slane %v4286, 4
        %v4697 = vsel %vm297, %v4695, %v4696
        %v4698 = vrot.slane %v4384, 4
        %v4699 = vsel %vm297, %v4696, %v4698
        %v4700 = vrot.slane %v4368, 4
        %v4701 = vrot.slane %v4289, 4
        %v4702 = vsel %vm297, %v4700, %v4701
        %v4703 = vrot.slane %v4385, 4
        %v4704 = vsel %vm297, %v4701, %v4703
        %v4705 = vrot.slane %v4369, 4
        %v4706 = vrot.slane %v4292, 4
        %v4707 = vsel %vm297, %v4705, %v4706
        %v4708 = vrot.slane %v4386, 4
        %v4709 = vsel %vm297, %v4706, %v4708
        %v4710 = vrot.slane %v4370, 4
        %v4711 = vrot.slane %v4295, 4
        %v4712 = vsel %vm297, %v4710, %v4711
        %v4713 = vrot.slane %v4387, 4
        %v4714 = vsel %vm297, %v4711, %v4713
        %v4715 = vrot.slane %v4371, 4
        %v4716 = vrot.slane %v4298, 4
        %v4717 = vsel %vm297, %v4715, %v4716
        %v4718 = vrot.slane %v4388, 4
        %v4719 = vsel %vm297, %v4716, %v4718
        %v4720 = vrot.slane %v4372, 4
        %v4721 = vrot.slane %v4301, 4
        %v4722 = vsel %vm297, %v4720, %v4721
        %v4723 = vrot.slane %v4389, 4
        %v4724 = vsel %vm297, %v4721, %v4723
        %v4757 = vrot.slane %v4373, 1
        %v4758 = vrot.slane %v4304, 1
        %v4759 = vsel %vm4422, %v4757, %v4758
        %v4760 = vrot.slane %v4390, 1
        %v4761 = vsel %vm4422, %v4758, %v4760
        %v4762 = vrot.slane %v4373, 2
        %v4763 = vrot.slane %v4304, 2
        %v4764 = vsel %vm4498, %v4762, %v4763
        %v4765 = vrot.slane %v4390, 2
        %v4766 = vsel %vm4498, %v4763, %v4765
        %v4767 = vrot.slane %v4373, 3
        %v4768 = vrot.slane %v4304, 3
        %v4769 = vsel %vm4574, %v4767, %v4768
        %v4770 = vrot.slane %v4390, 3
        %v4771 = vsel %vm4574, %v4768, %v4770
        %v4804 = vrot.slane %v4373, 4
        %v4805 = vrot.slane %v4304, 4
        %v4806 = vsel %vm297, %v4804, %v4805
        %v4807 = vrot.slane %v4390, 4
        %v4808 = vsel %vm297, %v4805, %v4807
        %v4811 = vrot.slane %v4374, 1
        %v4812 = vrot.slane %v4307, 1
        %v4813 = vsel %vm4422, %v4811, %v4812
        %v4814 = vrot.slane %v4391, 1
        %v4815 = vsel %vm4422, %v4812, %v4814
        %v4816 = vrot.slane %v4374, 2
        %v4817 = vrot.slane %v4307, 2
        %v4818 = vsel %vm4498, %v4816, %v4817
        %v4819 = vrot.slane %v4391, 2
        %v4820 = vsel %vm4498, %v4817, %v4819
        %v4853 = vrot.slane %v4374, 3
        %v4854 = vrot.slane %v4307, 3
        %v4855 = vsel %vm4574, %v4853, %v4854
        %v4856 = vrot.slane %v4391, 3
        %v4857 = vsel %vm4574, %v4854, %v4856
        %v4858 = vrot.slane %v4374, 4
        %v4859 = vrot.slane %v4307, 4
        %v4860 = vsel %vm297, %v4858, %v4859
        %v4861 = vrot.slane %v4391, 4
        %v4862 = vsel %vm297, %v4859, %v4861
        %4895 = vrot.lane.b32.xlu0 %v4425, 32
        %v4896 = vpop.permute.xlu0 %4895
        %4897 = vrot.lane.b32.xlu0 %v4427, 32
        %v4898 = vpop.permute.xlu0 %4897
        %4899 = vrot.lane.b32.xlu0 %v4430, 32
        %v4900 = vpop.permute.xlu0 %4899
        %4901 = vrot.lane.b32.xlu0 %v4432, 32
        %v4902 = vpop.permute.xlu0 %4901
        %4903 = vrot.lane.b32.xlu0 %v4435, 32
        %v4904 = vpop.permute.xlu0 %4903
        %4905 = vrot.lane.b32.xlu0 %v4437, 32
        %v4906 = vpop.permute.xlu0 %4905
        %4907 = vrot.lane.b32.xlu0 %v4440, 32
        %v4908 = vpop.permute.xlu0 %4907
        %4909 = vrot.lane.b32.xlu0 %v4442, 32
        %v4910 = vpop.permute.xlu0 %4909
        %4911 = vrot.lane.b32.xlu0 %v4445, 32
        %v4912 = vpop.permute.xlu0 %4911
        %4913 = vrot.lane.b32.xlu0 %v4447, 32
        %v4914 = vpop.permute.xlu0 %4913
        %4915 = vrot.lane.b32.xlu0 %v4450, 32
        %v4916 = vpop.permute.xlu0 %4915
        %4917 = vrot.lane.b32.xlu0 %v4452, 32
        %v4918 = vpop.permute.xlu0 %4917
        %4919 = vrot.lane.b32.xlu0 %v4455, 32
        %v4920 = vpop.permute.xlu0 %4919
        %4921 = vrot.lane.b32.xlu0 %v4457, 32
        %v4922 = vpop.permute.xlu0 %4921
        %4923 = vrot.lane.b32.xlu0 %v4460, 32
        %v4924 = vpop.permute.xlu0 %4923
        %4925 = vrot.lane.b32.xlu0 %v4462, 32
        %v4926 = vpop.permute.xlu0 %4925
        %4927 = vrot.lane.b32.xlu0 %v4465, 32
        %v4928 = vpop.permute.xlu0 %4927
        %4929 = vrot.lane.b32.xlu0 %v4467, 32
        %v4930 = vpop.permute.xlu0 %4929
        %4931 = vrot.lane.b32.xlu0 %v4470, 32
        %v4932 = vpop.permute.xlu0 %4931
        %4933 = vrot.lane.b32.xlu0 %v4472, 32
        %v4934 = vpop.permute.xlu0 %4933
        %4935 = vrot.lane.b32.xlu0 %v4475, 32
        %v4936 = vpop.permute.xlu0 %4935
        %4937 = vrot.lane.b32.xlu0 %v4477, 32
        %v4938 = vpop.permute.xlu0 %4937
        %4939 = vrot.lane.b32.xlu0 %v4480, 32
        %v4940 = vpop.permute.xlu0 %4939
        %4941 = vrot.lane.b32.xlu0 %v4482, 32
        %v4942 = vpop.permute.xlu0 %4941
        %4943 = vrot.lane.b32.xlu0 %v4485, 32
        %v4944 = vpop.permute.xlu0 %4943
        %4945 = vrot.lane.b32.xlu0 %v4487, 32
        %v4946 = vpop.permute.xlu0 %4945
        %4947 = vrot.lane.b32.xlu0 %v4490, 32
        %v4948 = vpop.permute.xlu0 %4947
        %4949 = vrot.lane.b32.xlu0 %v4492, 32
        %v4950 = vpop.permute.xlu0 %4949
        %4951 = vrot.lane.b32.xlu0 %v4495, 32
        %v4952 = vpop.permute.xlu0 %4951
        %4953 = vrot.lane.b32.xlu0 %v4497, 32
        %v4954 = vpop.permute.xlu0 %4953
        %4985 = vrot.lane.b32.xlu0 %v4501, 64
        %v4986 = vpop.permute.xlu0 %4985
        %4987 = vrot.lane.b32.xlu0 %v4503, 64
        %v4988 = vpop.permute.xlu0 %4987
        %4989 = vrot.lane.b32.xlu0 %v4506, 64
        %v4990 = vpop.permute.xlu0 %4989
        %4991 = vrot.lane.b32.xlu0 %v4508, 64
        %v4992 = vpop.permute.xlu0 %4991
        %4993 = vrot.lane.b32.xlu0 %v4511, 64
        %v4994 = vpop.permute.xlu0 %4993
        %4995 = vrot.lane.b32.xlu0 %v4513, 64
        %v4996 = vpop.permute.xlu0 %4995
        %4997 = vrot.lane.b32.xlu0 %v4516, 64
        %v4998 = vpop.permute.xlu0 %4997
        %4999 = vrot.lane.b32.xlu0 %v4518, 64
        %v5000 = vpop.permute.xlu0 %4999
        %5001 = vrot.lane.b32.xlu0 %v4521, 64
        %v5002 = vpop.permute.xlu0 %5001
        %5003 = vrot.lane.b32.xlu0 %v4523, 64
        %v5004 = vpop.permute.xlu0 %5003
        %5005 = vrot.lane.b32.xlu0 %v4526, 64
        %v5006 = vpop.permute.xlu0 %5005
        %5007 = vrot.lane.b32.xlu0 %v4528, 64
        %v5008 = vpop.permute.xlu0 %5007
        %5009 = vrot.lane.b32.xlu0 %v4531, 64
        %v5010 = vpop.permute.xlu0 %5009
        %5011 = vrot.lane.b32.xlu0 %v4533, 64
        %v5012 = vpop.permute.xlu0 %5011
        %5013 = vrot.lane.b32.xlu0 %v4536, 64
        %v5014 = vpop.permute.xlu0 %5013
        %5015 = vrot.lane.b32.xlu0 %v4538, 64
        %v5016 = vpop.permute.xlu0 %5015
        %5017 = vrot.lane.b32.xlu0 %v4541, 64
        %v5018 = vpop.permute.xlu0 %5017
        %5019 = vrot.lane.b32.xlu0 %v4543, 64
        %v5020 = vpop.permute.xlu0 %5019
        %5021 = vrot.lane.b32.xlu0 %v4546, 64
        %v5022 = vpop.permute.xlu0 %5021
        %5023 = vrot.lane.b32.xlu0 %v4548, 64
        %v5024 = vpop.permute.xlu0 %5023
        %5025 = vrot.lane.b32.xlu0 %v4551, 64
        %v5026 = vpop.permute.xlu0 %5025
        %5027 = vrot.lane.b32.xlu0 %v4553, 64
        %v5028 = vpop.permute.xlu0 %5027
        %5029 = vrot.lane.b32.xlu0 %v4556, 64
        %v5030 = vpop.permute.xlu0 %5029
        %5031 = vrot.lane.b32.xlu0 %v4558, 64
        %v5032 = vpop.permute.xlu0 %5031
        %5033 = vrot.lane.b32.xlu0 %v4561, 64
        %v5034 = vpop.permute.xlu0 %5033
        %5035 = vrot.lane.b32.xlu0 %v4563, 64
        %v5036 = vpop.permute.xlu0 %5035
        %5037 = vrot.lane.b32.xlu0 %v4566, 64
        %v5038 = vpop.permute.xlu0 %5037
        %5039 = vrot.lane.b32.xlu0 %v4568, 64
        %v5040 = vpop.permute.xlu0 %5039
        %5041 = vrot.lane.b32.xlu0 %v4571, 64
        %v5042 = vpop.permute.xlu0 %5041
        %5043 = vrot.lane.b32.xlu0 %v4573, 64
        %v5044 = vpop.permute.xlu0 %5043
        %5075 = vrot.lane.b32.xlu0 %v4577, 96
        %v5076 = vpop.permute.xlu0 %5075
        %5077 = vrot.lane.b32.xlu0 %v4579, 96
        %v5078 = vpop.permute.xlu0 %5077
        %5079 = vrot.lane.b32.xlu0 %v4582, 96
        %v5080 = vpop.permute.xlu0 %5079
        %5081 = vrot.lane.b32.xlu0 %v4584, 96
        %v5082 = vpop.permute.xlu0 %5081
        %5083 = vrot.lane.b32.xlu0 %v4587, 96
        %v5084 = vpop.permute.xlu0 %5083
        %5085 = vrot.lane.b32.xlu0 %v4589, 96
        %v5086 = vpop.permute.xlu0 %5085
        %5087 = vrot.lane.b32.xlu0 %v4592, 96
        %v5088 = vpop.permute.xlu0 %5087
        %5089 = vrot.lane.b32.xlu0 %v4594, 96
        %v5090 = vpop.permute.xlu0 %5089
        %5091 = vrot.lane.b32.xlu0 %v4597, 96
        %v5092 = vpop.permute.xlu0 %5091
        %5093 = vrot.lane.b32.xlu0 %v4599, 96
        %v5094 = vpop.permute.xlu0 %5093
        %5095 = vrot.lane.b32.xlu0 %v4602, 96
        %v5096 = vpop.permute.xlu0 %5095
        %5097 = vrot.lane.b32.xlu0 %v4604, 96
        %v5098 = vpop.permute.xlu0 %5097
        %5099 = vrot.lane.b32.xlu0 %v4607, 96
        %v5100 = vpop.permute.xlu0 %5099
        %5101 = vrot.lane.b32.xlu0 %v4609, 96
        %v5102 = vpop.permute.xlu0 %5101
        %5103 = vrot.lane.b32.xlu0 %v4612, 96
        %v5104 = vpop.permute.xlu0 %5103
        %5105 = vrot.lane.b32.xlu0 %v4614, 96
        %v5106 = vpop.permute.xlu0 %5105
        %5107 = vrot.lane.b32.xlu0 %v4617, 96
        %v5108 = vpop.permute.xlu0 %5107
        %5109 = vrot.lane.b32.xlu0 %v4619, 96
        %v5110 = vpop.permute.xlu0 %5109
        %5111 = vrot.lane.b32.xlu0 %v4622, 96
        %v5112 = vpop.permute.xlu0 %5111
        %5113 = vrot.lane.b32.xlu0 %v4624, 96
        %v5114 = vpop.permute.xlu0 %5113
        %5115 = vrot.lane.b32.xlu0 %v4627, 96
        %v5116 = vpop.permute.xlu0 %5115
        %5117 = vrot.lane.b32.xlu0 %v4629, 96
        %v5118 = vpop.permute.xlu0 %5117
        %5119 = vrot.lane.b32.xlu0 %v4632, 96
        %v5120 = vpop.permute.xlu0 %5119
        %5121 = vrot.lane.b32.xlu0 %v4634, 96
        %v5122 = vpop.permute.xlu0 %5121
        %5123 = vrot.lane.b32.xlu0 %v4637, 96
        %v5124 = vpop.permute.xlu0 %5123
        %5125 = vrot.lane.b32.xlu0 %v4639, 96
        %v5126 = vpop.permute.xlu0 %5125
        %5127 = vrot.lane.b32.xlu0 %v4642, 96
        %v5128 = vpop.permute.xlu0 %5127
        %5129 = vrot.lane.b32.xlu0 %v4644, 96
        %v5130 = vpop.permute.xlu0 %5129
        %5131 = vrot.lane.b32.xlu0 %v4647, 96
        %v5132 = vpop.permute.xlu0 %5131
        %5133 = vrot.lane.b32.xlu0 %v4649, 96
        %v5134 = vpop.permute.xlu0 %5133
        %5165 = vrot.lane.b32.xlu0 %v4358, 32
        %v5166 = vpop.permute.xlu0 %5165
        %5167 = vrot.lane.b32.xlu0 %v4259, 32
        %v5168 = vpop.permute.xlu0 %5167
        %5169 = vrot.lane.b32.xlu0 %v4359, 32
        %v5170 = vpop.permute.xlu0 %5169
        %5171 = vrot.lane.b32.xlu0 %v4262, 32
        %v5172 = vpop.permute.xlu0 %5171
        %5173 = vrot.lane.b32.xlu0 %v4360, 32
        %v5174 = vpop.permute.xlu0 %5173
        %5175 = vrot.lane.b32.xlu0 %v4265, 32
        %v5176 = vpop.permute.xlu0 %5175
        %5177 = vrot.lane.b32.xlu0 %v4361, 32
        %v5178 = vpop.permute.xlu0 %5177
        %5179 = vrot.lane.b32.xlu0 %v4268, 32
        %v5180 = vpop.permute.xlu0 %5179
        %5181 = vrot.lane.b32.xlu0 %v4362, 32
        %v5182 = vpop.permute.xlu0 %5181
        %5183 = vrot.lane.b32.xlu0 %v4271, 32
        %v5184 = vpop.permute.xlu0 %5183
        %5185 = vrot.lane.b32.xlu0 %v4363, 32
        %v5186 = vpop.permute.xlu0 %5185
        %5187 = vrot.lane.b32.xlu0 %v4274, 32
        %v5188 = vpop.permute.xlu0 %5187
        %5189 = vrot.lane.b32.xlu0 %v4364, 32
        %v5190 = vpop.permute.xlu0 %5189
        %5191 = vrot.lane.b32.xlu0 %v4277, 32
        %v5192 = vpop.permute.xlu0 %5191
        %5193 = vrot.lane.b32.xlu0 %v4365, 32
        %v5194 = vpop.permute.xlu0 %5193
        %5195 = vrot.lane.b32.xlu0 %v4280, 32
        %v5196 = vpop.permute.xlu0 %5195
        %5197 = vrot.lane.b32.xlu0 %v4366, 32
        %v5198 = vpop.permute.xlu0 %5197
        %5199 = vrot.lane.b32.xlu0 %v4283, 32
        %v5200 = vpop.permute.xlu0 %5199
        %5201 = vrot.lane.b32.xlu0 %v4367, 32
        %v5202 = vpop.permute.xlu0 %5201
        %5203 = vrot.lane.b32.xlu0 %v4286, 32
        %v5204 = vpop.permute.xlu0 %5203
        %5205 = vrot.lane.b32.xlu0 %v4368, 32
        %v5206 = vpop.permute.xlu0 %5205
        %5207 = vrot.lane.b32.xlu0 %v4289, 32
        %v5208 = vpop.permute.xlu0 %5207
        %5209 = vrot.lane.b32.xlu0 %v4369, 32
        %v5210 = vpop.permute.xlu0 %5209
        %5211 = vrot.lane.b32.xlu0 %v4292, 32
        %v5212 = vpop.permute.xlu0 %5211
        %5213 = vrot.lane.b32.xlu0 %v4370, 32
        %v5214 = vpop.permute.xlu0 %5213
        %5215 = vrot.lane.b32.xlu0 %v4295, 32
        %v5216 = vpop.permute.xlu0 %5215
        %5217 = vrot.lane.b32.xlu0 %v4371, 32
        %v5218 = vpop.permute.xlu0 %5217
        %5219 = vrot.lane.b32.xlu0 %v4298, 32
        %v5220 = vpop.permute.xlu0 %5219
        %5221 = vrot.lane.b32.xlu0 %v4372, 32
        %v5222 = vpop.permute.xlu0 %5221
        %5223 = vrot.lane.b32.xlu0 %v4301, 32
        %v5224 = vpop.permute.xlu0 %5223
        %5225 = vrot.lane.b32.xlu0 %v4373, 32
        %v5226 = vpop.permute.xlu0 %5225
        %5227 = vrot.lane.b32.xlu0 %v4304, 32
        %v5228 = vpop.permute.xlu0 %5227
        %5261 = vrot.lane.b32.xlu0 %v4425, 64
        %v5262 = vpop.permute.xlu0 %5261
        %5263 = vrot.lane.b32.xlu0 %v4427, 64
        %v5264 = vpop.permute.xlu0 %5263
        %5265 = vrot.lane.b32.xlu0 %v4430, 64
        %v5266 = vpop.permute.xlu0 %5265
        %5267 = vrot.lane.b32.xlu0 %v4432, 64
        %v5268 = vpop.permute.xlu0 %5267
        %5269 = vrot.lane.b32.xlu0 %v4435, 64
        %v5270 = vpop.permute.xlu0 %5269
        %5271 = vrot.lane.b32.xlu0 %v4437, 64
        %v5272 = vpop.permute.xlu0 %5271
        %5273 = vrot.lane.b32.xlu0 %v4440, 64
        %v5274 = vpop.permute.xlu0 %5273
        %5275 = vrot.lane.b32.xlu0 %v4442, 64
        %v5276 = vpop.permute.xlu0 %5275
        %5277 = vrot.lane.b32.xlu0 %v4445, 64
        %v5278 = vpop.permute.xlu0 %5277
        %5279 = vrot.lane.b32.xlu0 %v4447, 64
        %v5280 = vpop.permute.xlu0 %5279
        %5281 = vrot.lane.b32.xlu0 %v4450, 64
        %v5282 = vpop.permute.xlu0 %5281
        %5283 = vrot.lane.b32.xlu0 %v4452, 64
        %v5284 = vpop.permute.xlu0 %5283
        %5285 = vrot.lane.b32.xlu0 %v4455, 64
        %v5286 = vpop.permute.xlu0 %5285
        %5287 = vrot.lane.b32.xlu0 %v4457, 64
        %v5288 = vpop.permute.xlu0 %5287
        %5289 = vrot.lane.b32.xlu0 %v4460, 64
        %v5290 = vpop.permute.xlu0 %5289
        %5291 = vrot.lane.b32.xlu0 %v4462, 64
        %v5292 = vpop.permute.xlu0 %5291
        %5293 = vrot.lane.b32.xlu0 %v4465, 64
        %v5294 = vpop.permute.xlu0 %5293
        %5295 = vrot.lane.b32.xlu0 %v4467, 64
        %v5296 = vpop.permute.xlu0 %5295
        %5297 = vrot.lane.b32.xlu0 %v4470, 64
        %v5298 = vpop.permute.xlu0 %5297
        %5299 = vrot.lane.b32.xlu0 %v4472, 64
        %v5300 = vpop.permute.xlu0 %5299
        %5301 = vrot.lane.b32.xlu0 %v4475, 64
        %v5302 = vpop.permute.xlu0 %5301
        %5303 = vrot.lane.b32.xlu0 %v4477, 64
        %v5304 = vpop.permute.xlu0 %5303
        %5305 = vrot.lane.b32.xlu0 %v4480, 64
        %v5306 = vpop.permute.xlu0 %5305
        %5307 = vrot.lane.b32.xlu0 %v4482, 64
        %v5308 = vpop.permute.xlu0 %5307
        %5309 = vrot.lane.b32.xlu0 %v4485, 64
        %v5310 = vpop.permute.xlu0 %5309
        %5311 = vrot.lane.b32.xlu0 %v4487, 64
        %v5312 = vpop.permute.xlu0 %5311
        %5313 = vrot.lane.b32.xlu0 %v4490, 64
        %v5314 = vpop.permute.xlu0 %5313
        %5315 = vrot.lane.b32.xlu0 %v4492, 64
        %v5316 = vpop.permute.xlu0 %5315
        %5317 = vrot.lane.b32.xlu0 %v4495, 64
        %v5318 = vpop.permute.xlu0 %5317
        %5319 = vrot.lane.b32.xlu0 %v4497, 64
        %v5320 = vpop.permute.xlu0 %5319
        %5321 = vrot.lane.b32.xlu0 %v4759, 64
        %v5322 = vpop.permute.xlu0 %5321
        %5323 = vrot.lane.b32.xlu0 %v4761, 64
        %v5324 = vpop.permute.xlu0 %5323
        %5357 = vrot.lane.b32.xlu0 %v4501, 96
        %v5358 = vpop.permute.xlu0 %5357
        %5359 = vrot.lane.b32.xlu0 %v4503, 96
        %v5360 = vpop.permute.xlu0 %5359
        %5361 = vrot.lane.b32.xlu0 %v4506, 96
        %v5362 = vpop.permute.xlu0 %5361
        %5363 = vrot.lane.b32.xlu0 %v4508, 96
        %v5364 = vpop.permute.xlu0 %5363
        %5365 = vrot.lane.b32.xlu0 %v4511, 96
        %v5366 = vpop.permute.xlu0 %5365
        %5367 = vrot.lane.b32.xlu0 %v4513, 96
        %v5368 = vpop.permute.xlu0 %5367
        %5369 = vrot.lane.b32.xlu0 %v4516, 96
        %v5370 = vpop.permute.xlu0 %5369
        %5371 = vrot.lane.b32.xlu0 %v4518, 96
        %v5372 = vpop.permute.xlu0 %5371
        %5373 = vrot.lane.b32.xlu0 %v4521, 96
        %v5374 = vpop.permute.xlu0 %5373
        %5375 = vrot.lane.b32.xlu0 %v4523, 96
        %v5376 = vpop.permute.xlu0 %5375
        %5377 = vrot.lane.b32.xlu0 %v4526, 96
        %v5378 = vpop.permute.xlu0 %5377
        %5379 = vrot.lane.b32.xlu0 %v4528, 96
        %v5380 = vpop.permute.xlu0 %5379
        %5381 = vrot.lane.b32.xlu0 %v4531, 96
        %v5382 = vpop.permute.xlu0 %5381
        %5383 = vrot.lane.b32.xlu0 %v4533, 96
        %v5384 = vpop.permute.xlu0 %5383
        %5385 = vrot.lane.b32.xlu0 %v4536, 96
        %v5386 = vpop.permute.xlu0 %5385
        %5387 = vrot.lane.b32.xlu0 %v4538, 96
        %v5388 = vpop.permute.xlu0 %5387
        %5389 = vrot.lane.b32.xlu0 %v4541, 96
        %v5390 = vpop.permute.xlu0 %5389
        %5391 = vrot.lane.b32.xlu0 %v4543, 96
        %v5392 = vpop.permute.xlu0 %5391
        %5393 = vrot.lane.b32.xlu0 %v4546, 96
        %v5394 = vpop.permute.xlu0 %5393
        %5395 = vrot.lane.b32.xlu0 %v4548, 96
        %v5396 = vpop.permute.xlu0 %5395
        %5397 = vrot.lane.b32.xlu0 %v4551, 96
        %v5398 = vpop.permute.xlu0 %5397
        %5399 = vrot.lane.b32.xlu0 %v4553, 96
        %v5400 = vpop.permute.xlu0 %5399
        %5401 = vrot.lane.b32.xlu0 %v4556, 96
        %v5402 = vpop.permute.xlu0 %5401
        %5403 = vrot.lane.b32.xlu0 %v4558, 96
        %v5404 = vpop.permute.xlu0 %5403
        %5405 = vrot.lane.b32.xlu0 %v4561, 96
        %v5406 = vpop.permute.xlu0 %5405
        %5407 = vrot.lane.b32.xlu0 %v4563, 96
        %v5408 = vpop.permute.xlu0 %5407
        %5409 = vrot.lane.b32.xlu0 %v4566, 96
        %v5410 = vpop.permute.xlu0 %5409
        %5411 = vrot.lane.b32.xlu0 %v4568, 96
        %v5412 = vpop.permute.xlu0 %5411
        %5413 = vrot.lane.b32.xlu0 %v4571, 96
        %v5414 = vpop.permute.xlu0 %5413
        %5415 = vrot.lane.b32.xlu0 %v4573, 96
        %v5416 = vpop.permute.xlu0 %5415
        %5417 = vrot.lane.b32.xlu0 %v4764, 96
        %v5418 = vpop.permute.xlu0 %5417
        %5419 = vrot.lane.b32.xlu0 %v4766, 96
        %v5420 = vpop.permute.xlu0 %5419
        %5453 = vrot.lane.b32.xlu0 %v4652, 32
        %v5454 = vpop.permute.xlu0 %5453
        %5455 = vrot.lane.b32.xlu0 %v4654, 32
        %v5456 = vpop.permute.xlu0 %5455
        %5457 = vrot.lane.b32.xlu0 %v4657, 32
        %v5458 = vpop.permute.xlu0 %5457
        %5459 = vrot.lane.b32.xlu0 %v4659, 32
        %v5460 = vpop.permute.xlu0 %5459
        %5461 = vrot.lane.b32.xlu0 %v4662, 32
        %v5462 = vpop.permute.xlu0 %5461
        %5463 = vrot.lane.b32.xlu0 %v4664, 32
        %v5464 = vpop.permute.xlu0 %5463
        %5465 = vrot.lane.b32.xlu0 %v4667, 32
        %v5466 = vpop.permute.xlu0 %5465
        %5467 = vrot.lane.b32.xlu0 %v4669, 32
        %v5468 = vpop.permute.xlu0 %5467
        %5469 = vrot.lane.b32.xlu0 %v4672, 32
        %v5470 = vpop.permute.xlu0 %5469
        %5471 = vrot.lane.b32.xlu0 %v4674, 32
        %v5472 = vpop.permute.xlu0 %5471
        %5473 = vrot.lane.b32.xlu0 %v4677, 32
        %v5474 = vpop.permute.xlu0 %5473
        %5475 = vrot.lane.b32.xlu0 %v4679, 32
        %v5476 = vpop.permute.xlu0 %5475
        %5477 = vrot.lane.b32.xlu0 %v4682, 32
        %v5478 = vpop.permute.xlu0 %5477
        %5479 = vrot.lane.b32.xlu0 %v4684, 32
        %v5480 = vpop.permute.xlu0 %5479
        %5481 = vrot.lane.b32.xlu0 %v4687, 32
        %v5482 = vpop.permute.xlu0 %5481
        %5483 = vrot.lane.b32.xlu0 %v4689, 32
        %v5484 = vpop.permute.xlu0 %5483
        %5485 = vrot.lane.b32.xlu0 %v4692, 32
        %v5486 = vpop.permute.xlu0 %5485
        %5487 = vrot.lane.b32.xlu0 %v4694, 32
        %v5488 = vpop.permute.xlu0 %5487
        %5489 = vrot.lane.b32.xlu0 %v4697, 32
        %v5490 = vpop.permute.xlu0 %5489
        %5491 = vrot.lane.b32.xlu0 %v4699, 32
        %v5492 = vpop.permute.xlu0 %5491
        %5493 = vrot.lane.b32.xlu0 %v4702, 32
        %v5494 = vpop.permute.xlu0 %5493
        %5495 = vrot.lane.b32.xlu0 %v4704, 32
        %v5496 = vpop.permute.xlu0 %5495
        %5497 = vrot.lane.b32.xlu0 %v4707, 32
        %v5498 = vpop.permute.xlu0 %5497
        %5499 = vrot.lane.b32.xlu0 %v4709, 32
        %v5500 = vpop.permute.xlu0 %5499
        %5501 = vrot.lane.b32.xlu0 %v4712, 32
        %v5502 = vpop.permute.xlu0 %5501
        %5503 = vrot.lane.b32.xlu0 %v4714, 32
        %v5504 = vpop.permute.xlu0 %5503
        %5505 = vrot.lane.b32.xlu0 %v4717, 32
        %v5506 = vpop.permute.xlu0 %5505
        %5507 = vrot.lane.b32.xlu0 %v4719, 32
        %v5508 = vpop.permute.xlu0 %5507
        %5509 = vrot.lane.b32.xlu0 %v4722, 32
        %v5510 = vpop.permute.xlu0 %5509
        %5511 = vrot.lane.b32.xlu0 %v4724, 32
        %v5512 = vpop.permute.xlu0 %5511
        %5513 = vrot.lane.b32.xlu0 %v4806, 32
        %v5514 = vpop.permute.xlu0 %5513
        %5515 = vrot.lane.b32.xlu0 %v4808, 32
        %v5516 = vpop.permute.xlu0 %5515
        %5549 = vrot.lane.b32.xlu0 %v4359, 64
        %v5550 = vpop.permute.xlu0 %5549
        %5551 = vrot.lane.b32.xlu0 %v4262, 64
        %v5552 = vpop.permute.xlu0 %5551
        %5553 = vrot.lane.b32.xlu0 %v4360, 64
        %v5554 = vpop.permute.xlu0 %5553
        %5555 = vrot.lane.b32.xlu0 %v4265, 64
        %v5556 = vpop.permute.xlu0 %5555
        %5557 = vrot.lane.b32.xlu0 %v4361, 64
        %v5558 = vpop.permute.xlu0 %5557
        %5559 = vrot.lane.b32.xlu0 %v4268, 64
        %v5560 = vpop.permute.xlu0 %5559
        %5561 = vrot.lane.b32.xlu0 %v4362, 64
        %v5562 = vpop.permute.xlu0 %5561
        %5563 = vrot.lane.b32.xlu0 %v4271, 64
        %v5564 = vpop.permute.xlu0 %5563
        %5565 = vrot.lane.b32.xlu0 %v4363, 64
        %v5566 = vpop.permute.xlu0 %5565
        %5567 = vrot.lane.b32.xlu0 %v4274, 64
        %v5568 = vpop.permute.xlu0 %5567
        %5569 = vrot.lane.b32.xlu0 %v4364, 64
        %v5570 = vpop.permute.xlu0 %5569
        %5571 = vrot.lane.b32.xlu0 %v4277, 64
        %v5572 = vpop.permute.xlu0 %5571
        %5573 = vrot.lane.b32.xlu0 %v4365, 64
        %v5574 = vpop.permute.xlu0 %5573
        %5575 = vrot.lane.b32.xlu0 %v4280, 64
        %v5576 = vpop.permute.xlu0 %5575
        %5577 = vrot.lane.b32.xlu0 %v4366, 64
        %v5578 = vpop.permute.xlu0 %5577
        %5579 = vrot.lane.b32.xlu0 %v4283, 64
        %v5580 = vpop.permute.xlu0 %5579
        %5581 = vrot.lane.b32.xlu0 %v4367, 64
        %v5582 = vpop.permute.xlu0 %5581
        %5583 = vrot.lane.b32.xlu0 %v4286, 64
        %v5584 = vpop.permute.xlu0 %5583
        %5585 = vrot.lane.b32.xlu0 %v4368, 64
        %v5586 = vpop.permute.xlu0 %5585
        %5587 = vrot.lane.b32.xlu0 %v4289, 64
        %v5588 = vpop.permute.xlu0 %5587
        %5589 = vrot.lane.b32.xlu0 %v4369, 64
        %v5590 = vpop.permute.xlu0 %5589
        %5591 = vrot.lane.b32.xlu0 %v4292, 64
        %v5592 = vpop.permute.xlu0 %5591
        %5593 = vrot.lane.b32.xlu0 %v4370, 64
        %v5594 = vpop.permute.xlu0 %5593
        %5595 = vrot.lane.b32.xlu0 %v4295, 64
        %v5596 = vpop.permute.xlu0 %5595
        %5597 = vrot.lane.b32.xlu0 %v4371, 64
        %v5598 = vpop.permute.xlu0 %5597
        %5599 = vrot.lane.b32.xlu0 %v4298, 64
        %v5600 = vpop.permute.xlu0 %5599
        %5601 = vrot.lane.b32.xlu0 %v4372, 64
        %v5602 = vpop.permute.xlu0 %5601
        %5603 = vrot.lane.b32.xlu0 %v4301, 64
        %v5604 = vpop.permute.xlu0 %5603
        %5605 = vrot.lane.b32.xlu0 %v4373, 64
        %v5606 = vpop.permute.xlu0 %5605
        %5607 = vrot.lane.b32.xlu0 %v4304, 64
        %v5608 = vpop.permute.xlu0 %5607
        %5609 = vrot.lane.b32.xlu0 %v4374, 64
        %v5610 = vpop.permute.xlu0 %5609
        %5611 = vrot.lane.b32.xlu0 %v4307, 64
        %v5612 = vpop.permute.xlu0 %5611
        %5645 = vrot.lane.b32.xlu0 %v4430, 96
        %v5646 = vpop.permute.xlu0 %5645
        %5647 = vrot.lane.b32.xlu0 %v4432, 96
        %v5648 = vpop.permute.xlu0 %5647
        %5649 = vrot.lane.b32.xlu0 %v4435, 96
        %v5650 = vpop.permute.xlu0 %5649
        %5651 = vrot.lane.b32.xlu0 %v4437, 96
        %v5652 = vpop.permute.xlu0 %5651
        %5653 = vrot.lane.b32.xlu0 %v4440, 96
        %v5654 = vpop.permute.xlu0 %5653
        %5655 = vrot.lane.b32.xlu0 %v4442, 96
        %v5656 = vpop.permute.xlu0 %5655
        %5657 = vrot.lane.b32.xlu0 %v4445, 96
        %v5658 = vpop.permute.xlu0 %5657
        %5659 = vrot.lane.b32.xlu0 %v4447, 96
        %v5660 = vpop.permute.xlu0 %5659
        %5661 = vrot.lane.b32.xlu0 %v4450, 96
        %v5662 = vpop.permute.xlu0 %5661
        %5663 = vrot.lane.b32.xlu0 %v4452, 96
        %v5664 = vpop.permute.xlu0 %5663
        %5665 = vrot.lane.b32.xlu0 %v4455, 96
        %v5666 = vpop.permute.xlu0 %5665
        %5667 = vrot.lane.b32.xlu0 %v4457, 96
        %v5668 = vpop.permute.xlu0 %5667
        %5669 = vrot.lane.b32.xlu0 %v4460, 96
        %v5670 = vpop.permute.xlu0 %5669
        %5671 = vrot.lane.b32.xlu0 %v4462, 96
        %v5672 = vpop.permute.xlu0 %5671
        %5673 = vrot.lane.b32.xlu0 %v4465, 96
        %v5674 = vpop.permute.xlu0 %5673
        %5675 = vrot.lane.b32.xlu0 %v4467, 96
        %v5676 = vpop.permute.xlu0 %5675
        %5677 = vrot.lane.b32.xlu0 %v4470, 96
        %v5678 = vpop.permute.xlu0 %5677
        %5679 = vrot.lane.b32.xlu0 %v4472, 96
        %v5680 = vpop.permute.xlu0 %5679
        %5681 = vrot.lane.b32.xlu0 %v4475, 96
        %v5682 = vpop.permute.xlu0 %5681
        %5683 = vrot.lane.b32.xlu0 %v4477, 96
        %v5684 = vpop.permute.xlu0 %5683
        %5685 = vrot.lane.b32.xlu0 %v4480, 96
        %v5686 = vpop.permute.xlu0 %5685
        %5687 = vrot.lane.b32.xlu0 %v4482, 96
        %v5688 = vpop.permute.xlu0 %5687
        %5689 = vrot.lane.b32.xlu0 %v4485, 96
        %v5690 = vpop.permute.xlu0 %5689
        %5691 = vrot.lane.b32.xlu0 %v4487, 96
        %v5692 = vpop.permute.xlu0 %5691
        %5693 = vrot.lane.b32.xlu0 %v4490, 96
        %v5694 = vpop.permute.xlu0 %5693
        %5695 = vrot.lane.b32.xlu0 %v4492, 96
        %v5696 = vpop.permute.xlu0 %5695
        %5697 = vrot.lane.b32.xlu0 %v4495, 96
        %v5698 = vpop.permute.xlu0 %5697
        %5699 = vrot.lane.b32.xlu0 %v4497, 96
        %v5700 = vpop.permute.xlu0 %5699
        %5701 = vrot.lane.b32.xlu0 %v4759, 96
        %v5702 = vpop.permute.xlu0 %5701
        %5703 = vrot.lane.b32.xlu0 %v4761, 96
        %v5704 = vpop.permute.xlu0 %5703
        %5705 = vrot.lane.b32.xlu0 %v4813, 96
        %v5706 = vpop.permute.xlu0 %5705
        %5707 = vrot.lane.b32.xlu0 %v4815, 96
        %v5708 = vpop.permute.xlu0 %5707
        %5741 = vrot.lane.b32.xlu0 %v4582, 32
        %v5742 = vpop.permute.xlu0 %5741
        %5743 = vrot.lane.b32.xlu0 %v4584, 32
        %v5744 = vpop.permute.xlu0 %5743
        %5745 = vrot.lane.b32.xlu0 %v4587, 32
        %v5746 = vpop.permute.xlu0 %5745
        %5747 = vrot.lane.b32.xlu0 %v4589, 32
        %v5748 = vpop.permute.xlu0 %5747
        %5749 = vrot.lane.b32.xlu0 %v4592, 32
        %v5750 = vpop.permute.xlu0 %5749
        %5751 = vrot.lane.b32.xlu0 %v4594, 32
        %v5752 = vpop.permute.xlu0 %5751
        %5753 = vrot.lane.b32.xlu0 %v4597, 32
        %v5754 = vpop.permute.xlu0 %5753
        %5755 = vrot.lane.b32.xlu0 %v4599, 32
        %v5756 = vpop.permute.xlu0 %5755
        %5757 = vrot.lane.b32.xlu0 %v4602, 32
        %v5758 = vpop.permute.xlu0 %5757
        %5759 = vrot.lane.b32.xlu0 %v4604, 32
        %v5760 = vpop.permute.xlu0 %5759
        %5761 = vrot.lane.b32.xlu0 %v4607, 32
        %v5762 = vpop.permute.xlu0 %5761
        %5763 = vrot.lane.b32.xlu0 %v4609, 32
        %v5764 = vpop.permute.xlu0 %5763
        %5765 = vrot.lane.b32.xlu0 %v4612, 32
        %v5766 = vpop.permute.xlu0 %5765
        %5767 = vrot.lane.b32.xlu0 %v4614, 32
        %v5768 = vpop.permute.xlu0 %5767
        %5769 = vrot.lane.b32.xlu0 %v4617, 32
        %v5770 = vpop.permute.xlu0 %5769
        %5771 = vrot.lane.b32.xlu0 %v4619, 32
        %v5772 = vpop.permute.xlu0 %5771
        %5773 = vrot.lane.b32.xlu0 %v4622, 32
        %v5774 = vpop.permute.xlu0 %5773
        %5775 = vrot.lane.b32.xlu0 %v4624, 32
        %v5776 = vpop.permute.xlu0 %5775
        %5777 = vrot.lane.b32.xlu0 %v4627, 32
        %v5778 = vpop.permute.xlu0 %5777
        %5779 = vrot.lane.b32.xlu0 %v4629, 32
        %v5780 = vpop.permute.xlu0 %5779
        %5781 = vrot.lane.b32.xlu0 %v4632, 32
        %v5782 = vpop.permute.xlu0 %5781
        %5783 = vrot.lane.b32.xlu0 %v4634, 32
        %v5784 = vpop.permute.xlu0 %5783
        %5785 = vrot.lane.b32.xlu0 %v4637, 32
        %v5786 = vpop.permute.xlu0 %5785
        %5787 = vrot.lane.b32.xlu0 %v4639, 32
        %v5788 = vpop.permute.xlu0 %5787
        %5789 = vrot.lane.b32.xlu0 %v4642, 32
        %v5790 = vpop.permute.xlu0 %5789
        %5791 = vrot.lane.b32.xlu0 %v4644, 32
        %v5792 = vpop.permute.xlu0 %5791
        %5793 = vrot.lane.b32.xlu0 %v4647, 32
        %v5794 = vpop.permute.xlu0 %5793
        %5795 = vrot.lane.b32.xlu0 %v4649, 32
        %v5796 = vpop.permute.xlu0 %5795
        %5797 = vrot.lane.b32.xlu0 %v4769, 32
        %v5798 = vpop.permute.xlu0 %5797
        %5799 = vrot.lane.b32.xlu0 %v4771, 32
        %v5800 = vpop.permute.xlu0 %5799
        %5801 = vrot.lane.b32.xlu0 %v4855, 32
        %v5802 = vpop.permute.xlu0 %5801
        %5803 = vrot.lane.b32.xlu0 %v4857, 32
        %v5804 = vpop.permute.xlu0 %5803
        %5837 = vrot.lane.b32.xlu0 %v4657, 64
        %v5838 = vpop.permute.xlu0 %5837
        %5839 = vrot.lane.b32.xlu0 %v4659, 64
        %v5840 = vpop.permute.xlu0 %5839
        %5841 = vrot.lane.b32.xlu0 %v4662, 64
        %v5842 = vpop.permute.xlu0 %5841
        %5843 = vrot.lane.b32.xlu0 %v4664, 64
        %v5844 = vpop.permute.xlu0 %5843
        %5845 = vrot.lane.b32.xlu0 %v4667, 64
        %v5846 = vpop.permute.xlu0 %5845
        %5847 = vrot.lane.b32.xlu0 %v4669, 64
        %v5848 = vpop.permute.xlu0 %5847
        %5849 = vrot.lane.b32.xlu0 %v4672, 64
        %v5850 = vpop.permute.xlu0 %5849
        %5851 = vrot.lane.b32.xlu0 %v4674, 64
        %v5852 = vpop.permute.xlu0 %5851
        %5853 = vrot.lane.b32.xlu0 %v4677, 64
        %v5854 = vpop.permute.xlu0 %5853
        %5855 = vrot.lane.b32.xlu0 %v4679, 64
        %v5856 = vpop.permute.xlu0 %5855
        %5857 = vrot.lane.b32.xlu0 %v4682, 64
        %v5858 = vpop.permute.xlu0 %5857
        %5859 = vrot.lane.b32.xlu0 %v4684, 64
        %v5860 = vpop.permute.xlu0 %5859
        %5861 = vrot.lane.b32.xlu0 %v4687, 64
        %v5862 = vpop.permute.xlu0 %5861
        %5863 = vrot.lane.b32.xlu0 %v4689, 64
        %v5864 = vpop.permute.xlu0 %5863
        %5865 = vrot.lane.b32.xlu0 %v4692, 64
        %v5866 = vpop.permute.xlu0 %5865
        %5867 = vrot.lane.b32.xlu0 %v4694, 64
        %v5868 = vpop.permute.xlu0 %5867
        %5869 = vrot.lane.b32.xlu0 %v4697, 64
        %v5870 = vpop.permute.xlu0 %5869
        %5871 = vrot.lane.b32.xlu0 %v4699, 64
        %v5872 = vpop.permute.xlu0 %5871
        %5873 = vrot.lane.b32.xlu0 %v4702, 64
        %v5874 = vpop.permute.xlu0 %5873
        %5875 = vrot.lane.b32.xlu0 %v4704, 64
        %v5876 = vpop.permute.xlu0 %5875
        %5877 = vrot.lane.b32.xlu0 %v4707, 64
        %v5878 = vpop.permute.xlu0 %5877
        %5879 = vrot.lane.b32.xlu0 %v4709, 64
        %v5880 = vpop.permute.xlu0 %5879
        %5881 = vrot.lane.b32.xlu0 %v4712, 64
        %v5882 = vpop.permute.xlu0 %5881
        %5883 = vrot.lane.b32.xlu0 %v4714, 64
        %v5884 = vpop.permute.xlu0 %5883
        %5885 = vrot.lane.b32.xlu0 %v4717, 64
        %v5886 = vpop.permute.xlu0 %5885
        %5887 = vrot.lane.b32.xlu0 %v4719, 64
        %v5888 = vpop.permute.xlu0 %5887
        %5889 = vrot.lane.b32.xlu0 %v4722, 64
        %v5890 = vpop.permute.xlu0 %5889
        %5891 = vrot.lane.b32.xlu0 %v4724, 64
        %v5892 = vpop.permute.xlu0 %5891
        %5893 = vrot.lane.b32.xlu0 %v4806, 64
        %v5894 = vpop.permute.xlu0 %5893
        %5895 = vrot.lane.b32.xlu0 %v4808, 64
        %v5896 = vpop.permute.xlu0 %5895
        %5897 = vrot.lane.b32.xlu0 %v4860, 64
        %v5898 = vpop.permute.xlu0 %5897
        %5899 = vrot.lane.b32.xlu0 %v4862, 64
        %v5900 = vpop.permute.xlu0 %5899
        %5933 = vrot.lane.b32.xlu0 %v4360, 96
        %v5934 = vpop.permute.xlu0 %5933
        %5935 = vrot.lane.b32.xlu0 %v4265, 96
        %v5936 = vpop.permute.xlu0 %5935
        %5937 = vrot.lane.b32.xlu0 %v4361, 96
        %v5938 = vpop.permute.xlu0 %5937
        %5939 = vrot.lane.b32.xlu0 %v4268, 96
        %v5940 = vpop.permute.xlu0 %5939
        %5941 = vrot.lane.b32.xlu0 %v4362, 96
        %v5942 = vpop.permute.xlu0 %5941
        %5943 = vrot.lane.b32.xlu0 %v4271, 96
        %v5944 = vpop.permute.xlu0 %5943
        %5945 = vrot.lane.b32.xlu0 %v4363, 96
        %v5946 = vpop.permute.xlu0 %5945
        %5947 = vrot.lane.b32.xlu0 %v4274, 96
        %v5948 = vpop.permute.xlu0 %5947
        %5949 = vrot.lane.b32.xlu0 %v4364, 96
        %v5950 = vpop.permute.xlu0 %5949
        %5951 = vrot.lane.b32.xlu0 %v4277, 96
        %v5952 = vpop.permute.xlu0 %5951
        %5953 = vrot.lane.b32.xlu0 %v4365, 96
        %v5954 = vpop.permute.xlu0 %5953
        %5955 = vrot.lane.b32.xlu0 %v4280, 96
        %v5956 = vpop.permute.xlu0 %5955
        %5957 = vrot.lane.b32.xlu0 %v4366, 96
        %v5958 = vpop.permute.xlu0 %5957
        %5959 = vrot.lane.b32.xlu0 %v4283, 96
        %v5960 = vpop.permute.xlu0 %5959
        %5961 = vrot.lane.b32.xlu0 %v4367, 96
        %v5962 = vpop.permute.xlu0 %5961
        %5963 = vrot.lane.b32.xlu0 %v4286, 96
        %v5964 = vpop.permute.xlu0 %5963
        %5965 = vrot.lane.b32.xlu0 %v4368, 96
        %v5966 = vpop.permute.xlu0 %5965
        %5967 = vrot.lane.b32.xlu0 %v4289, 96
        %v5968 = vpop.permute.xlu0 %5967
        %5969 = vrot.lane.b32.xlu0 %v4369, 96
        %v5970 = vpop.permute.xlu0 %5969
        %5971 = vrot.lane.b32.xlu0 %v4292, 96
        %v5972 = vpop.permute.xlu0 %5971
        %5973 = vrot.lane.b32.xlu0 %v4370, 96
        %v5974 = vpop.permute.xlu0 %5973
        %5975 = vrot.lane.b32.xlu0 %v4295, 96
        %v5976 = vpop.permute.xlu0 %5975
        %5977 = vrot.lane.b32.xlu0 %v4371, 96
        %v5978 = vpop.permute.xlu0 %5977
        %5979 = vrot.lane.b32.xlu0 %v4298, 96
        %v5980 = vpop.permute.xlu0 %5979
        %5981 = vrot.lane.b32.xlu0 %v4372, 96
        %v5982 = vpop.permute.xlu0 %5981
        %5983 = vrot.lane.b32.xlu0 %v4301, 96
        %v5984 = vpop.permute.xlu0 %5983
        %5985 = vrot.lane.b32.xlu0 %v4373, 96
        %v5986 = vpop.permute.xlu0 %5985
        %5987 = vrot.lane.b32.xlu0 %v4304, 96
        %v5988 = vpop.permute.xlu0 %5987
        %5989 = vrot.lane.b32.xlu0 %v4374, 96
        %v5990 = vpop.permute.xlu0 %5989
        %5991 = vrot.lane.b32.xlu0 %v4307, 96
        %v5992 = vpop.permute.xlu0 %5991
        %5993 = vrot.lane.b32.xlu0 %v4358, 96
        %v5994 = vpop.permute.xlu0 %5993
        %5995 = vrot.lane.b32.xlu0 %v4259, 96
        %v5996 = vpop.permute.xlu0 %5995
        %vm6029 = vcmask 261120
        %v6030 = vsel %vm6029, %v4358, %v4896
        %v6031 = vsel %vm6029, %v4259, %v4898
        %v6032 = vsel %vm6029, %v4359, %v4900
        %v6033 = vsel %vm6029, %v4262, %v4902
        %v6034 = vsel %vm6029, %v4360, %v4904
        %v6035 = vsel %vm6029, %v4265, %v4906
        %v6036 = vsel %vm6029, %v4361, %v4908
        %v6037 = vsel %vm6029, %v4268, %v4910
        %v6038 = vsel %vm6029, %v4362, %v4912
        %v6039 = vsel %vm6029, %v4271, %v4914
        %v6040 = vsel %vm6029, %v4363, %v4916
        %v6041 = vsel %vm6029, %v4274, %v4918
        %v6042 = vsel %vm6029, %v4364, %v4920
        %v6043 = vsel %vm6029, %v4277, %v4922
        %v6044 = vsel %vm6029, %v4365, %v4924
        %v6045 = vsel %vm6029, %v4280, %v4926
        %v6046 = vsel %vm6029, %v4366, %v4928
        %v6047 = vsel %vm6029, %v4283, %v4930
        %v6048 = vsel %vm6029, %v4367, %v4932
        %v6049 = vsel %vm6029, %v4286, %v4934
        %v6050 = vsel %vm6029, %v4368, %v4936
        %v6051 = vsel %vm6029, %v4289, %v4938
        %v6052 = vsel %vm6029, %v4369, %v4940
        %v6053 = vsel %vm6029, %v4292, %v4942
        %v6054 = vsel %vm6029, %v4370, %v4944
        %v6055 = vsel %vm6029, %v4295, %v4946
        %v6056 = vsel %vm6029, %v4371, %v4948
        %v6057 = vsel %vm6029, %v4298, %v4950
        %v6058 = vsel %vm6029, %v4372, %v4952
        %v6059 = vsel %vm6029, %v4301, %v4954
        %v6060 = vsel %vm3870, %v6030, %v4986
        %v6061 = vsel %vm3870, %v6031, %v4988
        %v6062 = vsel %vm3870, %v6032, %v4990
        %v6063 = vsel %vm3870, %v6033, %v4992
        %v6064 = vsel %vm3870, %v6034, %v4994
        %v6065 = vsel %vm3870, %v6035, %v4996
        %v6066 = vsel %vm3870, %v6036, %v4998
        %v6067 = vsel %vm3870, %v6037, %v5000
        %v6068 = vsel %vm3870, %v6038, %v5002
        %v6069 = vsel %vm3870, %v6039, %v5004
        %v6070 = vsel %vm3870, %v6040, %v5006
        %v6071 = vsel %vm3870, %v6041, %v5008
        %v6072 = vsel %vm3870, %v6042, %v5010
        %v6073 = vsel %vm3870, %v6043, %v5012
        %v6074 = vsel %vm3870, %v6044, %v5014
        %v6075 = vsel %vm3870, %v6045, %v5016
        %v6076 = vsel %vm3870, %v6046, %v5018
        %v6077 = vsel %vm3870, %v6047, %v5020
        %v6078 = vsel %vm3870, %v6048, %v5022
        %v6079 = vsel %vm3870, %v6049, %v5024
        %v6080 = vsel %vm3870, %v6050, %v5026
        %v6081 = vsel %vm3870, %v6051, %v5028
        %v6082 = vsel %vm3870, %v6052, %v5030
        %v6083 = vsel %vm3870, %v6053, %v5032
        %v6084 = vsel %vm3870, %v6054, %v5034
        %v6085 = vsel %vm3870, %v6055, %v5036
        %v6086 = vsel %vm3870, %v6056, %v5038
        %v6087 = vsel %vm3870, %v6057, %v5040
        %v6088 = vsel %vm3870, %v6058, %v5042
        %v6089 = vsel %vm3870, %v6059, %v5044
        %vm6090 = vcmask 785408
        %v6091 = vsel %vm6090, %v6060, %v5076
        %v6092 = vsel %vm6090, %v6061, %v5078
        %v6093 = vsel %vm6090, %v6062, %v5080
        %v6094 = vsel %vm6090, %v6063, %v5082
        %v6095 = vsel %vm6090, %v6064, %v5084
        %v6096 = vsel %vm6090, %v6065, %v5086
        %v6097 = vsel %vm6090, %v6066, %v5088
        %v6098 = vsel %vm6090, %v6067, %v5090
        %v6099 = vsel %vm6090, %v6068, %v5092
        %v6100 = vsel %vm6090, %v6069, %v5094
        %v6101 = vsel %vm6090, %v6070, %v5096
        %v6102 = vsel %vm6090, %v6071, %v5098
        %v6103 = vsel %vm6090, %v6072, %v5100
        %v6104 = vsel %vm6090, %v6073, %v5102
        %v6105 = vsel %vm6090, %v6074, %v5104
        %v6106 = vsel %vm6090, %v6075, %v5106
        %v6107 = vsel %vm6090, %v6076, %v5108
        %v6108 = vsel %vm6090, %v6077, %v5110
        %v6109 = vsel %vm6090, %v6078, %v5112
        %v6110 = vsel %vm6090, %v6079, %v5114
        %v6111 = vsel %vm6090, %v6080, %v5116
        %v6112 = vsel %vm6090, %v6081, %v5118
        %v6113 = vsel %vm6090, %v6082, %v5120
        %v6114 = vsel %vm6090, %v6083, %v5122
        %v6115 = vsel %vm6090, %v6084, %v5124
        %v6116 = vsel %vm6090, %v6085, %v5126
        %v6117 = vsel %vm6090, %v6086, %v5128
        %v6118 = vsel %vm6090, %v6087, %v5130
        %v6119 = vsel %vm6090, %v6088, %v5132
        %v6120 = vsel %vm6090, %v6089, %v5134
        %v6121 = vsel %vm6029, %v4652, %v5166
        %v6122 = vsel %vm6029, %v4654, %v5168
        %v6123 = vsel %vm6029, %v4652, %v5170
        %v6124 = vsel %vm6029, %v4654, %v5172
        %v6125 = vsel %vm6029, %v4657, %v5174
        %v6126 = vsel %vm6029, %v4659, %v5176
        %v6127 = vsel %vm6029, %v4662, %v5178
        %v6128 = vsel %vm6029, %v4664, %v5180
        %v6129 = vsel %vm6029, %v4667, %v5182
        %v6130 = vsel %vm6029, %v4669, %v5184
        %v6131 = vsel %vm6029, %v4672, %v5186
        %v6132 = vsel %vm6029, %v4674, %v5188
        %v6133 = vsel %vm6029, %v4677, %v5190
        %v6134 = vsel %vm6029, %v4679, %v5192
        %v6135 = vsel %vm6029, %v4682, %v5194
        %v6136 = vsel %vm6029, %v4684, %v5196
        %v6137 = vsel %vm6029, %v4687, %v5198
        %v6138 = vsel %vm6029, %v4689, %v5200
        %v6139 = vsel %vm6029, %v4692, %v5202
        %v6140 = vsel %vm6029, %v4694, %v5204
        %v6141 = vsel %vm6029, %v4697, %v5206
        %v6142 = vsel %vm6029, %v4699, %v5208
        %v6143 = vsel %vm6029, %v4702, %v5210
        %v6144 = vsel %vm6029, %v4704, %v5212
        %v6145 = vsel %vm6029, %v4707, %v5214
        %v6146 = vsel %vm6029, %v4709, %v5216
        %v6147 = vsel %vm6029, %v4712, %v5218
        %v6148 = vsel %vm6029, %v4714, %v5220
        %v6149 = vsel %vm6029, %v4717, %v5222
        %v6150 = vsel %vm6029, %v4719, %v5224
        %v6151 = vsel %vm6029, %v4722, %v5226
        %v6152 = vsel %vm6029, %v4724, %v5228
        %v6153 = vsel %vm3870, %v6121, %v5262
        %v6154 = vsel %vm3870, %v6122, %v5264
        %v6155 = vsel %vm3870, %v6123, %v5266
        %v6156 = vsel %vm3870, %v6124, %v5268
        %v6157 = vsel %vm3870, %v6125, %v5270
        %v6158 = vsel %vm3870, %v6126, %v5272
        %v6159 = vsel %vm3870, %v6127, %v5274
        %v6160 = vsel %vm3870, %v6128, %v5276
        %v6161 = vsel %vm3870, %v6129, %v5278
        %v6162 = vsel %vm3870, %v6130, %v5280
        %v6163 = vsel %vm3870, %v6131, %v5282
        %v6164 = vsel %vm3870, %v6132, %v5284
        %v6165 = vsel %vm3870, %v6133, %v5286
        %v6166 = vsel %vm3870, %v6134, %v5288
        %v6167 = vsel %vm3870, %v6135, %v5290
        %v6168 = vsel %vm3870, %v6136, %v5292
        %v6169 = vsel %vm3870, %v6137, %v5294
        %v6170 = vsel %vm3870, %v6138, %v5296
        %v6171 = vsel %vm3870, %v6139, %v5298
        %v6172 = vsel %vm3870, %v6140, %v5300
        %v6173 = vsel %vm3870, %v6141, %v5302
        %v6174 = vsel %vm3870, %v6142, %v5304
        %v6175 = vsel %vm3870, %v6143, %v5306
        %v6176 = vsel %vm3870, %v6144, %v5308
        %v6177 = vsel %vm3870, %v6145, %v5310
        %v6178 = vsel %vm3870, %v6146, %v5312
        %v6179 = vsel %vm3870, %v6147, %v5314
        %v6180 = vsel %vm3870, %v6148, %v5316
        %v6181 = vsel %vm3870, %v6149, %v5318
        %v6182 = vsel %vm3870, %v6150, %v5320
        %v6183 = vsel %vm3870, %v6151, %v5322
        %v6184 = vsel %vm3870, %v6152, %v5324
        %v6185 = vsel %vm6090, %v6153, %v5358
        %v6186 = vsel %vm6090, %v6154, %v5360
        %v6187 = vsel %vm6090, %v6155, %v5362
        %v6188 = vsel %vm6090, %v6156, %v5364
        %v6189 = vsel %vm6090, %v6157, %v5366
        %v6190 = vsel %vm6090, %v6158, %v5368
        %v6191 = vsel %vm6090, %v6159, %v5370
        %v6192 = vsel %vm6090, %v6160, %v5372
        %v6193 = vsel %vm6090, %v6161, %v5374
        %v6194 = vsel %vm6090, %v6162, %v5376
        %v6195 = vsel %vm6090, %v6163, %v5378
        %v6196 = vsel %vm6090, %v6164, %v5380
        %v6197 = vsel %vm6090, %v6165, %v5382
        %v6198 = vsel %vm6090, %v6166, %v5384
        %v6199 = vsel %vm6090, %v6167, %v5386
        %v6200 = vsel %vm6090, %v6168, %v5388
        %v6201 = vsel %vm6090, %v6169, %v5390
        %v6202 = vsel %vm6090, %v6170, %v5392
        %v6203 = vsel %vm6090, %v6171, %v5394
        %v6204 = vsel %vm6090, %v6172, %v5396
        %v6205 = vsel %vm6090, %v6173, %v5398
        %v6206 = vsel %vm6090, %v6174, %v5400
        %v6207 = vsel %vm6090, %v6175, %v5402
        %v6208 = vsel %vm6090, %v6176, %v5404
        %v6209 = vsel %vm6090, %v6177, %v5406
        %v6210 = vsel %vm6090, %v6178, %v5408
        %v6211 = vsel %vm6090, %v6179, %v5410
        %v6212 = vsel %vm6090, %v6180, %v5412
        %v6213 = vsel %vm6090, %v6181, %v5414
        %v6214 = vsel %vm6090, %v6182, %v5416
        %v6215 = vsel %vm6090, %v6183, %v5418
        %v6216 = vsel %vm6090, %v6184, %v5420
        %v6217 = vsel %vm6029, %v4577, %v5454
        %v6218 = vsel %vm6029, %v4579, %v5456
        %v6219 = vsel %vm6029, %v4582, %v5458
        %v6220 = vsel %vm6029, %v4584, %v5460
        %v6221 = vsel %vm6029, %v4587, %v5462
        %v6222 = vsel %vm6029, %v4589, %v5464
        %v6223 = vsel %vm6029, %v4592, %v5466
        %v6224 = vsel %vm6029, %v4594, %v5468
        %v6225 = vsel %vm6029, %v4597, %v5470
        %v6226 = vsel %vm6029, %v4599, %v5472
        %v6227 = vsel %vm6029, %v4602, %v5474
        %v6228 = vsel %vm6029, %v4604, %v5476
        %v6229 = vsel %vm6029, %v4607, %v5478
        %v6230 = vsel %vm6029, %v4609, %v5480
        %v6231 = vsel %vm6029, %v4612, %v5482
        %v6232 = vsel %vm6029, %v4614, %v5484
        %v6233 = vsel %vm6029, %v4617, %v5486
        %v6234 = vsel %vm6029, %v4619, %v5488
        %v6235 = vsel %vm6029, %v4622, %v5490
        %v6236 = vsel %vm6029, %v4624, %v5492
        %v6237 = vsel %vm6029, %v4627, %v5494
        %v6238 = vsel %vm6029, %v4629, %v5496
        %v6239 = vsel %vm6029, %v4632, %v5498
        %v6240 = vsel %vm6029, %v4634, %v5500
        %v6241 = vsel %vm6029, %v4637, %v5502
        %v6242 = vsel %vm6029, %v4639, %v5504
        %v6243 = vsel %vm6029, %v4642, %v5506
        %v6244 = vsel %vm6029, %v4644, %v5508
        %v6245 = vsel %vm6029, %v4647, %v5510
        %v6246 = vsel %vm6029, %v4649, %v5512
        %v6247 = vsel %vm6029, %v4769, %v5514
        %v6248 = vsel %vm6029, %v4771, %v5516
        %v6249 = vsel %vm3870, %v6217, %v5550
        %v6250 = vsel %vm3870, %v6218, %v5552
        %v6251 = vsel %vm3870, %v6219, %v5554
        %v6252 = vsel %vm3870, %v6220, %v5556
        %v6253 = vsel %vm3870, %v6221, %v5558
        %v6254 = vsel %vm3870, %v6222, %v5560
        %v6255 = vsel %vm3870, %v6223, %v5562
        %v6256 = vsel %vm3870, %v6224, %v5564
        %v6257 = vsel %vm3870, %v6225, %v5566
        %v6258 = vsel %vm3870, %v6226, %v5568
        %v6259 = vsel %vm3870, %v6227, %v5570
        %v6260 = vsel %vm3870, %v6228, %v5572
        %v6261 = vsel %vm3870, %v6229, %v5574
        %v6262 = vsel %vm3870, %v6230, %v5576
        %v6263 = vsel %vm3870, %v6231, %v5578
        %v6264 = vsel %vm3870, %v6232, %v5580
        %v6265 = vsel %vm3870, %v6233, %v5582
        %v6266 = vsel %vm3870, %v6234, %v5584
        %v6267 = vsel %vm3870, %v6235, %v5586
        %v6268 = vsel %vm3870, %v6236, %v5588
        %v6269 = vsel %vm3870, %v6237, %v5590
        %v6270 = vsel %vm3870, %v6238, %v5592
        %v6271 = vsel %vm3870, %v6239, %v5594
        %v6272 = vsel %vm3870, %v6240, %v5596
        %v6273 = vsel %vm3870, %v6241, %v5598
        %v6274 = vsel %vm3870, %v6242, %v5600
        %v6275 = vsel %vm3870, %v6243, %v5602
        %v6276 = vsel %vm3870, %v6244, %v5604
        %v6277 = vsel %vm3870, %v6245, %v5606
        %v6278 = vsel %vm3870, %v6246, %v5608
        %v6279 = vsel %vm3870, %v6247, %v5610
        %v6280 = vsel %vm3870, %v6248, %v5612
        %v6281 = vsel %vm6090, %v6249, %v5646
        %v6282 = vsel %vm6090, %v6250, %v5648
        %v6283 = vsel %vm6090, %v6251, %v5650
        %v6284 = vsel %vm6090, %v6252, %v5652
        %v6285 = vsel %vm6090, %v6253, %v5654
        %v6286 = vsel %vm6090, %v6254, %v5656
        %v6287 = vsel %vm6090, %v6255, %v5658
        %v6288 = vsel %vm6090, %v6256, %v5660
        %v6289 = vsel %vm6090, %v6257, %v5662
        %v6290 = vsel %vm6090, %v6258, %v5664
        %v6291 = vsel %vm6090, %v6259, %v5666
        %v6292 = vsel %vm6090, %v6260, %v5668
        %v6293 = vsel %vm6090, %v6261, %v5670
        %v6294 = vsel %vm6090, %v6262, %v5672
        %v6295 = vsel %vm6090, %v6263, %v5674
        %v6296 = vsel %vm6090, %v6264, %v5676
        %v6297 = vsel %vm6090, %v6265, %v5678
        %v6298 = vsel %vm6090, %v6266, %v5680
        %v6299 = vsel %vm6090, %v6267, %v5682
        %v6300 = vsel %vm6090, %v6268, %v5684
        %v6301 = vsel %vm6090, %v6269, %v5686
        %v6302 = vsel %vm6090, %v6270, %v5688
        %v6303 = vsel %vm6090, %v6271, %v5690
        %v6304 = vsel %vm6090, %v6272, %v5692
        %v6305 = vsel %vm6090, %v6273, %v5694
        %v6306 = vsel %vm6090, %v6274, %v5696
        %v6307 = vsel %vm6090, %v6275, %v5698
        %v6308 = vsel %vm6090, %v6276, %v5700
        %v6309 = vsel %vm6090, %v6277, %v5702
        %v6310 = vsel %vm6090, %v6278, %v5704
        %v6311 = vsel %vm6090, %v6279, %v5706
        %v6312 = vsel %vm6090, %v6280, %v5708
        %v6313 = vsel %vm6029, %v4506, %v5742
        %v6314 = vsel %vm6029, %v4508, %v5744
        %v6315 = vsel %vm6029, %v4511, %v5746
        %v6316 = vsel %vm6029, %v4513, %v5748
        %v6317 = vsel %vm6029, %v4516, %v5750
        %v6318 = vsel %vm6029, %v4518, %v5752
        %v6319 = vsel %vm6029, %v4521, %v5754
        %v6320 = vsel %vm6029, %v4523, %v5756
        %v6321 = vsel %vm6029, %v4526, %v5758
        %v6322 = vsel %vm6029, %v4528, %v5760
        %v6323 = vsel %vm6029, %v4531, %v5762
        %v6324 = vsel %vm6029, %v4533, %v5764
        %v6325 = vsel %vm6029, %v4536, %v5766
        %v6326 = vsel %vm6029, %v4538, %v5768
        %v6327 = vsel %vm6029, %v4541, %v5770
        %v6328 = vsel %vm6029, %v4543, %v5772
        %v6329 = vsel %vm6029, %v4546, %v5774
        %v6330 = vsel %vm6029, %v4548, %v5776
        %v6331 = vsel %vm6029, %v4551, %v5778
        %v6332 = vsel %vm6029, %v4553, %v5780
        %v6333 = vsel %vm6029, %v4556, %v5782
        %v6334 = vsel %vm6029, %v4558, %v5784
        %v6335 = vsel %vm6029, %v4561, %v5786
        %v6336 = vsel %vm6029, %v4563, %v5788
        %v6337 = vsel %vm6029, %v4566, %v5790
        %v6338 = vsel %vm6029, %v4568, %v5792
        %v6339 = vsel %vm6029, %v4571, %v5794
        %v6340 = vsel %vm6029, %v4573, %v5796
        %v6341 = vsel %vm6029, %v4764, %v5798
        %v6342 = vsel %vm6029, %v4766, %v5800
        %v6343 = vsel %vm6029, %v4818, %v5802
        %v6344 = vsel %vm6029, %v4820, %v5804
        %v6345 = vsel %vm3870, %v6313, %v5838
        %v6346 = vsel %vm3870, %v6314, %v5840
        %v6347 = vsel %vm3870, %v6315, %v5842
        %v6348 = vsel %vm3870, %v6316, %v5844
        %v6349 = vsel %vm3870, %v6317, %v5846
        %v6350 = vsel %vm3870, %v6318, %v5848
        %v6351 = vsel %vm3870, %v6319, %v5850
        %v6352 = vsel %vm3870, %v6320, %v5852
        %v6353 = vsel %vm3870, %v6321, %v5854
        %v6354 = vsel %vm3870, %v6322, %v5856
        %v6355 = vsel %vm3870, %v6323, %v5858
        %v6356 = vsel %vm3870, %v6324, %v5860
        %v6357 = vsel %vm3870, %v6325, %v5862
        %v6358 = vsel %vm3870, %v6326, %v5864
        %v6359 = vsel %vm3870, %v6327, %v5866
        %v6360 = vsel %vm3870, %v6328, %v5868
        %v6361 = vsel %vm3870, %v6329, %v5870
        %v6362 = vsel %vm3870, %v6330, %v5872
        %v6363 = vsel %vm3870, %v6331, %v5874
        %v6364 = vsel %vm3870, %v6332, %v5876
        %v6365 = vsel %vm3870, %v6333, %v5878
        %v6366 = vsel %vm3870, %v6334, %v5880
        %v6367 = vsel %vm3870, %v6335, %v5882
        %v6368 = vsel %vm3870, %v6336, %v5884
        %v6369 = vsel %vm3870, %v6337, %v5886
        %v6370 = vsel %vm3870, %v6338, %v5888
        %v6371 = vsel %vm3870, %v6339, %v5890
        %v6372 = vsel %vm3870, %v6340, %v5892
        %v6373 = vsel %vm3870, %v6341, %v5894
        %v6374 = vsel %vm3870, %v6342, %v5896
        %v6375 = vsel %vm3870, %v6343, %v5898
        %v6376 = vsel %vm3870, %v6344, %v5900
        %v6377 = vsel %vm6090, %v6345, %v5934
        %v6378 = vsel %vm6090, %v6346, %v5936
        %v6379 = vsel %vm6090, %v6347, %v5938
        %v6380 = vsel %vm6090, %v6348, %v5940
        %v6381 = vsel %vm6090, %v6349, %v5942
        %v6382 = vsel %vm6090, %v6350, %v5944
        %v6383 = vsel %vm6090, %v6351, %v5946
        %v6384 = vsel %vm6090, %v6352, %v5948
        %v6385 = vsel %vm6090, %v6353, %v5950
        %v6386 = vsel %vm6090, %v6354, %v5952
        %v6387 = vsel %vm6090, %v6355, %v5954
        %v6388 = vsel %vm6090, %v6356, %v5956
        %v6389 = vsel %vm6090, %v6357, %v5958
        %v6390 = vsel %vm6090, %v6358, %v5960
        %v6391 = vsel %vm6090, %v6359, %v5962
        %v6392 = vsel %vm6090, %v6360, %v5964
        %v6393 = vsel %vm6090, %v6361, %v5966
        %v6394 = vsel %vm6090, %v6362, %v5968
        %v6395 = vsel %vm6090, %v6363, %v5970
        %v6396 = vsel %vm6090, %v6364, %v5972
        %v6397 = vsel %vm6090, %v6365, %v5974
        %v6398 = vsel %vm6090, %v6366, %v5976
        %v6399 = vsel %vm6090, %v6367, %v5978
        %v6400 = vsel %vm6090, %v6368, %v5980
        %v6401 = vsel %vm6090, %v6369, %v5982
        %v6402 = vsel %vm6090, %v6370, %v5984
        %v6403 = vsel %vm6090, %v6371, %v5986
        %v6404 = vsel %vm6090, %v6372, %v5988
        %v6405 = vsel %vm6090, %v6373, %v5990
        %v6406 = vsel %vm6090, %v6374, %v5992
        %v6407 = vsel %vm6090, %v6375, %v5994
        %v6408 = vsel %vm6090, %v6376, %v5996
        %6409 = vrot.lane.b32.xlu0 %v4511, 32
        %v6410 = vpop.permute.xlu0 %6409
        %6411 = vrot.lane.b32.xlu0 %v4513, 32
        %v6412 = vpop.permute.xlu0 %6411
        %6413 = vrot.lane.b32.xlu0 %v4516, 32
        %v6414 = vpop.permute.xlu0 %6413
        %6415 = vrot.lane.b32.xlu0 %v4518, 32
        %v6416 = vpop.permute.xlu0 %6415
        %6417 = vrot.lane.b32.xlu0 %v4521, 32
        %v6418 = vpop.permute.xlu0 %6417
        %6419 = vrot.lane.b32.xlu0 %v4523, 32
        %v6420 = vpop.permute.xlu0 %6419
        %6421 = vrot.lane.b32.xlu0 %v4526, 32
        %v6422 = vpop.permute.xlu0 %6421
        %6423 = vrot.lane.b32.xlu0 %v4528, 32
        %v6424 = vpop.permute.xlu0 %6423
        %6425 = vrot.lane.b32.xlu0 %v4531, 32
        %v6426 = vpop.permute.xlu0 %6425
        %6427 = vrot.lane.b32.xlu0 %v4533, 32
        %v6428 = vpop.permute.xlu0 %6427
        %6429 = vrot.lane.b32.xlu0 %v4536, 32
        %v6430 = vpop.permute.xlu0 %6429
        %6431 = vrot.lane.b32.xlu0 %v4538, 32
        %v6432 = vpop.permute.xlu0 %6431
        %6433 = vrot.lane.b32.xlu0 %v4541, 32
        %v6434 = vpop.permute.xlu0 %6433
        %6435 = vrot.lane.b32.xlu0 %v4543, 32
        %v6436 = vpop.permute.xlu0 %6435
        %6437 = vrot.lane.b32.xlu0 %v4546, 32
        %v6438 = vpop.permute.xlu0 %6437
        %6439 = vrot.lane.b32.xlu0 %v4548, 32
        %v6440 = vpop.permute.xlu0 %6439
        %6441 = vrot.lane.b32.xlu0 %v4551, 32
        %v6442 = vpop.permute.xlu0 %6441
        %6443 = vrot.lane.b32.xlu0 %v4553, 32
        %v6444 = vpop.permute.xlu0 %6443
        %6445 = vrot.lane.b32.xlu0 %v4556, 32
        %v6446 = vpop.permute.xlu0 %6445
        %6447 = vrot.lane.b32.xlu0 %v4558, 32
        %v6448 = vpop.permute.xlu0 %6447
        %6449 = vrot.lane.b32.xlu0 %v4561, 32
        %v6450 = vpop.permute.xlu0 %6449
        %6451 = vrot.lane.b32.xlu0 %v4563, 32
        %v6452 = vpop.permute.xlu0 %6451
        %6453 = vrot.lane.b32.xlu0 %v4566, 32
        %v6454 = vpop.permute.xlu0 %6453
        %6455 = vrot.lane.b32.xlu0 %v4568, 32
        %v6456 = vpop.permute.xlu0 %6455
        %6457 = vrot.lane.b32.xlu0 %v4571, 32
        %v6458 = vpop.permute.xlu0 %6457
        %6459 = vrot.lane.b32.xlu0 %v4573, 32
        %v6460 = vpop.permute.xlu0 %6459
        %6461 = vrot.lane.b32.xlu0 %v4764, 32
        %v6462 = vpop.permute.xlu0 %6461
        %6463 = vrot.lane.b32.xlu0 %v4766, 32
        %v6464 = vpop.permute.xlu0 %6463
        %6465 = vrot.lane.b32.xlu0 %v4818, 32
        %v6466 = vpop.permute.xlu0 %6465
        %6467 = vrot.lane.b32.xlu0 %v4820, 32
        %v6468 = vpop.permute.xlu0 %6467
        %6469 = vrot.lane.b32.xlu0 %v4501, 32
        %v6470 = vpop.permute.xlu0 %6469
        %6471 = vrot.lane.b32.xlu0 %v4503, 32
        %v6472 = vpop.permute.xlu0 %6471
        %6505 = vrot.lane.b32.xlu0 %v4587, 64
        %v6506 = vpop.permute.xlu0 %6505
        %6507 = vrot.lane.b32.xlu0 %v4589, 64
        %v6508 = vpop.permute.xlu0 %6507
        %6509 = vrot.lane.b32.xlu0 %v4592, 64
        %v6510 = vpop.permute.xlu0 %6509
        %6511 = vrot.lane.b32.xlu0 %v4594, 64
        %v6512 = vpop.permute.xlu0 %6511
        %6513 = vrot.lane.b32.xlu0 %v4597, 64
        %v6514 = vpop.permute.xlu0 %6513
        %6515 = vrot.lane.b32.xlu0 %v4599, 64
        %v6516 = vpop.permute.xlu0 %6515
        %6517 = vrot.lane.b32.xlu0 %v4602, 64
        %v6518 = vpop.permute.xlu0 %6517
        %6519 = vrot.lane.b32.xlu0 %v4604, 64
        %v6520 = vpop.permute.xlu0 %6519
        %6521 = vrot.lane.b32.xlu0 %v4607, 64
        %v6522 = vpop.permute.xlu0 %6521
        %6523 = vrot.lane.b32.xlu0 %v4609, 64
        %v6524 = vpop.permute.xlu0 %6523
        %6525 = vrot.lane.b32.xlu0 %v4612, 64
        %v6526 = vpop.permute.xlu0 %6525
        %6527 = vrot.lane.b32.xlu0 %v4614, 64
        %v6528 = vpop.permute.xlu0 %6527
        %6529 = vrot.lane.b32.xlu0 %v4617, 64
        %v6530 = vpop.permute.xlu0 %6529
        %6531 = vrot.lane.b32.xlu0 %v4619, 64
        %v6532 = vpop.permute.xlu0 %6531
        %6533 = vrot.lane.b32.xlu0 %v4622, 64
        %v6534 = vpop.permute.xlu0 %6533
        %6535 = vrot.lane.b32.xlu0 %v4624, 64
        %v6536 = vpop.permute.xlu0 %6535
        %6537 = vrot.lane.b32.xlu0 %v4627, 64
        %v6538 = vpop.permute.xlu0 %6537
        %6539 = vrot.lane.b32.xlu0 %v4629, 64
        %v6540 = vpop.permute.xlu0 %6539
        %6541 = vrot.lane.b32.xlu0 %v4632, 64
        %v6542 = vpop.permute.xlu0 %6541
        %6543 = vrot.lane.b32.xlu0 %v4634, 64
        %v6544 = vpop.permute.xlu0 %6543
        %6545 = vrot.lane.b32.xlu0 %v4637, 64
        %v6546 = vpop.permute.xlu0 %6545
        %6547 = vrot.lane.b32.xlu0 %v4639, 64
        %v6548 = vpop.permute.xlu0 %6547
        %6549 = vrot.lane.b32.xlu0 %v4642, 64
        %v6550 = vpop.permute.xlu0 %6549
        %6551 = vrot.lane.b32.xlu0 %v4644, 64
        %v6552 = vpop.permute.xlu0 %6551
        %6553 = vrot.lane.b32.xlu0 %v4647, 64
        %v6554 = vpop.permute.xlu0 %6553
        %6555 = vrot.lane.b32.xlu0 %v4649, 64
        %v6556 = vpop.permute.xlu0 %6555
        %6557 = vrot.lane.b32.xlu0 %v4769, 64
        %v6558 = vpop.permute.xlu0 %6557
        %6559 = vrot.lane.b32.xlu0 %v4771, 64
        %v6560 = vpop.permute.xlu0 %6559
        %6561 = vrot.lane.b32.xlu0 %v4855, 64
        %v6562 = vpop.permute.xlu0 %6561
        %6563 = vrot.lane.b32.xlu0 %v4857, 64
        %v6564 = vpop.permute.xlu0 %6563
        %6565 = vrot.lane.b32.xlu0 %v4577, 64
        %v6566 = vpop.permute.xlu0 %6565
        %6567 = vrot.lane.b32.xlu0 %v4579, 64
        %v6568 = vpop.permute.xlu0 %6567
        %6601 = vrot.lane.b32.xlu0 %v4662, 96
        %v6602 = vpop.permute.xlu0 %6601
        %6603 = vrot.lane.b32.xlu0 %v4664, 96
        %v6604 = vpop.permute.xlu0 %6603
        %6605 = vrot.lane.b32.xlu0 %v4667, 96
        %v6606 = vpop.permute.xlu0 %6605
        %6607 = vrot.lane.b32.xlu0 %v4669, 96
        %v6608 = vpop.permute.xlu0 %6607
        %6609 = vrot.lane.b32.xlu0 %v4672, 96
        %v6610 = vpop.permute.xlu0 %6609
        %6611 = vrot.lane.b32.xlu0 %v4674, 96
        %v6612 = vpop.permute.xlu0 %6611
        %6613 = vrot.lane.b32.xlu0 %v4677, 96
        %v6614 = vpop.permute.xlu0 %6613
        %6615 = vrot.lane.b32.xlu0 %v4679, 96
        %v6616 = vpop.permute.xlu0 %6615
        %6617 = vrot.lane.b32.xlu0 %v4682, 96
        %v6618 = vpop.permute.xlu0 %6617
        %6619 = vrot.lane.b32.xlu0 %v4684, 96
        %v6620 = vpop.permute.xlu0 %6619
        %6621 = vrot.lane.b32.xlu0 %v4687, 96
        %v6622 = vpop.permute.xlu0 %6621
        %6623 = vrot.lane.b32.xlu0 %v4689, 96
        %v6624 = vpop.permute.xlu0 %6623
        %6625 = vrot.lane.b32.xlu0 %v4692, 96
        %v6626 = vpop.permute.xlu0 %6625
        %6627 = vrot.lane.b32.xlu0 %v4694, 96
        %v6628 = vpop.permute.xlu0 %6627
        %6629 = vrot.lane.b32.xlu0 %v4697, 96
        %v6630 = vpop.permute.xlu0 %6629
        %6631 = vrot.lane.b32.xlu0 %v4699, 96
        %v6632 = vpop.permute.xlu0 %6631
        %6633 = vrot.lane.b32.xlu0 %v4702, 96
        %v6634 = vpop.permute.xlu0 %6633
        %6635 = vrot.lane.b32.xlu0 %v4704, 96
        %v6636 = vpop.permute.xlu0 %6635
        %6637 = vrot.lane.b32.xlu0 %v4707, 96
        %v6638 = vpop.permute.xlu0 %6637
        %6639 = vrot.lane.b32.xlu0 %v4709, 96
        %v6640 = vpop.permute.xlu0 %6639
        %6641 = vrot.lane.b32.xlu0 %v4712, 96
        %v6642 = vpop.permute.xlu0 %6641
        %6643 = vrot.lane.b32.xlu0 %v4714, 96
        %v6644 = vpop.permute.xlu0 %6643
        %6645 = vrot.lane.b32.xlu0 %v4717, 96
        %v6646 = vpop.permute.xlu0 %6645
        %6647 = vrot.lane.b32.xlu0 %v4719, 96
        %v6648 = vpop.permute.xlu0 %6647
        %6649 = vrot.lane.b32.xlu0 %v4722, 96
        %v6650 = vpop.permute.xlu0 %6649
        %6651 = vrot.lane.b32.xlu0 %v4724, 96
        %v6652 = vpop.permute.xlu0 %6651
        %6653 = vrot.lane.b32.xlu0 %v4806, 96
        %v6654 = vpop.permute.xlu0 %6653
        %6655 = vrot.lane.b32.xlu0 %v4808, 96
        %v6656 = vpop.permute.xlu0 %6655
        %6657 = vrot.lane.b32.xlu0 %v4860, 96
        %v6658 = vpop.permute.xlu0 %6657
        %6659 = vrot.lane.b32.xlu0 %v4862, 96
        %v6660 = vpop.permute.xlu0 %6659
        %6661 = vrot.lane.b32.xlu0 %v4652, 96
        %v6662 = vpop.permute.xlu0 %6661
        %6663 = vrot.lane.b32.xlu0 %v4654, 96
        %v6664 = vpop.permute.xlu0 %6663
        %6697 = vrot.lane.b32.xlu0 %v4759, 32
        %v6698 = vpop.permute.xlu0 %6697
        %6699 = vrot.lane.b32.xlu0 %v4761, 32
        %v6700 = vpop.permute.xlu0 %6699
        %6701 = vrot.lane.b32.xlu0 %v4813, 32
        %v6702 = vpop.permute.xlu0 %6701
        %6703 = vrot.lane.b32.xlu0 %v4815, 32
        %v6704 = vpop.permute.xlu0 %6703
        %6709 = vrot.lane.b32.xlu0 %v4764, 64
        %v6710 = vpop.permute.xlu0 %6709
        %6711 = vrot.lane.b32.xlu0 %v4766, 64
        %v6712 = vpop.permute.xlu0 %6711
        %6713 = vrot.lane.b32.xlu0 %v4818, 64
        %v6714 = vpop.permute.xlu0 %6713
        %6715 = vrot.lane.b32.xlu0 %v4820, 64
        %v6716 = vpop.permute.xlu0 %6715
        %6721 = vrot.lane.b32.xlu0 %v4769, 96
        %v6722 = vpop.permute.xlu0 %6721
        %6723 = vrot.lane.b32.xlu0 %v4771, 96
        %v6724 = vpop.permute.xlu0 %6723
        %6725 = vrot.lane.b32.xlu0 %v4855, 96
        %v6726 = vpop.permute.xlu0 %6725
        %6727 = vrot.lane.b32.xlu0 %v4857, 96
        %v6728 = vpop.permute.xlu0 %6727
        %v6733 = vsel %vm6029, %v4435, %v6410
        %v6734 = vsel %vm6029, %v4437, %v6412
        %v6735 = vsel %vm6029, %v4440, %v6414
        %v6736 = vsel %vm6029, %v4442, %v6416
        %v6737 = vsel %vm6029, %v4445, %v6418
        %v6738 = vsel %vm6029, %v4447, %v6420
        %v6739 = vsel %vm6029, %v4450, %v6422
        %v6740 = vsel %vm6029, %v4452, %v6424
        %v6741 = vsel %vm6029, %v4455, %v6426
        %v6742 = vsel %vm6029, %v4457, %v6428
        %v6743 = vsel %vm6029, %v4460, %v6430
        %v6744 = vsel %vm6029, %v4462, %v6432
        %v6745 = vsel %vm6029, %v4465, %v6434
        %v6746 = vsel %vm6029, %v4467, %v6436
        %v6747 = vsel %vm6029, %v4470, %v6438
        %v6748 = vsel %vm6029, %v4472, %v6440
        %v6749 = vsel %vm6029, %v4475, %v6442
        %v6750 = vsel %vm6029, %v4477, %v6444
        %v6751 = vsel %vm6029, %v4480, %v6446
        %v6752 = vsel %vm6029, %v4482, %v6448
        %v6753 = vsel %vm6029, %v4485, %v6450
        %v6754 = vsel %vm6029, %v4487, %v6452
        %v6755 = vsel %vm6029, %v4490, %v6454
        %v6756 = vsel %vm6029, %v4492, %v6456
        %v6757 = vsel %vm6029, %v4495, %v6458
        %v6758 = vsel %vm6029, %v4497, %v6460
        %v6759 = vsel %vm6029, %v4759, %v6462
        %v6760 = vsel %vm6029, %v4761, %v6464
        %v6761 = vsel %vm6029, %v4813, %v6466
        %v6762 = vsel %vm6029, %v4815, %v6468
        %v6763 = vsel %vm6029, %v4425, %v6470
        %v6764 = vsel %vm6029, %v4427, %v6472
        %v6765 = vsel %vm3870, %v6733, %v6506
        %v6766 = vsel %vm3870, %v6734, %v6508
        %v6767 = vsel %vm3870, %v6735, %v6510
        %v6768 = vsel %vm3870, %v6736, %v6512
        %v6769 = vsel %vm3870, %v6737, %v6514
        %v6770 = vsel %vm3870, %v6738, %v6516
        %v6771 = vsel %vm3870, %v6739, %v6518
        %v6772 = vsel %vm3870, %v6740, %v6520
        %v6773 = vsel %vm3870, %v6741, %v6522
        %v6774 = vsel %vm3870, %v6742, %v6524
        %v6775 = vsel %vm3870, %v6743, %v6526
        %v6776 = vsel %vm3870, %v6744, %v6528
        %v6777 = vsel %vm3870, %v6745, %v6530
        %v6778 = vsel %vm3870, %v6746, %v6532
        %v6779 = vsel %vm3870, %v6747, %v6534
        %v6780 = vsel %vm3870, %v6748, %v6536
        %v6781 = vsel %vm3870, %v6749, %v6538
        %v6782 = vsel %vm3870, %v6750, %v6540
        %v6783 = vsel %vm3870, %v6751, %v6542
        %v6784 = vsel %vm3870, %v6752, %v6544
        %v6785 = vsel %vm3870, %v6753, %v6546
        %v6786 = vsel %vm3870, %v6754, %v6548
        %v6787 = vsel %vm3870, %v6755, %v6550
        %v6788 = vsel %vm3870, %v6756, %v6552
        %v6789 = vsel %vm3870, %v6757, %v6554
        %v6790 = vsel %vm3870, %v6758, %v6556
        %v6791 = vsel %vm3870, %v6759, %v6558
        %v6792 = vsel %vm3870, %v6760, %v6560
        %v6793 = vsel %vm3870, %v6761, %v6562
        %v6794 = vsel %vm3870, %v6762, %v6564
        %v6795 = vsel %vm3870, %v6763, %v6566
        %v6796 = vsel %vm3870, %v6764, %v6568
        %v6797 = vsel %vm6090, %v6765, %v6602
        %v6798 = vsel %vm6090, %v6766, %v6604
        %v6799 = vsel %vm6090, %v6767, %v6606
        %v6800 = vsel %vm6090, %v6768, %v6608
        %v6801 = vsel %vm6090, %v6769, %v6610
        %v6802 = vsel %vm6090, %v6770, %v6612
        %v6803 = vsel %vm6090, %v6771, %v6614
        %v6804 = vsel %vm6090, %v6772, %v6616
        %v6805 = vsel %vm6090, %v6773, %v6618
        %v6806 = vsel %vm6090, %v6774, %v6620
        %v6807 = vsel %vm6090, %v6775, %v6622
        %v6808 = vsel %vm6090, %v6776, %v6624
        %v6809 = vsel %vm6090, %v6777, %v6626
        %v6810 = vsel %vm6090, %v6778, %v6628
        %v6811 = vsel %vm6090, %v6779, %v6630
        %v6812 = vsel %vm6090, %v6780, %v6632
        %v6813 = vsel %vm6090, %v6781, %v6634
        %v6814 = vsel %vm6090, %v6782, %v6636
        %v6815 = vsel %vm6090, %v6783, %v6638
        %v6816 = vsel %vm6090, %v6784, %v6640
        %v6817 = vsel %vm6090, %v6785, %v6642
        %v6818 = vsel %vm6090, %v6786, %v6644
        %v6819 = vsel %vm6090, %v6787, %v6646
        %v6820 = vsel %vm6090, %v6788, %v6648
        %v6821 = vsel %vm6090, %v6789, %v6650
        %v6822 = vsel %vm6090, %v6790, %v6652
        %v6823 = vsel %vm6090, %v6791, %v6654
        %v6824 = vsel %vm6090, %v6792, %v6656
        %v6825 = vsel %vm6090, %v6793, %v6658
        %v6826 = vsel %vm6090, %v6794, %v6660
        %v6827 = vsel %vm6090, %v6795, %v6662
        %v6828 = vsel %vm6090, %v6796, %v6664
        %v6829 = vsel %vm6029, %v4373, %v6698
        %v6830 = vsel %vm6029, %v4304, %v6700
        %v6831 = vsel %vm6029, %v4374, %v6702
        %v6832 = vsel %vm6029, %v4307, %v6704
        %v6833 = vsel %vm3870, %v6829, %v6710
        %v6834 = vsel %vm3870, %v6830, %v6712
        %v6835 = vsel %vm3870, %v6831, %v6714
        %v6836 = vsel %vm3870, %v6832, %v6716
        %v6837 = vsel %vm6090, %v6833, %v6722
        %v6838 = vsel %vm6090, %v6834, %v6724
        %v6839 = vsel %vm6090, %v6835, %v6726
        %v6840 = vsel %vm6090, %v6836, %v6728
        %v6841 = vld [vmem:[%s5] sm:$0x7f]
        %v6842 = vld [vmem:[#allocation2] sm:$0x1]
        %6844 = vset.pattern.permute.xlu0 0
        %6845 = vperm.xlu0 %6844, %v6842
        %v6846 = vpop.permute.xlu0 %6845
        %v6848 = vlaneseq
        %v6849 = vshrl.u32 %v6848, 7
        %v6850 = vsub.s32 0, %v6849
        %v6851 = vrot.slane %v6846, %v6850
        %v6853 = vlaneseq
        %v6854 = vshrl.u32 %v6853, 7
        %v6855 = vsub.s32 0, %v6854
        %v6856 = vrot.slane %v6841, %v6855
        %v6857 = vlaneseq
        %v6858 = vshrl.u32 %v6857, 7
        %v6859 = vsub.s32 1, %v6858
        %v6860 = vrot.slane %v6841, %v6859
        %v6861 = vlaneseq
        %v6862 = vshrl.u32 %v6861, 7
        %v6863 = vsub.s32 2, %v6862
        %v6864 = vrot.slane %v6841, %v6863
        %v6865 = vlaneseq
        %v6866 = vshrl.u32 %v6865, 7
        %v6867 = vsub.s32 3, %v6866
        %v6868 = vrot.slane %v6841, %v6867
        %v6869 = vlaneseq
        %v6870 = vshrl.u32 %v6869, 7
        %v6871 = vsub.s32 4, %v6870
        %v6872 = vrot.slane %v6841, %v6871
        %v6873 = vlaneseq
        %v6874 = vshrl.u32 %v6873, 7
        %v6875 = vsub.s32 5, %v6874
        %v6876 = vrot.slane %v6841, %v6875
        %v6877 = vlaneseq
        %v6878 = vshrl.u32 %v6877, 7
        %v6879 = vsub.s32 6, %v6878
        %v6880 = vrot.slane %v6841, %v6879
        %v6887 = vsel %vm6029, %v6880, 0
        %v6889 = vsel %vm6029, %v4667, 0
        %v6891 = vsel %vm6029, %v4669, 0
        %v6893 = vsel %vm6029, %v4672, 0
        %v6895 = vsel %vm6029, %v4674, 0
        %v6897 = vsel %vm6029, %v4677, 0
        %v6899 = vsel %vm6029, %v4679, 0
        %v6901 = vsel %vm6029, %v4682, 0
        %v6903 = vsel %vm6029, %v4684, 0
        %v6905 = vsel %vm6029, %v4687, 0
        %v6907 = vsel %vm6029, %v4689, 0
        %v6909 = vsel %vm6029, %v4692, 0
        %v6911 = vsel %vm6029, %v4694, 0
        %v6913 = vsel %vm6029, %v4697, 0
        %v6915 = vsel %vm6029, %v4699, 0
        %v6917 = vsel %vm6029, %v4702, 0
        %v6919 = vsel %vm6029, %v4704, 0
        %v6921 = vsel %vm6029, %v4707, 0
        %v6923 = vsel %vm6029, %v4709, 0
        %v6925 = vsel %vm6029, %v4712, 0
        %v6927 = vsel %vm6029, %v4714, 0
        %v6929 = vsel %vm6029, %v4717, 0
        %v6931 = vsel %vm6029, %v4719, 0
        %v6933 = vsel %vm6029, %v4722, 0
        %v6935 = vsel %vm6029, %v4724, 0
        %v6937 = vsel %vm6029, %v4806, 0
        %v6939 = vsel %vm6029, %v4808, 0
        %v6941 = vsel %vm6029, %v4860, 0
        %v6943 = vsel %vm6029, %v4862, 0
        %v6945 = vsel %vm6029, %v4652, 0
        %v6947 = vsel %vm6029, %v4654, 0
        %6949 = vmatprep.subr.mxu0 %v6185
        %6950 = vmatpush1.xpose.msra.mxu0 %v6091
        %6951 = vmatprep.subr.mxu0 %v6186
        %6952 = vmatpush1.xpose.msra.mxu0 %v6092
        %6953 = vmatprep.subr.mxu0 %v6187
        %6954 = vmatpush1.xpose.msra.mxu0 %v6091
        %6955 = vmatprep.subr.mxu0 %v6188
        %6956 = vmatpush1.xpose.msra.mxu0 %v6092
        %6957 = vmatprep.subr.mxu0 %v6189
        %6958 = vmatpush1.xpose.msra.mxu0 %v6093
        %6959 = vmatprep.subr.mxu0 %v6190
        %6960 = vmatpush1.xpose.msra.mxu0 %v6094
        %6961 = vmatprep.subr.mxu0 %v6191
        %6962 = vmatpush1.xpose.msra.mxu0 %v6095
        %6963 = vmatprep.subr.mxu0 %v6192
        %6964 = vmatpush1.xpose.msra.mxu0 %v6096
        %6965 = vmatprep.subr.mxu0 %v6193
        %6966 = vmatpush1.xpose.msra.mxu0 %v6097
        %6967 = vmatprep.subr.mxu0 %v6194
        %6968 = vmatpush1.xpose.msra.mxu0 %v6098
        %6969 = vmatprep.subr.mxu0 %v6195
        %6970 = vmatpush1.xpose.msra.mxu0 %v6099
        %6971 = vmatprep.subr.mxu0 %v6196
        %6972 = vmatpush1.xpose.msra.mxu0 %v6100
        %6973 = vmatprep.subr.mxu0 %v6197
        %6974 = vmatpush1.xpose.msra.mxu0 %v6101
        %6975 = vmatprep.subr.mxu0 %v6198
        %6976 = vmatpush1.xpose.msra.mxu0 %v6102
        %6977 = vmatprep.subr.mxu0 %v6199
        %6978 = vmatpush1.xpose.msra.mxu0 %v6103
        %6979 = vmatprep.subr.mxu0 %v6200
        %6980 = vmatpush1.xpose.msra.mxu0 %v6104
        %6981 = vmatprep.subr.mxu0 %v6201
        %6982 = vmatpush1.xpose.msra.mxu0 %v6105
        %6983 = vmatprep.subr.mxu0 %v6202
        %6984 = vmatpush1.xpose.msra.mxu0 %v6106
        %6985 = vmatprep.subr.mxu0 %v6203
        %6986 = vmatpush1.xpose.msra.mxu0 %v6107
        %6987 = vmatprep.subr.mxu0 %v6204
        %6988 = vmatpush1.xpose.msra.mxu0 %v6108
        %6989 = vmatprep.subr.mxu0 %v6205
        %6990 = vmatpush1.xpose.msra.mxu0 %v6109
        %6991 = vmatprep.subr.mxu0 %v6206
        %6992 = vmatpush1.xpose.msra.mxu0 %v6110
        %6993 = vmatprep.subr.mxu0 %v6207
        %6994 = vmatpush1.xpose.msra.mxu0 %v6111
        %6995 = vmatprep.subr.mxu0 %v6208
        %6996 = vmatpush1.xpose.msra.mxu0 %v6112
        %6997 = vmatprep.subr.mxu0 %v6209
        %6998 = vmatpush1.xpose.msra.mxu0 %v6113
        %6999 = vmatprep.subr.mxu0 %v6210
        %7000 = vmatpush1.xpose.msra.mxu0 %v6114
        %7001 = vmatprep.subr.mxu0 %v6211
        %7002 = vmatpush1.xpose.msra.mxu0 %v6115
        %7003 = vmatprep.subr.mxu0 %v6212
        %7004 = vmatpush1.xpose.msra.mxu0 %v6116
        %7005 = vmatprep.subr.mxu0 %v6213
        %7006 = vmatpush1.xpose.msra.mxu0 %v6117
        %7007 = vmatprep.subr.mxu0 %v6214
        %7008 = vmatpush1.xpose.msra.mxu0 %v6118
        %7009 = vmatprep.subr.mxu0 %v6215
        %7010 = vmatpush1.xpose.msra.mxu0 %v6119
        %7011 = vmatprep.subr.mxu0 %v6216
        %7012 = vmatpush1.xpose.msra.mxu0 %v6120
        %7013 = vmatprep.mubr.f32.mxu0 %v6860
        %7014 = vmatmul.mubr.f32.gmra.mrb[0].mxu0 %v6856
        %v7015 = vpop.f32.mrb[0].mxu0
        %v7016 = vadd.f32 %v6851, %v7015
        %v7017 = vpop.f32.mrb[0].mxu0
        %v7018 = vadd.f32 %v6851, %v7017
        %7019 = vdwg.mxu0
        %7020 = vmatprep.subr.mxu0 %v6377
        %7021 = vmatpush1.xpose.msra.mxu0 %v6281
        %7022 = vmatprep.subr.mxu0 %v6378
        %7023 = vmatpush1.xpose.msra.mxu0 %v6282
        %7024 = vmatprep.subr.mxu0 %v6379
        %7025 = vmatpush1.xpose.msra.mxu0 %v6283
        %7026 = vmatprep.subr.mxu0 %v6380
        %7027 = vmatpush1.xpose.msra.mxu0 %v6284
        %7028 = vmatprep.subr.mxu0 %v6381
        %7029 = vmatpush1.xpose.msra.mxu0 %v6285
        %7030 = vmatprep.subr.mxu0 %v6382
        %7031 = vmatpush1.xpose.msra.mxu0 %v6286
        %7032 = vmatprep.subr.mxu0 %v6383
        %7033 = vmatpush1.xpose.msra.mxu0 %v6287
        %7034 = vmatprep.subr.mxu0 %v6384
        %7035 = vmatpush1.xpose.msra.mxu0 %v6288
        %7036 = vmatprep.subr.mxu0 %v6385
        %7037 = vmatpush1.xpose.msra.mxu0 %v6289
        %7038 = vmatprep.subr.mxu0 %v6386
        %7039 = vmatpush1.xpose.msra.mxu0 %v6290
        %7040 = vmatprep.subr.mxu0 %v6387
        %7041 = vmatpush1.xpose.msra.mxu0 %v6291
        %7042 = vmatprep.subr.mxu0 %v6388
        %7043 = vmatpush1.xpose.msra.mxu0 %v6292
        %7044 = vmatprep.subr.mxu0 %v6389
        %7045 = vmatpush1.xpose.msra.mxu0 %v6293
        %7046 = vmatprep.subr.mxu0 %v6390
        %7047 = vmatpush1.xpose.msra.mxu0 %v6294
        %7048 = vmatprep.subr.mxu0 %v6391
        %7049 = vmatpush1.xpose.msra.mxu0 %v6295
        %7050 = vmatprep.subr.mxu0 %v6392
        %7051 = vmatpush1.xpose.msra.mxu0 %v6296
        %7052 = vmatprep.subr.mxu0 %v6393
        %7053 = vmatpush1.xpose.msra.mxu0 %v6297
        %7054 = vmatprep.subr.mxu0 %v6394
        %7055 = vmatpush1.xpose.msra.mxu0 %v6298
        %7056 = vmatprep.subr.mxu0 %v6395
        %7057 = vmatpush1.xpose.msra.mxu0 %v6299
        %7058 = vmatprep.subr.mxu0 %v6396
        %7059 = vmatpush1.xpose.msra.mxu0 %v6300
        %7060 = vmatprep.subr.mxu0 %v6397
        %7061 = vmatpush1.xpose.msra.mxu0 %v6301
        %7062 = vmatprep.subr.mxu0 %v6398
        %7063 = vmatpush1.xpose.msra.mxu0 %v6302
        %7064 = vmatprep.subr.mxu0 %v6399
        %7065 = vmatpush1.xpose.msra.mxu0 %v6303
        %7066 = vmatprep.subr.mxu0 %v6400
        %7067 = vmatpush1.xpose.msra.mxu0 %v6304
        %7068 = vmatprep.subr.mxu0 %v6401
        %7069 = vmatpush1.xpose.msra.mxu0 %v6305
        %7070 = vmatprep.subr.mxu0 %v6402
        %7071 = vmatpush1.xpose.msra.mxu0 %v6306
        %7072 = vmatprep.subr.mxu0 %v6403
        %7073 = vmatpush1.xpose.msra.mxu0 %v6307
        %7074 = vmatprep.subr.mxu0 %v6404
        %7075 = vmatpush1.xpose.msra.mxu0 %v6308
        %7076 = vmatprep.subr.mxu0 %v6405
        %7077 = vmatpush1.xpose.msra.mxu0 %v6309
        %7078 = vmatprep.subr.mxu0 %v6406
        %7079 = vmatpush1.xpose.msra.mxu0 %v6310
        %7080 = vmatprep.subr.mxu0 %v6407
        %7081 = vmatpush1.xpose.msra.mxu0 %v6311
        %7082 = vmatprep.subr.mxu0 %v6408
        %7083 = vmatpush1.xpose.msra.mxu0 %v6312
        %7084 = vmatprep.mubr.f32.mxu0 %v6868
        %7085 = vmatmul.mubr.f32.gmra.mrb[0].mxu0 %v6864
        %v7086 = vpop.f32.mrb[0].mxu0
        %v7087 = vadd.f32 %v7016, %v7086
        %v7088 = vpop.f32.mrb[0].mxu0
        %v7089 = vadd.f32 %v7018, %v7088
        %7090 = vdwg.mxu0
        %7091 = vmatprep.subr.mxu0 %v6097
        %7092 = vmatpush1.xpose.msra.mxu0 %v6797
        %7093 = vmatprep.subr.mxu0 %v6098
        %7094 = vmatpush1.xpose.msra.mxu0 %v6798
        %7095 = vmatprep.subr.mxu0 %v6099
        %7096 = vmatpush1.xpose.msra.mxu0 %v6799
        %7097 = vmatprep.subr.mxu0 %v6100
        %7098 = vmatpush1.xpose.msra.mxu0 %v6800
        %7099 = vmatprep.subr.mxu0 %v6101
        %7100 = vmatpush1.xpose.msra.mxu0 %v6801
        %7101 = vmatprep.subr.mxu0 %v6102
        %7102 = vmatpush1.xpose.msra.mxu0 %v6802
        %7103 = vmatprep.subr.mxu0 %v6103
        %7104 = vmatpush1.xpose.msra.mxu0 %v6803
        %7105 = vmatprep.subr.mxu0 %v6104
        %7106 = vmatpush1.xpose.msra.mxu0 %v6804
        %7107 = vmatprep.subr.mxu0 %v6105
        %7108 = vmatpush1.xpose.msra.mxu0 %v6805
        %7109 = vmatprep.subr.mxu0 %v6106
        %7110 = vmatpush1.xpose.msra.mxu0 %v6806
        %7111 = vmatprep.subr.mxu0 %v6107
        %7112 = vmatpush1.xpose.msra.mxu0 %v6807
        %7113 = vmatprep.subr.mxu0 %v6108
        %7114 = vmatpush1.xpose.msra.mxu0 %v6808
        %7115 = vmatprep.subr.mxu0 %v6109
        %7116 = vmatpush1.xpose.msra.mxu0 %v6809
        %7117 = vmatprep.subr.mxu0 %v6110
        %7118 = vmatpush1.xpose.msra.mxu0 %v6810
        %7119 = vmatprep.subr.mxu0 %v6111
        %7120 = vmatpush1.xpose.msra.mxu0 %v6811
        %7121 = vmatprep.subr.mxu0 %v6112
        %7122 = vmatpush1.xpose.msra.mxu0 %v6812
        %7123 = vmatprep.subr.mxu0 %v6113
        %7124 = vmatpush1.xpose.msra.mxu0 %v6813
        %7125 = vmatprep.subr.mxu0 %v6114
        %7126 = vmatpush1.xpose.msra.mxu0 %v6814
        %7127 = vmatprep.subr.mxu0 %v6115
        %7128 = vmatpush1.xpose.msra.mxu0 %v6815
        %7129 = vmatprep.subr.mxu0 %v6116
        %7130 = vmatpush1.xpose.msra.mxu0 %v6816
        %7131 = vmatprep.subr.mxu0 %v6117
        %7132 = vmatpush1.xpose.msra.mxu0 %v6817
        %7133 = vmatprep.subr.mxu0 %v6118
        %7134 = vmatpush1.xpose.msra.mxu0 %v6818
        %7135 = vmatprep.subr.mxu0 %v6119
        %7136 = vmatpush1.xpose.msra.mxu0 %v6819
        %7137 = vmatprep.subr.mxu0 %v6120
        %7138 = vmatpush1.xpose.msra.mxu0 %v6820
        %7139 = vmatprep.subr.mxu0 %v6837
        %7140 = vmatpush1.xpose.msra.mxu0 %v6821
        %7141 = vmatprep.subr.mxu0 %v6838
        %7142 = vmatpush1.xpose.msra.mxu0 %v6822
        %7143 = vmatprep.subr.mxu0 %v6839
        %7144 = vmatpush1.xpose.msra.mxu0 %v6823
        %7145 = vmatprep.subr.mxu0 %v6840
        %7146 = vmatpush1.xpose.msra.mxu0 %v6824
        %7147 = vmatprep.subr.mxu0 %v6091
        %7148 = vmatpush1.xpose.msra.mxu0 %v6825
        %7149 = vmatprep.subr.mxu0 %v6092
        %7150 = vmatpush1.xpose.msra.mxu0 %v6826
        %7151 = vmatprep.subr.mxu0 %v6091
        %7152 = vmatpush1.xpose.msra.mxu0 %v6827
        %7153 = vmatprep.subr.mxu0 %v6092
        %7154 = vmatpush1.xpose.msra.mxu0 %v6828
        %7155 = vmatprep.mubr.f32.mxu0 %v6876
        %7156 = vmatmul.mubr.f32.gmra.mrb[0].mxu0 %v6872
        %v7157 = vpop.f32.mrb[0].mxu0
        %v7158 = vadd.f32 %v7087, %v7157
        %v7159 = vpop.f32.mrb[0].mxu0
        %v7160 = vadd.f32 %v7089, %v7159
        %7161 = vdwg.mxu0
        %7162 = vmatprep.subr.mxu0 0.0
        %7163 = vmatpush1.xpose.msra.mxu0 %v6889
        %7164 = vmatprep.subr.mxu0 0.0
        %7165 = vmatpush1.xpose.msra.mxu0 %v6891
        %7166 = vmatprep.subr.mxu0 0.0
        %7167 = vmatpush1.xpose.msra.mxu0 %v6893
        %7168 = vmatprep.subr.mxu0 0.0
        %7169 = vmatpush1.xpose.msra.mxu0 %v6895
        %7170 = vmatprep.subr.mxu0 0.0
        %7171 = vmatpush1.xpose.msra.mxu0 %v6897
        %7172 = vmatprep.subr.mxu0 0.0
        %7173 = vmatpush1.xpose.msra.mxu0 %v6899
        %7174 = vmatprep.subr.mxu0 0.0
        %7175 = vmatpush1.xpose.msra.mxu0 %v6901
        %7176 = vmatprep.subr.mxu0 0.0
        %7177 = vmatpush1.xpose.msra.mxu0 %v6903
        %7178 = vmatprep.subr.mxu0 0.0
        %7179 = vmatpush1.xpose.msra.mxu0 %v6905
        %7180 = vmatprep.subr.mxu0 0.0
        %7181 = vmatpush1.xpose.msra.mxu0 %v6907
        %7182 = vmatprep.subr.mxu0 0.0
        %7183 = vmatpush1.xpose.msra.mxu0 %v6909
        %7184 = vmatprep.subr.mxu0 0.0
        %7185 = vmatpush1.xpose.msra.mxu0 %v6911
        %7186 = vmatprep.subr.mxu0 0.0
        %7187 = vmatpush1.xpose.msra.mxu0 %v6913
        %7188 = vmatprep.subr.mxu0 0.0
        %7189 = vmatpush1.xpose.msra.mxu0 %v6915
        %7190 = vmatprep.subr.mxu0 0.0
        %7191 = vmatpush1.xpose.msra.mxu0 %v6917
        %7192 = vmatprep.subr.mxu0 0.0
        %7193 = vmatpush1.xpose.msra.mxu0 %v6919
        %7194 = vmatprep.subr.mxu0 0.0
        %7195 = vmatpush1.xpose.msra.mxu0 %v6921
        %7196 = vmatprep.subr.mxu0 0.0
        %7197 = vmatpush1.xpose.msra.mxu0 %v6923
        %7198 = vmatprep.subr.mxu0 0.0
        %7199 = vmatpush1.xpose.msra.mxu0 %v6925
        %7200 = vmatprep.subr.mxu0 0.0
        %7201 = vmatpush1.xpose.msra.mxu0 %v6927
        %7202 = vmatprep.subr.mxu0 0.0
        %7203 = vmatpush1.xpose.msra.mxu0 %v6929
        %7204 = vmatprep.subr.mxu0 0.0
        %7205 = vmatpush1.xpose.msra.mxu0 %v6931
        %7206 = vmatprep.subr.mxu0 0.0
        %7207 = vmatpush1.xpose.msra.mxu0 %v6933
        %7208 = vmatprep.subr.mxu0 0.0
        %7209 = vmatpush1.xpose.msra.mxu0 %v6935
        %7210 = vmatprep.subr.mxu0 0.0
        %7211 = vmatpush1.xpose.msra.mxu0 %v6937
        %7212 = vmatprep.subr.mxu0 0.0
        %7213 = vmatpush1.xpose.msra.mxu0 %v6939
        %7214 = vmatprep.subr.mxu0 0.0
        %7215 = vmatpush1.xpose.msra.mxu0 %v6941
        %7216 = vmatprep.subr.mxu0 0.0
        %7217 = vmatpush1.xpose.msra.mxu0 %v6943
        %7218 = vmatprep.subr.mxu0 0.0
        %7219 = vmatpush1.xpose.msra.mxu0 %v6945
        %7220 = vmatprep.subr.mxu0 0.0
        %7221 = vmatpush1.xpose.msra.mxu0 %v6947
        %7222 = vmatprep.subr.mxu0 0.0
        %7223 = vmatpush1.xpose.msra.mxu0 %v6945
        %7224 = vmatprep.subr.mxu0 0.0
        %7225 = vmatpush1.xpose.msra.mxu0 %v6947
        %7226 = vmatprep.mubr.f32.mxu0 0.0
        %7227 = vmatmul.mubr.f32.gmra.mrb[0].mxu0 %v6887
        %v7228 = vpop.f32.mrb[0].mxu0
        %v7229 = vadd.f32 %v7158, %v7228
        %v7230 = vpop.f32.mrb[0].mxu0
        %v7231 = vadd.f32 %v7160, %v7230
        %7232 = vdwg.mxu0
        %v7235 = vcombine.low %v7229, %v7231
        %v7237 = vunpack.c.l.s4 1966171168
        %v7238 = vunpack.c.0.s8 %v7237
        %v7239 = vlaneseq
        %v7240 = vshrl.u32 %v7239, 7
        %v7241 = vsub.s32 %v7238, %v7240
        %v7242 = vrot.slane %v7235, %v7241
        %v7244 = vunpack.c.l.s4 1966171168
        %v7245 = vunpack.c.0.s8 %v7244
        %v7246 = vlaneseq
        %v7247 = vshrl.u32 %v7246, 7
        %v7248 = vsub.s32 %v7245, %v7247
        %v7249 = vrot.slane %v7242, %v7248
        %v7251 = vlaneseq
        %vm7252 = vcmp.ge.s32.totalorder %v7251, 0
        %vm7253 = vcmp.lt.s32.totalorder %v7251, 256
        %vm7254 = vmand %vm7252, %vm7253
        %7255 = vst.msk [vmem:[%s273] sm:$0x3] %vm7254, %v7249
        %s7256 = sand.u32 %s183, 1
        %s7257 = scalar_lea.sflag [#allocation4], %s7256
        %s7258 = sand.u32 %s183, 1
        %s7259 = smul.addr %s7258, 2
        %s7260 = scalar_lea.vmem [#allocation3], %s7259
        // Predicated region
        $region49: #{tpu_custom_call.1} parent=47 // pred_check
          %p7261 = pneg %p193
        $region50: #{tpu_custom_call.1} parent=47 // pred_check_branch
          %7263 = sbr.rel (%p7261) target = $region52
        $region51: #{tpu_custom_call.1} parent=47 // pred_region
          %s7265 = ssub.s32 32, 32
          %7266 = vsyncadd %s7257, %s7265
          %s7267 = smul.addr %s23, 2
          %s7268 = smul.addr %s7267, 16
          %s7269 = scalar_lea.hbm %s7, %s7268
          %s7271 = sshll.u32 %s7260, 4
          %s7272 = int_to_ptr.vmem [resolvable:$true] %s7271
          %7274 = dma.vmem_to_hbm [thread:$0]  %s7272, 32, %s7269, %s7257
        $region52: #{tpu_custom_call.1} parent=47 // pred_fallthru
          _
      $region48: #{tpu_custom_call.1} parent=5 // pred_fallthru
        _
      %p7275 = scmp.le.s32.totalorder 2, %s18
      // Predicated region
      $region53: #{tpu_custom_call.1} parent=5 // pred_check
        %p7276 = pneg %p7275
      $region54: #{tpu_custom_call.1} parent=5 // pred_check_branch
        %7278 = sbr.rel (%p7276) target = $region56
      $region55: #{tpu_custom_call.1} parent=5 // pred_region
        %s7279 = ssub.s32 %s18, 2
        // Predicated region
        $region57: #{tpu_custom_call.1} parent=55 // pred_check
          %p7280 = pneg %p199
        $region58: #{tpu_custom_call.1} parent=55 // pred_check_branch
          %7282 = sbr.rel (%p7280) target = $region60
        $region59: #{tpu_custom_call.1} parent=55 // pred_region
          %s7283 = sand.u32 %s184, 1
          %s7284 = scalar_lea.sflag [#allocation4], %s7283
          %s7285 = sand.u32 %s184, 1
          %s7286 = smul.addr %s7285, 2
          %s7287 = scalar_lea.vmem [#allocation3], %s7286
          %7288 = dma.done %s7284, 32
        $region60: #{tpu_custom_call.1} parent=55 // pred_fallthru
          _
      $region56: #{tpu_custom_call.1} parent=5 // pred_fallthru
        _
    $region6: #{tpu_custom_call.1} parent=1 // loop_footer
      %s22 = sadd.s32 1, %s18
    $region7: #{tpu_custom_call.1} parent=1 // loop_footer_branch
      %17 = sbr.rel target = $region3
    $region8: #{tpu_custom_call.1} parent=1 // loop_exit
      _
    %7289 = vsyncpa [#allocation4], 1
    %s7290 = scalar_lea.sflag [#allocation4], 1
    %7291 = vsyncpa %s7290, 1

</llo_original>
